<compile_context>
chip_gen: v5e
topology: v5e:2x2
jax: 0.10.0
libtpu: 0.0.40
codegen_flags: <defaults>
</compile_context>

<pallas_src>
import math
import numpy as np
import jax
import jax.numpy as jnp
from jax import lax
from jax.experimental import pallas as pl
from jax.experimental.pallas import tpu as pltpu

# ----------------------------- configuration --------------------------------
NUM_ATTRIBUTES = 2
NUM_ATTR_VALS = 3
KEY_SUPPORT_SIZE = NUM_ATTR_VALS ** NUM_ATTRIBUTES          # 9
NULL = NUM_ATTRIBUTES * NUM_ATTR_VALS                       # 6
SOS = NULL + 1                                              # 7
SEP = NULL + 2                                              # 8
EOS = NULL + 3                                              # 9
PAD = NULL + 4                                              # 10
VOCAB_SIZE = NUM_ATTRIBUTES * NUM_ATTR_VALS + 5             # 11

D_MODEL = 32
N_HEADS = 4
D_HEAD = D_MODEL // N_HEADS
D_FF = 64
N_LAYERS = 2
LEN_Q = 8
LEN_K = NUM_ATTRIBUTES + 2                                  # 4
BATCH = 2
LN_EPS = 1e-5
MAX_LEN = 64

VOCAB_PAD = 16     # embedding table rows padded to 16 for the in-kernel one-hot matmul
CLS_PAD = 128      # classifier output padded to a full 128-lane slab (lane-dense store)
N_GRID = 2         # leading "parallel" grid axis (2 batch tiles -> both TCs on v7x)

LAYER_KEYS = ("wqkv", "bqkv", "wo", "bo", "g1", "be1",
              "w1", "b1", "w2", "b2", "g2", "be2")


# ------------------------- key-support construction -------------------------
def decode_key_to_vocab_token(num_attributes, num_attr_vals, key_idx):
    vals = []
    rem = key_idx
    for _ in range(num_attributes):
        vals.append(rem % num_attr_vals)
        rem //= num_attr_vals
    return np.array([a * num_attr_vals + v for a, v in enumerate(vals)], dtype=np.int64)


def setup_all_keys():
    all_keys = np.empty((KEY_SUPPORT_SIZE, 2 + NUM_ATTRIBUTES), dtype=np.int64)
    for key_idx in range(KEY_SUPPORT_SIZE):
        props = decode_key_to_vocab_token(NUM_ATTRIBUTES, NUM_ATTR_VALS, key_idx)
        all_keys[key_idx, :] = np.concatenate([[SOS], props, [SEP]])
    return jnp.asarray(all_keys, dtype=jnp.int32)


# ------------------------------ parameters -----------------------------------
def sinusoidal_pe(max_len, d_model):
    pos = np.arange(max_len)[:, None].astype(np.float32)
    div = np.exp(np.arange(0, d_model, 2).astype(np.float32) * (-math.log(10000.0) / d_model))
    pe = np.zeros((max_len, d_model), dtype=np.float32)
    pe[:, 0::2] = np.sin(pos * div)
    pe[:, 1::2] = np.cos(pos * div)
    return jnp.asarray(pe)


def init_params(key):
    keys = jax.random.split(key, 64)
    ki = iter(range(64))

    def w(shape, scale=0.02):
        return (scale * jax.random.normal(keys[next(ki)], shape)).astype(jnp.float32)

    params = {
        "embed": w((VOCAB_SIZE, D_MODEL)),
        "pe": sinusoidal_pe(MAX_LEN, D_MODEL),
        "layers": [],
        "cls_w": w((D_MODEL, VOCAB_SIZE)),
        "cls_b": jnp.zeros((1, VOCAB_SIZE), jnp.float32),
    }
    for _ in range(N_LAYERS):
        params["layers"].append({
            "wq": w((D_MODEL, D_MODEL)), "bq": jnp.zeros((1, D_MODEL), jnp.float32),
            "wk": w((D_MODEL, D_MODEL)), "bk": jnp.zeros((1, D_MODEL), jnp.float32),
            "wv": w((D_MODEL, D_MODEL)), "bv": jnp.zeros((1, D_MODEL), jnp.float32),
            "wo": w((D_MODEL, D_MODEL)), "bo": jnp.zeros((1, D_MODEL), jnp.float32),
            "g1": jnp.ones((1, D_MODEL), jnp.float32), "be1": jnp.zeros((1, D_MODEL), jnp.float32),
            "w1": w((D_MODEL, D_FF)), "b1": jnp.zeros((1, D_FF), jnp.float32),
            "w2": w((D_FF, D_MODEL)), "b2": jnp.zeros((1, D_MODEL), jnp.float32),
            "g2": jnp.ones((1, D_MODEL), jnp.float32), "be2": jnp.zeros((1, D_MODEL), jnp.float32),
        })
    return params


def pack_params(params):
    """Pack weights into the kernel-friendly layout (fused QKV, padded vocab / classifier)."""
    embed_pad = jnp.zeros((VOCAB_PAD, D_MODEL), jnp.float32).at[:VOCAB_SIZE].set(params["embed"])
    cls_w_pad = jnp.zeros((D_MODEL, CLS_PAD), jnp.float32).at[:, :VOCAB_SIZE].set(params["cls_w"])
    cls_b_pad = jnp.zeros((1, CLS_PAD), jnp.float32).at[:, :VOCAB_SIZE].set(params["cls_b"])
    layers = []
    for lp in params["layers"]:
        layers.append({
            "wqkv": jnp.concatenate([lp["wq"], lp["wk"], lp["wv"]], axis=1),   # (32, 96)
            "bqkv": jnp.concatenate([lp["bq"], lp["bk"], lp["bv"]], axis=1),   # (1, 96)
            "wo": lp["wo"], "bo": lp["bo"],
            "g1": lp["g1"], "be1": lp["be1"],
            "w1": lp["w1"], "b1": lp["b1"],
            "w2": lp["w2"], "b2": lp["b2"],
            "g2": lp["g2"], "be2": lp["be2"],
        })
    return {"embed": embed_pad, "pe": params["pe"], "layers": layers,
            "cls_w": cls_w_pad, "cls_b": cls_b_pad}


# ------------------------------ Pallas kernel --------------------------------
def _layernorm_rows(y, g, b):
    mean = jnp.mean(y, axis=-1, keepdims=True)
    var = jnp.mean((y - mean) ** 2, axis=-1, keepdims=True)
    return (y - mean) * lax.rsqrt(var + LN_EPS) * g + b


def fused_decoder_kernel(*refs):
    """Fused: one-hot embedding + PE, N_LAYERS post-LN decoder layers, classifier.

    refs = (tok, embed, pe, [12 weights per layer]*N_LAYERS, cls_w, cls_b, out, ctx_scratch)
    """
    nw = 12 * N_LAYERS
    tok_ref = refs[0]
    embed_ref, pe_ref = refs[1], refs[2]
    layer_refs = refs[3:3 + nw]
    clsw_ref, clsb_ref = refs[3 + nw], refs[4 + nw]
    out_ref, ctx_ref = refs[5 + nw], refs[6 + nw]

    tok = tok_ref[...]                                   # (Bt, L) int32
    Bt, L = tok.shape
    D = D_MODEL
    rows = Bt * L

    # ----- embedding via one-hot matmul (no in-kernel gather) + positional encoding -----
    vocab_ids = lax.broadcasted_iota(jnp.int32, (1, VOCAB_PAD), 1)           # (1, 16)
    onehot = (tok[:, :, None] == vocab_ids[None, :, :]).astype(jnp.float32)  # (Bt, L, 16)
    x = jnp.dot(onehot.reshape(rows, VOCAB_PAD), embed_ref[...],
                preferred_element_type=jnp.float32) * math.sqrt(D_MODEL)     # (rows, D)
    x = (x.reshape(Bt, L, D) + pe_ref[...][None, :, :]).reshape(rows, D)

    # ----- attention mask: causal AND key-position-not-PAD (padded tail positions are PAD) -----
    key_ok = jnp.logical_not(tok == PAD)                 # (Bt, L)
    q_ids = lax.broadcasted_iota(jnp.int32, (L, L), 0)
    k_ids = lax.broadcasted_iota(jnp.int32, (L, L), 1)
    allowed = jnp.logical_and((k_ids <= q_ids)[None, :, :], key_ok[:, None, :])  # (Bt, L, L)

    inv_sqrt = 1.0 / math.sqrt(D_HEAD)

    for li in range(N_LAYERS):
        (wqkv, bqkv, wo, bo, g1, be1,
         w1, b1, w2, b2, g2, be2) = layer_refs[li * 12:(li + 1) * 12]

        # fused Q/K/V projection: one (rows, 32) @ (32, 96) matmul
        qkv = jnp.dot(x, wqkv[...], preferred_element_type=jnp.float32) + bqkv[...]
        q = qkv[:, 0 * D:1 * D].reshape(Bt, L, D)
        k = qkv[:, 1 * D:2 * D].reshape(Bt, L, D)
        v = qkv[:, 2 * D:3 * D].reshape(Bt, L, D)

        # per-head scores/softmax/context (unrolled; single-batch-dim einsums lower safely),
        # heads gathered into a 32-lane VMEM scratch slab -> ONE output projection matmul.
        for h in range(N_HEADS):
            sl = slice(h * D_HEAD, (h + 1) * D_HEAD)
            qh, kh, vh = q[:, :, sl], k[:, :, sl], v[:, :, sl]
            scores = jnp.einsum("bqd,bkd->bqk", qh, kh,
                                preferred_element_type=jnp.float32) * inv_sqrt
            scores = jnp.where(allowed, scores, -1e9)
            m = jnp.max(scores, axis=-1, keepdims=True)
            p = jnp.exp(scores - m)
            p = p * pl.reciprocal(jnp.sum(p, axis=-1, keepdims=True), approx=True)
            ctx_h = jnp.einsum("bqk,bkd->bqd", p, vh,
                               preferred_element_type=jnp.float32)           # (Bt, L, dh)
            ctx_ref[:, sl] = ctx_h.reshape(rows, D_HEAD)

        attn = jnp.dot(ctx_ref[...], wo[...], preferred_element_type=jnp.float32) + bo[...]

        y = _layernorm_rows(x + attn, g1[...], be1[...])
        h1 = jnp.maximum(
            jnp.dot(y, w1[...], preferred_element_type=jnp.float32) + b1[...], 0.0)
        ffn = jnp.dot(h1, w2[...], preferred_element_type=jnp.float32) + b2[...]
        x = _layernorm_rows(y + ffn, g2[...], be2[...])

    # ----- classifier: lane-dense (rows, 128) store; real 11 columns sliced outside -----
    out_ref[...] = (jnp.dot(x, clsw_ref[...], preferred_element_type=jnp.float32)
                    + clsb_ref[...])


# ------------------------------ kernel wrapper --------------------------------
def _run_fused(tok3, packed, L_pad):
    n_grid, tile_b, _ = tok3.shape
    rows_tile = tile_b * L_pad

    flat_w = [packed["embed"], packed["pe"][:L_pad]]
    for lp in packed["layers"]:
        flat_w.extend(lp[k] for k in LAYER_KEYS)
    flat_w.extend([packed["cls_w"], packed["cls_b"]])

    in_specs = [pl.BlockSpec((None, tile_b, L_pad), lambda i: (i, 0, 0))]
    for w in flat_w:  # weights: full-array blocks, same block every grid step (loaded once)
        in_specs.append(pl.BlockSpec(w.shape, lambda i, _nd=w.ndim: (0,) * _nd))

    return pl.pallas_call(
        fused_decoder_kernel,
        grid=(n_grid,),
        in_specs=in_specs,
        out_specs=pl.BlockSpec((None, rows_tile, CLS_PAD), lambda i: (i, 0, 0)),
        out_shape=jax.ShapeDtypeStruct((n_grid, rows_tile, CLS_PAD), jnp.float32),
        scratch_shapes=[pltpu.VMEM((rows_tile, D_MODEL), jnp.float32)],
        compiler_params=pltpu.CompilerParams(dimension_semantics=("parallel",)),
    )(tok3, *flat_w)


def fused_forward(tokens, packed):
    """tokens: (B_eff, L_real) int32 -> logits (B_eff, L_real, VOCAB_SIZE) f32. One Pallas launch."""
    B_eff, L_real = tokens.shape
    L_pad = -(-L_real // 8) * 8                         # 11 -> 16 (sublane-aligned folds)
    B_pad = -(-B_eff // N_GRID) * N_GRID
    tile_b = B_pad // N_GRID
    tok_p = jnp.full((B_pad, L_pad), PAD, jnp.int32).at[:B_eff, :L_real].set(tokens)
    tok3 = tok_p.reshape(N_GRID, tile_b, L_pad)
    out3 = _run_fused(tok3, packed, L_pad)
    return out3.reshape(B_pad, L_pad, CLS_PAD)[:B_eff, :L_real, :VOCAB_SIZE]


# ---------------------------- forward pass (glue) ----------------------------
def decode_and_classify(X_query, X_key, packed):
    b = X_query.shape[0]
    inp_len = X_query.shape[1] + X_key.shape[1] - 1
    # if X_key[0, -1] != SEP: X_key[:, -1] = SEP   (data-dependent; done with jnp.where)
    last_col = jnp.where(X_key[0, -1] != SEP,
                         jnp.full((b,), SEP, X_key.dtype), X_key[:, -1])
    X_key = X_key.at[:, -1].set(last_col)
    X_keyquery = jnp.concatenate([X_key, X_query[:, 1:]], axis=-1)
    assert X_keyquery.shape[1] == inp_len
    out_logits = fused_forward(X_keyquery, packed)      # embedding + decoder + classifier, fused
    return out_logits, X_keyquery


@jax.jit
def forward_minibatch(X_query, X_key, packed):
    out_logits, X_querykey = decode_and_classify(X_query, X_key, packed)
    b, inp_len = X_querykey.shape
    assert out_logits.shape == (b, inp_len, VOCAB_SIZE)
    return out_logits, X_querykey


@jax.jit
def forward_norm_support(X_query, all_keys, packed):
    # All 9 support keys are folded into the batch dimension: ONE fused forward, B_eff = K*b.
    b, len_q = X_query.shape
    K, len_k = all_keys.shape
    X_key_big = jnp.broadcast_to(all_keys[:, None, :], (K, b, len_k)).reshape(K * b, len_k)
    X_query_big = jnp.broadcast_to(X_query[None, :, :], (K, b, len_q)).reshape(K * b, len_q)
    out_big, _ = decode_and_classify(X_query_big, X_key_big, packed)
    inp_len = len_k + len_q - 1
    return jnp.transpose(out_big.reshape(K, b, inp_len, VOCAB_SIZE), (1, 0, 2, 3))


def forward(X_query, X_key, from_support, all_keys, packed):
    if from_support:
        return forward_norm_support(X_query, all_keys, packed), None
    assert X_key is not None
    return forward_minibatch(X_query, X_key, packed)


# ----------------------------------- main ------------------------------------
if __name__ == "__main__":
    root = jax.random.PRNGKey(0)
    k_params, k_query, k_keyidx = jax.random.split(root, 3)

    params = init_params(k_params)
    packed = pack_params(params)
    all_keys = setup_all_keys()

    # X_query: (B, LEN_Q) with <SOS> ... <EOS>, one trailing PAD to exercise the mask
    body = jax.random.randint(k_query, (BATCH, LEN_Q - 3), 0,
                              NUM_ATTRIBUTES * NUM_ATTR_VALS, dtype=jnp.int32)
    X_query = jnp.concatenate([
        jnp.full((BATCH, 1), SOS, jnp.int32),
        body,
        jnp.full((BATCH, 1), EOS, jnp.int32),
        jnp.full((BATCH, 1), PAD, jnp.int32),
    ], axis=1)

    # X_key: (B, LEN_K) sampled from the key support
    key_ids = jax.random.randint(k_keyidx, (BATCH,), 0, KEY_SUPPORT_SIZE, dtype=jnp.int32)
    X_key = all_keys[key_ids]

    # from_support = False path
    logits_mb, X_querykey = forward(X_query, X_key, False, all_keys, packed)
    logits_mb = jax.block_until_ready(logits_mb)
    assert logits_mb.shape == (BATCH, LEN_K + LEN_Q - 1, VOCAB_SIZE)
    assert X_querykey.shape == (BATCH, LEN_K + LEN_Q - 1)

    # from_support = True path (all 9 keys batched into one fused forward)
    logits_sup, _ = forward(X_query, None, True, all_keys, packed)
    logits_sup = jax.block_until_ready(logits_sup)
    assert logits_sup.shape == (BATCH, KEY_SUPPORT_SIZE, LEN_K + LEN_Q - 1, VOCAB_SIZE)

    assert bool(jnp.all(jnp.isfinite(logits_mb))) and bool(jnp.all(jnp.isfinite(logits_sup)))
    print("KERNEL_OK")
</pallas_src>

<mosaic_0001>
module attributes {stable_mosaic.version = 11 : i64} {
  func.func @fused_decoder_kernel(%arg0: i32, %arg1: memref<1x1x16xi32, #tpu.memory_space<vmem>>, %arg2: memref<16x32xf32, #tpu.memory_space<vmem>>, %arg3: memref<16x32xf32, #tpu.memory_space<vmem>>, %arg4: memref<32x96xf32, #tpu.memory_space<vmem>>, %arg5: memref<1x96xf32, #tpu.memory_space<vmem>>, %arg6: memref<32x32xf32, #tpu.memory_space<vmem>>, %arg7: memref<1x32xf32, #tpu.memory_space<vmem>>, %arg8: memref<1x32xf32, #tpu.memory_space<vmem>>, %arg9: memref<1x32xf32, #tpu.memory_space<vmem>>, %arg10: memref<32x64xf32, #tpu.memory_space<vmem>>, %arg11: memref<1x64xf32, #tpu.memory_space<vmem>>, %arg12: memref<64x32xf32, #tpu.memory_space<vmem>>, %arg13: memref<1x32xf32, #tpu.memory_space<vmem>>, %arg14: memref<1x32xf32, #tpu.memory_space<vmem>>, %arg15: memref<1x32xf32, #tpu.memory_space<vmem>>, %arg16: memref<32x96xf32, #tpu.memory_space<vmem>>, %arg17: memref<1x96xf32, #tpu.memory_space<vmem>>, %arg18: memref<32x32xf32, #tpu.memory_space<vmem>>, %arg19: memref<1x32xf32, #tpu.memory_space<vmem>>, %arg20: memref<1x32xf32, #tpu.memory_space<vmem>>, %arg21: memref<1x32xf32, #tpu.memory_space<vmem>>, %arg22: memref<32x64xf32, #tpu.memory_space<vmem>>, %arg23: memref<1x64xf32, #tpu.memory_space<vmem>>, %arg24: memref<64x32xf32, #tpu.memory_space<vmem>>, %arg25: memref<1x32xf32, #tpu.memory_space<vmem>>, %arg26: memref<1x32xf32, #tpu.memory_space<vmem>>, %arg27: memref<1x32xf32, #tpu.memory_space<vmem>>, %arg28: memref<32x128xf32, #tpu.memory_space<vmem>>, %arg29: memref<1x128xf32, #tpu.memory_space<vmem>>, %arg30: memref<1x16x128xf32, #tpu.memory_space<vmem>>, %arg31: memref<16x32xf32, #tpu.memory_space<vmem>>) attributes {dimension_semantics = [#tpu.dimension_semantics<parallel>], iteration_bounds = array<i64: 2>, scalar_prefetch = 0 : i64, scratch_operands = 1 : i64, tpu.core_type = #tpu.core_type<tc>, window_params = [{transform_indices = @transform_0, window_bounds = array<i64: 1, 1, 16>}, {pipeline_mode = #tpu.pipeline_mode<synchronous>, transform_indices = @transform_1, window_bounds = array<i64: 16, 32>}, {pipeline_mode = #tpu.pipeline_mode<synchronous>, transform_indices = @transform_2, window_bounds = array<i64: 16, 32>}, {pipeline_mode = #tpu.pipeline_mode<synchronous>, transform_indices = @transform_3, window_bounds = array<i64: 32, 96>}, {pipeline_mode = #tpu.pipeline_mode<synchronous>, transform_indices = @transform_4, window_bounds = array<i64: 1, 96>}, {pipeline_mode = #tpu.pipeline_mode<synchronous>, transform_indices = @transform_5, window_bounds = array<i64: 32, 32>}, {pipeline_mode = #tpu.pipeline_mode<synchronous>, transform_indices = @transform_6, window_bounds = array<i64: 1, 32>}, {pipeline_mode = #tpu.pipeline_mode<synchronous>, transform_indices = @transform_7, window_bounds = array<i64: 1, 32>}, {pipeline_mode = #tpu.pipeline_mode<synchronous>, transform_indices = @transform_8, window_bounds = array<i64: 1, 32>}, {pipeline_mode = #tpu.pipeline_mode<synchronous>, transform_indices = @transform_9, window_bounds = array<i64: 32, 64>}, {pipeline_mode = #tpu.pipeline_mode<synchronous>, transform_indices = @transform_10, window_bounds = array<i64: 1, 64>}, {pipeline_mode = #tpu.pipeline_mode<synchronous>, transform_indices = @transform_11, window_bounds = array<i64: 64, 32>}, {pipeline_mode = #tpu.pipeline_mode<synchronous>, transform_indices = @transform_12, window_bounds = array<i64: 1, 32>}, {pipeline_mode = #tpu.pipeline_mode<synchronous>, transform_indices = @transform_13, window_bounds = array<i64: 1, 32>}, {pipeline_mode = #tpu.pipeline_mode<synchronous>, transform_indices = @transform_14, window_bounds = array<i64: 1, 32>}, {pipeline_mode = #tpu.pipeline_mode<synchronous>, transform_indices = @transform_15, window_bounds = array<i64: 32, 96>}, {pipeline_mode = #tpu.pipeline_mode<synchronous>, transform_indices = @transform_16, window_bounds = array<i64: 1, 96>}, {pipeline_mode = #tpu.pipeline_mode<synchronous>, transform_indices = @transform_17, window_bounds = array<i64: 32, 32>}, {pipeline_mode = #tpu.pipeline_mode<synchronous>, transform_indices = @transform_18, window_bounds = array<i64: 1, 32>}, {pipeline_mode = #tpu.pipeline_mode<synchronous>, transform_indices = @transform_19, window_bounds = array<i64: 1, 32>}, {pipeline_mode = #tpu.pipeline_mode<synchronous>, transform_indices = @transform_20, window_bounds = array<i64: 1, 32>}, {pipeline_mode = #tpu.pipeline_mode<synchronous>, transform_indices = @transform_21, window_bounds = array<i64: 32, 64>}, {pipeline_mode = #tpu.pipeline_mode<synchronous>, transform_indices = @transform_22, window_bounds = array<i64: 1, 64>}, {pipeline_mode = #tpu.pipeline_mode<synchronous>, transform_indices = @transform_23, window_bounds = array<i64: 64, 32>}, {pipeline_mode = #tpu.pipeline_mode<synchronous>, transform_indices = @transform_24, window_bounds = array<i64: 1, 32>}, {pipeline_mode = #tpu.pipeline_mode<synchronous>, transform_indices = @transform_25, window_bounds = array<i64: 1, 32>}, {pipeline_mode = #tpu.pipeline_mode<synchronous>, transform_indices = @transform_26, window_bounds = array<i64: 1, 32>}, {pipeline_mode = #tpu.pipeline_mode<synchronous>, transform_indices = @transform_27, window_bounds = array<i64: 32, 128>}, {pipeline_mode = #tpu.pipeline_mode<synchronous>, transform_indices = @transform_28, window_bounds = array<i64: 1, 128>}, {transform_indices = @transform_29, window_bounds = array<i64: 1, 16, 128>}]} {
    %c0 = arith.constant 0 : index
    %c0_0 = arith.constant 0 : index
    %c0_1 = arith.constant 0 : index
    %0 = vector.load %arg1[%c0, %c0_0, %c0_1] : memref<1x1x16xi32, #tpu.memory_space<vmem>>, vector<1x1x16xi32>
    %1 = vector.shape_cast %0 : vector<1x1x16xi32> to vector<1x16xi32>
    %2 = tpu.iota {dimensions = array<i32: 1>} : vector<1x16xi32>
    %3 = vector.shape_cast %1 : vector<1x16xi32> to vector<1x16x1xi32>
    %4 = vector.shape_cast %2 : vector<1x16xi32> to vector<1x1x16xi32>
    %5 = vector.broadcast %3 : vector<1x16x1xi32> to vector<1x16x16xi32>
    %6 = vector.broadcast %4 : vector<1x1x16xi32> to vector<1x16x16xi32>
    %7 = arith.cmpi eq, %5, %6 : vector<1x16x16xi32>
    %8 = arith.extui %7 : vector<1x16x16xi1> to vector<1x16x16xi32>
    %9 = arith.sitofp %8 : vector<1x16x16xi32> to vector<1x16x16xf32>
    %10 = vector.shape_cast %9 : vector<1x16x16xf32> to vector<16x16xf32>
    %c0_2 = arith.constant 0 : index
    %c0_3 = arith.constant 0 : index
    %11 = vector.load %arg2[%c0_2, %c0_3] : memref<16x32xf32, #tpu.memory_space<vmem>>, vector<16x32xf32>
    %cst = arith.constant dense<0.000000e+00> : vector<16x32xf32>
    %12 = tpu.matmul %10, %11, %cst {dimension_numbers = #tpu.dot_dimension_numbers<[1], [0], [0], [1], [0, 0, 1, 1], [], []>} : vector<16x16xf32>, vector<16x32xf32>, vector<16x32xf32> -> vector<16x32xf32>
    %cst_4 = arith.constant 5.65685415 : f32
    %13 = vector.broadcast %cst_4 : f32 to vector<16x32xf32>
    %14 = arith.mulf %12, %13 : vector<16x32xf32>
    %15 = vector.shape_cast %14 : vector<16x32xf32> to vector<1x16x32xf32>
    %c0_5 = arith.constant 0 : index
    %c0_6 = arith.constant 0 : index
    %16 = vector.load %arg3[%c0_5, %c0_6] : memref<16x32xf32, #tpu.memory_space<vmem>>, vector<16x32xf32>
    %17 = vector.shape_cast %16 : vector<16x32xf32> to vector<1x16x32xf32>
    %18 = arith.addf %15, %17 : vector<1x16x32xf32>
    %19 = vector.shape_cast %18 : vector<1x16x32xf32> to vector<16x32xf32>
    %c10_i32 = arith.constant 10 : i32
    %20 = vector.broadcast %c10_i32 : i32 to vector<1x16xi32>
    %21 = arith.cmpi eq, %1, %20 : vector<1x16xi32>
    %cst_7 = arith.constant dense<true> : vector<1x16xi1>
    %22 = arith.xori %21, %cst_7 : vector<1x16xi1>
    %23 = tpu.iota {dimensions = array<i32: 0>} : vector<16x16xi32>
    %24 = tpu.iota {dimensions = array<i32: 1>} : vector<16x16xi32>
    %25 = arith.cmpi sle, %24, %23 : vector<16x16xi32>
    %26 = vector.shape_cast %25 : vector<16x16xi1> to vector<1x16x16xi1>
    %27 = vector.shape_cast %22 : vector<1x16xi1> to vector<1x1x16xi1>
    %28 = vector.broadcast %27 : vector<1x1x16xi1> to vector<1x16x16xi1>
    %29 = arith.andi %26, %28 : vector<1x16x16xi1>
    %c0_8 = arith.constant 0 : index
    %c0_9 = arith.constant 0 : index
    %30 = vector.load %arg4[%c0_8, %c0_9] : memref<32x96xf32, #tpu.memory_space<vmem>>, vector<32x96xf32>
    %cst_10 = arith.constant dense<0.000000e+00> : vector<16x96xf32>
    %31 = tpu.matmul %19, %30, %cst_10 {dimension_numbers = #tpu.dot_dimension_numbers<[1], [0], [0], [1], [0, 0, 1, 1], [], []>} : vector<16x32xf32>, vector<32x96xf32>, vector<16x96xf32> -> vector<16x96xf32>
    %c0_11 = arith.constant 0 : index
    %c0_12 = arith.constant 0 : index
    %32 = vector.load %arg5[%c0_11, %c0_12] : memref<1x96xf32, #tpu.memory_space<vmem>>, vector<1x96xf32>
    %33 = vector.broadcast %32 : vector<1x96xf32> to vector<16x96xf32>
    %34 = arith.addf %31, %33 : vector<16x96xf32>
    %35 = vector.extract_strided_slice %34 {offsets = [0, 0], sizes = [16, 32], strides = [1, 1]} : vector<16x96xf32> to vector<16x32xf32>
    %36 = vector.shape_cast %35 : vector<16x32xf32> to vector<1x16x32xf32>
    %37 = vector.extract_strided_slice %34 {offsets = [0, 32], sizes = [16, 32], strides = [1, 1]} : vector<16x96xf32> to vector<16x32xf32>
    %38 = vector.shape_cast %37 : vector<16x32xf32> to vector<1x16x32xf32>
    %39 = vector.extract_strided_slice %34 {offsets = [0, 64], sizes = [16, 32], strides = [1, 1]} : vector<16x96xf32> to vector<16x32xf32>
    %40 = vector.shape_cast %39 : vector<16x32xf32> to vector<1x16x32xf32>
    %41 = vector.extract_strided_slice %36 {offsets = [0, 0, 0], sizes = [1, 16, 8], strides = [1, 1, 1]} : vector<1x16x32xf32> to vector<1x16x8xf32>
    %42 = vector.extract_strided_slice %38 {offsets = [0, 0, 0], sizes = [1, 16, 8], strides = [1, 1, 1]} : vector<1x16x32xf32> to vector<1x16x8xf32>
    %43 = vector.extract_strided_slice %40 {offsets = [0, 0, 0], sizes = [1, 16, 8], strides = [1, 1, 1]} : vector<1x16x32xf32> to vector<1x16x8xf32>
    "tpu.trace_start"() <{level = 10 : i32, message = "bqd,bkd->bqk"}> : () -> ()
    %cst_13 = arith.constant dense<0.000000e+00> : vector<1x16x16xf32>
    %44 = tpu.matmul %41, %42, %cst_13 {dimension_numbers = #tpu.dot_dimension_numbers<[2], [2], [1], [1], [0, 0, 0, 1, 1, 1], [0], [0]>} : vector<1x16x8xf32>, vector<1x16x8xf32>, vector<1x16x16xf32> -> vector<1x16x16xf32>
    "tpu.trace_stop"() : () -> ()
    %cst_14 = arith.constant 0.353553385 : f32
    %45 = vector.broadcast %cst_14 : f32 to vector<1x16x16xf32>
    %46 = arith.mulf %44, %45 : vector<1x16x16xf32>
    %cst_15 = arith.constant -1.000000e+09 : f32
    %47 = vector.broadcast %cst_15 : f32 to vector<1x16x16xf32>
    %48 = arith.select %29, %46, %47 : vector<1x16x16xi1>, vector<1x16x16xf32>
    %cst_16 = arith.constant dense<0xFF800000> : vector<1x16xf32>
    %49 = vector.multi_reduction <maximumf>, %48, %cst_16 [2] : vector<1x16x16xf32> to vector<1x16xf32>
    %50 = vector.shape_cast %49 : vector<1x16xf32> to vector<1x16x1xf32>
    %51 = vector.broadcast %50 : vector<1x16x1xf32> to vector<1x16x16xf32>
    %52 = arith.subf %48, %51 : vector<1x16x16xf32>
    %53 = math.exp %52 : vector<1x16x16xf32>
    %cst_17 = arith.constant dense<0.000000e+00> : vector<1x16xf32>
    %54 = vector.multi_reduction <add>, %53, %cst_17 [2] : vector<1x16x16xf32> to vector<1x16xf32>
    %55 = vector.shape_cast %54 : vector<1x16xf32> to vector<1x16x1xf32>
    %56 = tpu.reciprocal %55 {approx = true} : vector<1x16x1xf32> -> vector<1x16x1xf32>
    %57 = vector.broadcast %56 : vector<1x16x1xf32> to vector<1x16x16xf32>
    %58 = arith.mulf %53, %57 : vector<1x16x16xf32>
    "tpu.trace_start"() <{level = 10 : i32, message = "bqk,bkd->bqd"}> : () -> ()
    %cst_18 = arith.constant dense<0.000000e+00> : vector<1x16x8xf32>
    %59 = tpu.matmul %58, %43, %cst_18 {dimension_numbers = #tpu.dot_dimension_numbers<[2], [1], [1], [2], [0, 0, 0, 1, 1, 2], [0], [0]>} : vector<1x16x16xf32>, vector<1x16x8xf32>, vector<1x16x8xf32> -> vector<1x16x8xf32>
    "tpu.trace_stop"() : () -> ()
    %60 = vector.shape_cast %59 : vector<1x16x8xf32> to vector<16x8xf32>
    %c0_19 = arith.constant 0 : index
    %c0_20 = arith.constant 0 : index
    %61 = vector.load %arg31[%c0_19, %c0_20] : memref<16x32xf32, #tpu.memory_space<vmem>>, vector<16x8xf32>
    tpu.vector_store %arg31[%c0_19, %c0_20], %60 {strides = array<i32>} : memref<16x32xf32, #tpu.memory_space<vmem>>, vector<16x8xf32>,
    %62 = vector.extract_strided_slice %36 {offsets = [0, 0, 8], sizes = [1, 16, 8], strides = [1, 1, 1]} : vector<1x16x32xf32> to vector<1x16x8xf32>
    %63 = vector.extract_strided_slice %38 {offsets = [0, 0, 8], sizes = [1, 16, 8], strides = [1, 1, 1]} : vector<1x16x32xf32> to vector<1x16x8xf32>
    %64 = vector.extract_strided_slice %40 {offsets = [0, 0, 8], sizes = [1, 16, 8], strides = [1, 1, 1]} : vector<1x16x32xf32> to vector<1x16x8xf32>
    "tpu.trace_start"() <{level = 10 : i32, message = "bqd,bkd->bqk"}> : () -> ()
    %cst_21 = arith.constant dense<0.000000e+00> : vector<1x16x16xf32>
    %65 = tpu.matmul %62, %63, %cst_21 {dimension_numbers = #tpu.dot_dimension_numbers<[2], [2], [1], [1], [0, 0, 0, 1, 1, 1], [0], [0]>} : vector<1x16x8xf32>, vector<1x16x8xf32>, vector<1x16x16xf32> -> vector<1x16x16xf32>
    "tpu.trace_stop"() : () -> ()
    %cst_22 = arith.constant 0.353553385 : f32
    %66 = vector.broadcast %cst_22 : f32 to vector<1x16x16xf32>
    %67 = arith.mulf %65, %66 : vector<1x16x16xf32>
    %cst_23 = arith.constant -1.000000e+09 : f32
    %68 = vector.broadcast %cst_23 : f32 to vector<1x16x16xf32>
    %69 = arith.select %29, %67, %68 : vector<1x16x16xi1>, vector<1x16x16xf32>
    %cst_24 = arith.constant dense<0xFF800000> : vector<1x16xf32>
    %70 = vector.multi_reduction <maximumf>, %69, %cst_24 [2] : vector<1x16x16xf32> to vector<1x16xf32>
    %71 = vector.shape_cast %70 : vector<1x16xf32> to vector<1x16x1xf32>
    %72 = vector.broadcast %71 : vector<1x16x1xf32> to vector<1x16x16xf32>
    %73 = arith.subf %69, %72 : vector<1x16x16xf32>
    %74 = math.exp %73 : vector<1x16x16xf32>
    %cst_25 = arith.constant dense<0.000000e+00> : vector<1x16xf32>
    %75 = vector.multi_reduction <add>, %74, %cst_25 [2] : vector<1x16x16xf32> to vector<1x16xf32>
    %76 = vector.shape_cast %75 : vector<1x16xf32> to vector<1x16x1xf32>
    %77 = tpu.reciprocal %76 {approx = true} : vector<1x16x1xf32> -> vector<1x16x1xf32>
    %78 = vector.broadcast %77 : vector<1x16x1xf32> to vector<1x16x16xf32>
    %79 = arith.mulf %74, %78 : vector<1x16x16xf32>
    "tpu.trace_start"() <{level = 10 : i32, message = "bqk,bkd->bqd"}> : () -> ()
    %cst_26 = arith.constant dense<0.000000e+00> : vector<1x16x8xf32>
    %80 = tpu.matmul %79, %64, %cst_26 {dimension_numbers = #tpu.dot_dimension_numbers<[2], [1], [1], [2], [0, 0, 0, 1, 1, 2], [0], [0]>} : vector<1x16x16xf32>, vector<1x16x8xf32>, vector<1x16x8xf32> -> vector<1x16x8xf32>
    "tpu.trace_stop"() : () -> ()
    %81 = vector.shape_cast %80 : vector<1x16x8xf32> to vector<16x8xf32>
    %c0_27 = arith.constant 0 : index
    %c8 = arith.constant 8 : index
    %82 = vector.load %arg31[%c0_27, %c8] : memref<16x32xf32, #tpu.memory_space<vmem>>, vector<16x8xf32>
    tpu.vector_store %arg31[%c0_27, %c8], %81 {strides = array<i32>} : memref<16x32xf32, #tpu.memory_space<vmem>>, vector<16x8xf32>,
    %83 = vector.extract_strided_slice %36 {offsets = [0, 0, 16], sizes = [1, 16, 8], strides = [1, 1, 1]} : vector<1x16x32xf32> to vector<1x16x8xf32>
    %84 = vector.extract_strided_slice %38 {offsets = [0, 0, 16], sizes = [1, 16, 8], strides = [1, 1, 1]} : vector<1x16x32xf32> to vector<1x16x8xf32>
    %85 = vector.extract_strided_slice %40 {offsets = [0, 0, 16], sizes = [1, 16, 8], strides = [1, 1, 1]} : vector<1x16x32xf32> to vector<1x16x8xf32>
    "tpu.trace_start"() <{level = 10 : i32, message = "bqd,bkd->bqk"}> : () -> ()
    %cst_28 = arith.constant dense<0.000000e+00> : vector<1x16x16xf32>
    %86 = tpu.matmul %83, %84, %cst_28 {dimension_numbers = #tpu.dot_dimension_numbers<[2], [2], [1], [1], [0, 0, 0, 1, 1, 1], [0], [0]>} : vector<1x16x8xf32>, vector<1x16x8xf32>, vector<1x16x16xf32> -> vector<1x16x16xf32>
    "tpu.trace_stop"() : () -> ()
    %cst_29 = arith.constant 0.353553385 : f32
    %87 = vector.broadcast %cst_29 : f32 to vector<1x16x16xf32>
    %88 = arith.mulf %86, %87 : vector<1x16x16xf32>
    %cst_30 = arith.constant -1.000000e+09 : f32
    %89 = vector.broadcast %cst_30 : f32 to vector<1x16x16xf32>
    %90 = arith.select %29, %88, %89 : vector<1x16x16xi1>, vector<1x16x16xf32>
    %cst_31 = arith.constant dense<0xFF800000> : vector<1x16xf32>
    %91 = vector.multi_reduction <maximumf>, %90, %cst_31 [2] : vector<1x16x16xf32> to vector<1x16xf32>
    %92 = vector.shape_cast %91 : vector<1x16xf32> to vector<1x16x1xf32>
    %93 = vector.broadcast %92 : vector<1x16x1xf32> to vector<1x16x16xf32>
    %94 = arith.subf %90, %93 : vector<1x16x16xf32>
    %95 = math.exp %94 : vector<1x16x16xf32>
    %cst_32 = arith.constant dense<0.000000e+00> : vector<1x16xf32>
    %96 = vector.multi_reduction <add>, %95, %cst_32 [2] : vector<1x16x16xf32> to vector<1x16xf32>
    %97 = vector.shape_cast %96 : vector<1x16xf32> to vector<1x16x1xf32>
    %98 = tpu.reciprocal %97 {approx = true} : vector<1x16x1xf32> -> vector<1x16x1xf32>
    %99 = vector.broadcast %98 : vector<1x16x1xf32> to vector<1x16x16xf32>
    %100 = arith.mulf %95, %99 : vector<1x16x16xf32>
    "tpu.trace_start"() <{level = 10 : i32, message = "bqk,bkd->bqd"}> : () -> ()
    %cst_33 = arith.constant dense<0.000000e+00> : vector<1x16x8xf32>
    %101 = tpu.matmul %100, %85, %cst_33 {dimension_numbers = #tpu.dot_dimension_numbers<[2], [1], [1], [2], [0, 0, 0, 1, 1, 2], [0], [0]>} : vector<1x16x16xf32>, vector<1x16x8xf32>, vector<1x16x8xf32> -> vector<1x16x8xf32>
    "tpu.trace_stop"() : () -> ()
    %102 = vector.shape_cast %101 : vector<1x16x8xf32> to vector<16x8xf32>
    %c0_34 = arith.constant 0 : index
    %c16 = arith.constant 16 : index
    %103 = vector.load %arg31[%c0_34, %c16] : memref<16x32xf32, #tpu.memory_space<vmem>>, vector<16x8xf32>
    tpu.vector_store %arg31[%c0_34, %c16], %102 {strides = array<i32>} : memref<16x32xf32, #tpu.memory_space<vmem>>, vector<16x8xf32>,
    %104 = vector.extract_strided_slice %36 {offsets = [0, 0, 24], sizes = [1, 16, 8], strides = [1, 1, 1]} : vector<1x16x32xf32> to vector<1x16x8xf32>
    %105 = vector.extract_strided_slice %38 {offsets = [0, 0, 24], sizes = [1, 16, 8], strides = [1, 1, 1]} : vector<1x16x32xf32> to vector<1x16x8xf32>
    %106 = vector.extract_strided_slice %40 {offsets = [0, 0, 24], sizes = [1, 16, 8], strides = [1, 1, 1]} : vector<1x16x32xf32> to vector<1x16x8xf32>
    "tpu.trace_start"() <{level = 10 : i32, message = "bqd,bkd->bqk"}> : () -> ()
    %cst_35 = arith.constant dense<0.000000e+00> : vector<1x16x16xf32>
    %107 = tpu.matmul %104, %105, %cst_35 {dimension_numbers = #tpu.dot_dimension_numbers<[2], [2], [1], [1], [0, 0, 0, 1, 1, 1], [0], [0]>} : vector<1x16x8xf32>, vector<1x16x8xf32>, vector<1x16x16xf32> -> vector<1x16x16xf32>
    "tpu.trace_stop"() : () -> ()
    %cst_36 = arith.constant 0.353553385 : f32
    %108 = vector.broadcast %cst_36 : f32 to vector<1x16x16xf32>
    %109 = arith.mulf %107, %108 : vector<1x16x16xf32>
    %cst_37 = arith.constant -1.000000e+09 : f32
    %110 = vector.broadcast %cst_37 : f32 to vector<1x16x16xf32>
    %111 = arith.select %29, %109, %110 : vector<1x16x16xi1>, vector<1x16x16xf32>
    %cst_38 = arith.constant dense<0xFF800000> : vector<1x16xf32>
    %112 = vector.multi_reduction <maximumf>, %111, %cst_38 [2] : vector<1x16x16xf32> to vector<1x16xf32>
    %113 = vector.shape_cast %112 : vector<1x16xf32> to vector<1x16x1xf32>
    %114 = vector.broadcast %113 : vector<1x16x1xf32> to vector<1x16x16xf32>
    %115 = arith.subf %111, %114 : vector<1x16x16xf32>
    %116 = math.exp %115 : vector<1x16x16xf32>
    %cst_39 = arith.constant dense<0.000000e+00> : vector<1x16xf32>
    %117 = vector.multi_reduction <add>, %116, %cst_39 [2] : vector<1x16x16xf32> to vector<1x16xf32>
    %118 = vector.shape_cast %117 : vector<1x16xf32> to vector<1x16x1xf32>
    %119 = tpu.reciprocal %118 {approx = true} : vector<1x16x1xf32> -> vector<1x16x1xf32>
    %120 = vector.broadcast %119 : vector<1x16x1xf32> to vector<1x16x16xf32>
    %121 = arith.mulf %116, %120 : vector<1x16x16xf32>
    "tpu.trace_start"() <{level = 10 : i32, message = "bqk,bkd->bqd"}> : () -> ()
    %cst_40 = arith.constant dense<0.000000e+00> : vector<1x16x8xf32>
    %122 = tpu.matmul %121, %106, %cst_40 {dimension_numbers = #tpu.dot_dimension_numbers<[2], [1], [1], [2], [0, 0, 0, 1, 1, 2], [0], [0]>} : vector<1x16x16xf32>, vector<1x16x8xf32>, vector<1x16x8xf32> -> vector<1x16x8xf32>
    "tpu.trace_stop"() : () -> ()
    %123 = vector.shape_cast %122 : vector<1x16x8xf32> to vector<16x8xf32>
    %c0_41 = arith.constant 0 : index
    %c24 = arith.constant 24 : index
    %124 = vector.load %arg31[%c0_41, %c24] : memref<16x32xf32, #tpu.memory_space<vmem>>, vector<16x8xf32>
    tpu.vector_store %arg31[%c0_41, %c24], %123 {strides = array<i32>} : memref<16x32xf32, #tpu.memory_space<vmem>>, vector<16x8xf32>,
    %c0_42 = arith.constant 0 : index
    %c0_43 = arith.constant 0 : index
    %125 = vector.load %arg31[%c0_42, %c0_43] : memref<16x32xf32, #tpu.memory_space<vmem>>, vector<16x32xf32>
    %c0_44 = arith.constant 0 : index
    %c0_45 = arith.constant 0 : index
    %126 = vector.load %arg6[%c0_44, %c0_45] : memref<32x32xf32, #tpu.memory_space<vmem>>, vector<32x32xf32>
    %cst_46 = arith.constant dense<0.000000e+00> : vector<16x32xf32>
    %127 = tpu.matmul %125, %126, %cst_46 {dimension_numbers = #tpu.dot_dimension_numbers<[1], [0], [0], [1], [0, 0, 1, 1], [], []>} : vector<16x32xf32>, vector<32x32xf32>, vector<16x32xf32> -> vector<16x32xf32>
    %c0_47 = arith.constant 0 : index
    %c0_48 = arith.constant 0 : index
    %128 = vector.load %arg7[%c0_47, %c0_48] : memref<1x32xf32, #tpu.memory_space<vmem>>, vector<1x32xf32>
    %129 = vector.broadcast %128 : vector<1x32xf32> to vector<16x32xf32>
    %130 = arith.addf %127, %129 : vector<16x32xf32>
    %131 = arith.addf %19, %130 : vector<16x32xf32>
    %c0_49 = arith.constant 0 : index
    %c0_50 = arith.constant 0 : index
    %132 = vector.load %arg8[%c0_49, %c0_50] : memref<1x32xf32, #tpu.memory_space<vmem>>, vector<1x32xf32>
    %c0_51 = arith.constant 0 : index
    %c0_52 = arith.constant 0 : index
    %133 = vector.load %arg9[%c0_51, %c0_52] : memref<1x32xf32, #tpu.memory_space<vmem>>, vector<1x32xf32>
    %cst_53 = arith.constant dense<0.000000e+00> : vector<16xf32>
    %134 = vector.multi_reduction <add>, %131, %cst_53 [1] : vector<16x32xf32> to vector<16xf32>
    %135 = vector.shape_cast %134 : vector<16xf32> to vector<16x1xf32>
    %cst_54 = arith.constant 3.200000e+01 : f32
    %136 = vector.broadcast %cst_54 : f32 to vector<16x1xf32>
    %137 = arith.divf %135, %136 : vector<16x1xf32>
    %138 = vector.broadcast %137 : vector<16x1xf32> to vector<16x32xf32>
    %139 = arith.subf %131, %138 : vector<16x32xf32>
    %140 = arith.mulf %139, %139 : vector<16x32xf32>
    %cst_55 = arith.constant dense<0.000000e+00> : vector<16xf32>
    %141 = vector.multi_reduction <add>, %140, %cst_55 [1] : vector<16x32xf32> to vector<16xf32>
    %142 = vector.shape_cast %141 : vector<16xf32> to vector<16x1xf32>
    %cst_56 = arith.constant 3.200000e+01 : f32
    %143 = vector.broadcast %cst_56 : f32 to vector<16x1xf32>
    %144 = arith.divf %142, %143 : vector<16x1xf32>
    %145 = vector.broadcast %137 : vector<16x1xf32> to vector<16x32xf32>
    %146 = arith.subf %131, %145 : vector<16x32xf32>
    %cst_57 = arith.constant 9.99999974E-6 : f32
    %147 = vector.broadcast %cst_57 : f32 to vector<16x1xf32>
    %148 = arith.addf %144, %147 : vector<16x1xf32>
    %149 = math.rsqrt %148 : vector<16x1xf32>
    %150 = vector.broadcast %149 : vector<16x1xf32> to vector<16x32xf32>
    %151 = arith.mulf %146, %150 : vector<16x32xf32>
    %152 = vector.broadcast %132 : vector<1x32xf32> to vector<16x32xf32>
    %153 = arith.mulf %151, %152 : vector<16x32xf32>
    %154 = vector.broadcast %133 : vector<1x32xf32> to vector<16x32xf32>
    %155 = arith.addf %153, %154 : vector<16x32xf32>
    %c0_58 = arith.constant 0 : index
    %c0_59 = arith.constant 0 : index
    %156 = vector.load %arg10[%c0_58, %c0_59] : memref<32x64xf32, #tpu.memory_space<vmem>>, vector<32x64xf32>
    %cst_60 = arith.constant dense<0.000000e+00> : vector<16x64xf32>
    %157 = tpu.matmul %155, %156, %cst_60 {dimension_numbers = #tpu.dot_dimension_numbers<[1], [0], [0], [1], [0, 0, 1, 1], [], []>} : vector<16x32xf32>, vector<32x64xf32>, vector<16x64xf32> -> vector<16x64xf32>
    %c0_61 = arith.constant 0 : index
    %c0_62 = arith.constant 0 : index
    %158 = vector.load %arg11[%c0_61, %c0_62] : memref<1x64xf32, #tpu.memory_space<vmem>>, vector<1x64xf32>
    %159 = vector.broadcast %158 : vector<1x64xf32> to vector<16x64xf32>
    %160 = arith.addf %157, %159 : vector<16x64xf32>
    %cst_63 = arith.constant 0.000000e+00 : f32
    %161 = vector.broadcast %cst_63 : f32 to vector<16x64xf32>
    %162 = arith.maximumf %160, %161 : vector<16x64xf32>
    %c0_64 = arith.constant 0 : index
    %c0_65 = arith.constant 0 : index
    %163 = vector.load %arg12[%c0_64, %c0_65] : memref<64x32xf32, #tpu.memory_space<vmem>>, vector<64x32xf32>
    %cst_66 = arith.constant dense<0.000000e+00> : vector<16x32xf32>
    %164 = tpu.matmul %162, %163, %cst_66 {dimension_numbers = #tpu.dot_dimension_numbers<[1], [0], [0], [1], [0, 0, 1, 1], [], []>} : vector<16x64xf32>, vector<64x32xf32>, vector<16x32xf32> -> vector<16x32xf32>
    %c0_67 = arith.constant 0 : index
    %c0_68 = arith.constant 0 : index
    %165 = vector.load %arg13[%c0_67, %c0_68] : memref<1x32xf32, #tpu.memory_space<vmem>>, vector<1x32xf32>
    %166 = vector.broadcast %165 : vector<1x32xf32> to vector<16x32xf32>
    %167 = arith.addf %164, %166 : vector<16x32xf32>
    %168 = arith.addf %155, %167 : vector<16x32xf32>
    %c0_69 = arith.constant 0 : index
    %c0_70 = arith.constant 0 : index
    %169 = vector.load %arg14[%c0_69, %c0_70] : memref<1x32xf32, #tpu.memory_space<vmem>>, vector<1x32xf32>
    %c0_71 = arith.constant 0 : index
    %c0_72 = arith.constant 0 : index
    %170 = vector.load %arg15[%c0_71, %c0_72] : memref<1x32xf32, #tpu.memory_space<vmem>>, vector<1x32xf32>
    %cst_73 = arith.constant dense<0.000000e+00> : vector<16xf32>
    %171 = vector.multi_reduction <add>, %168, %cst_73 [1] : vector<16x32xf32> to vector<16xf32>
    %172 = vector.shape_cast %171 : vector<16xf32> to vector<16x1xf32>
    %cst_74 = arith.constant 3.200000e+01 : f32
    %173 = vector.broadcast %cst_74 : f32 to vector<16x1xf32>
    %174 = arith.divf %172, %173 : vector<16x1xf32>
    %175 = vector.broadcast %174 : vector<16x1xf32> to vector<16x32xf32>
    %176 = arith.subf %168, %175 : vector<16x32xf32>
    %177 = arith.mulf %176, %176 : vector<16x32xf32>
    %cst_75 = arith.constant dense<0.000000e+00> : vector<16xf32>
    %178 = vector.multi_reduction <add>, %177, %cst_75 [1] : vector<16x32xf32> to vector<16xf32>
    %179 = vector.shape_cast %178 : vector<16xf32> to vector<16x1xf32>
    %cst_76 = arith.constant 3.200000e+01 : f32
    %180 = vector.broadcast %cst_76 : f32 to vector<16x1xf32>
    %181 = arith.divf %179, %180 : vector<16x1xf32>
    %182 = vector.broadcast %174 : vector<16x1xf32> to vector<16x32xf32>
    %183 = arith.subf %168, %182 : vector<16x32xf32>
    %cst_77 = arith.constant 9.99999974E-6 : f32
    %184 = vector.broadcast %cst_77 : f32 to vector<16x1xf32>
    %185 = arith.addf %181, %184 : vector<16x1xf32>
    %186 = math.rsqrt %185 : vector<16x1xf32>
    %187 = vector.broadcast %186 : vector<16x1xf32> to vector<16x32xf32>
    %188 = arith.mulf %183, %187 : vector<16x32xf32>
    %189 = vector.broadcast %169 : vector<1x32xf32> to vector<16x32xf32>
    %190 = arith.mulf %188, %189 : vector<16x32xf32>
    %191 = vector.broadcast %170 : vector<1x32xf32> to vector<16x32xf32>
    %192 = arith.addf %190, %191 : vector<16x32xf32>
    %c0_78 = arith.constant 0 : index
    %c0_79 = arith.constant 0 : index
    %193 = vector.load %arg16[%c0_78, %c0_79] : memref<32x96xf32, #tpu.memory_space<vmem>>, vector<32x96xf32>
    %cst_80 = arith.constant dense<0.000000e+00> : vector<16x96xf32>
    %194 = tpu.matmul %192, %193, %cst_80 {dimension_numbers = #tpu.dot_dimension_numbers<[1], [0], [0], [1], [0, 0, 1, 1], [], []>} : vector<16x32xf32>, vector<32x96xf32>, vector<16x96xf32> -> vector<16x96xf32>
    %c0_81 = arith.constant 0 : index
    %c0_82 = arith.constant 0 : index
    %195 = vector.load %arg17[%c0_81, %c0_82] : memref<1x96xf32, #tpu.memory_space<vmem>>, vector<1x96xf32>
    %196 = vector.broadcast %195 : vector<1x96xf32> to vector<16x96xf32>
    %197 = arith.addf %194, %196 : vector<16x96xf32>
    %198 = vector.extract_strided_slice %197 {offsets = [0, 0], sizes = [16, 32], strides = [1, 1]} : vector<16x96xf32> to vector<16x32xf32>
    %199 = vector.shape_cast %198 : vector<16x32xf32> to vector<1x16x32xf32>
    %200 = vector.extract_strided_slice %197 {offsets = [0, 32], sizes = [16, 32], strides = [1, 1]} : vector<16x96xf32> to vector<16x32xf32>
    %201 = vector.shape_cast %200 : vector<16x32xf32> to vector<1x16x32xf32>
    %202 = vector.extract_strided_slice %197 {offsets = [0, 64], sizes = [16, 32], strides = [1, 1]} : vector<16x96xf32> to vector<16x32xf32>
    %203 = vector.shape_cast %202 : vector<16x32xf32> to vector<1x16x32xf32>
    %204 = vector.extract_strided_slice %199 {offsets = [0, 0, 0], sizes = [1, 16, 8], strides = [1, 1, 1]} : vector<1x16x32xf32> to vector<1x16x8xf32>
    %205 = vector.extract_strided_slice %201 {offsets = [0, 0, 0], sizes = [1, 16, 8], strides = [1, 1, 1]} : vector<1x16x32xf32> to vector<1x16x8xf32>
    %206 = vector.extract_strided_slice %203 {offsets = [0, 0, 0], sizes = [1, 16, 8], strides = [1, 1, 1]} : vector<1x16x32xf32> to vector<1x16x8xf32>
    "tpu.trace_start"() <{level = 10 : i32, message = "bqd,bkd->bqk"}> : () -> ()
    %cst_83 = arith.constant dense<0.000000e+00> : vector<1x16x16xf32>
    %207 = tpu.matmul %204, %205, %cst_83 {dimension_numbers = #tpu.dot_dimension_numbers<[2], [2], [1], [1], [0, 0, 0, 1, 1, 1], [0], [0]>} : vector<1x16x8xf32>, vector<1x16x8xf32>, vector<1x16x16xf32> -> vector<1x16x16xf32>
    "tpu.trace_stop"() : () -> ()
    %cst_84 = arith.constant 0.353553385 : f32
    %208 = vector.broadcast %cst_84 : f32 to vector<1x16x16xf32>
    %209 = arith.mulf %207, %208 : vector<1x16x16xf32>
    %cst_85 = arith.constant -1.000000e+09 : f32
    %210 = vector.broadcast %cst_85 : f32 to vector<1x16x16xf32>
    %211 = arith.select %29, %209, %210 : vector<1x16x16xi1>, vector<1x16x16xf32>
    %cst_86 = arith.constant dense<0xFF800000> : vector<1x16xf32>
    %212 = vector.multi_reduction <maximumf>, %211, %cst_86 [2] : vector<1x16x16xf32> to vector<1x16xf32>
    %213 = vector.shape_cast %212 : vector<1x16xf32> to vector<1x16x1xf32>
    %214 = vector.broadcast %213 : vector<1x16x1xf32> to vector<1x16x16xf32>
    %215 = arith.subf %211, %214 : vector<1x16x16xf32>
    %216 = math.exp %215 : vector<1x16x16xf32>
    %cst_87 = arith.constant dense<0.000000e+00> : vector<1x16xf32>
    %217 = vector.multi_reduction <add>, %216, %cst_87 [2] : vector<1x16x16xf32> to vector<1x16xf32>
    %218 = vector.shape_cast %217 : vector<1x16xf32> to vector<1x16x1xf32>
    %219 = tpu.reciprocal %218 {approx = true} : vector<1x16x1xf32> -> vector<1x16x1xf32>
    %220 = vector.broadcast %219 : vector<1x16x1xf32> to vector<1x16x16xf32>
    %221 = arith.mulf %216, %220 : vector<1x16x16xf32>
    "tpu.trace_start"() <{level = 10 : i32, message = "bqk,bkd->bqd"}> : () -> ()
    %cst_88 = arith.constant dense<0.000000e+00> : vector<1x16x8xf32>
    %222 = tpu.matmul %221, %206, %cst_88 {dimension_numbers = #tpu.dot_dimension_numbers<[2], [1], [1], [2], [0, 0, 0, 1, 1, 2], [0], [0]>} : vector<1x16x16xf32>, vector<1x16x8xf32>, vector<1x16x8xf32> -> vector<1x16x8xf32>
    "tpu.trace_stop"() : () -> ()
    %223 = vector.shape_cast %222 : vector<1x16x8xf32> to vector<16x8xf32>
    %c0_89 = arith.constant 0 : index
    %c0_90 = arith.constant 0 : index
    %224 = vector.load %arg31[%c0_89, %c0_90] : memref<16x32xf32, #tpu.memory_space<vmem>>, vector<16x8xf32>
    tpu.vector_store %arg31[%c0_89, %c0_90], %223 {strides = array<i32>} : memref<16x32xf32, #tpu.memory_space<vmem>>, vector<16x8xf32>,
    %225 = vector.extract_strided_slice %199 {offsets = [0, 0, 8], sizes = [1, 16, 8], strides = [1, 1, 1]} : vector<1x16x32xf32> to vector<1x16x8xf32>
    %226 = vector.extract_strided_slice %201 {offsets = [0, 0, 8], sizes = [1, 16, 8], strides = [1, 1, 1]} : vector<1x16x32xf32> to vector<1x16x8xf32>
    %227 = vector.extract_strided_slice %203 {offsets = [0, 0, 8], sizes = [1, 16, 8], strides = [1, 1, 1]} : vector<1x16x32xf32> to vector<1x16x8xf32>
    "tpu.trace_start"() <{level = 10 : i32, message = "bqd,bkd->bqk"}> : () -> ()
    %cst_91 = arith.constant dense<0.000000e+00> : vector<1x16x16xf32>
    %228 = tpu.matmul %225, %226, %cst_91 {dimension_numbers = #tpu.dot_dimension_numbers<[2], [2], [1], [1], [0, 0, 0, 1, 1, 1], [0], [0]>} : vector<1x16x8xf32>, vector<1x16x8xf32>, vector<1x16x16xf32> -> vector<1x16x16xf32>
    "tpu.trace_stop"() : () -> ()
    %cst_92 = arith.constant 0.353553385 : f32
    %229 = vector.broadcast %cst_92 : f32 to vector<1x16x16xf32>
    %230 = arith.mulf %228, %229 : vector<1x16x16xf32>
    %cst_93 = arith.constant -1.000000e+09 : f32
    %231 = vector.broadcast %cst_93 : f32 to vector<1x16x16xf32>
    %232 = arith.select %29, %230, %231 : vector<1x16x16xi1>, vector<1x16x16xf32>
    %cst_94 = arith.constant dense<0xFF800000> : vector<1x16xf32>
    %233 = vector.multi_reduction <maximumf>, %232, %cst_94 [2] : vector<1x16x16xf32> to vector<1x16xf32>
    %234 = vector.shape_cast %233 : vector<1x16xf32> to vector<1x16x1xf32>
    %235 = vector.broadcast %234 : vector<1x16x1xf32> to vector<1x16x16xf32>
    %236 = arith.subf %232, %235 : vector<1x16x16xf32>
    %237 = math.exp %236 : vector<1x16x16xf32>
    %cst_95 = arith.constant dense<0.000000e+00> : vector<1x16xf32>
    %238 = vector.multi_reduction <add>, %237, %cst_95 [2] : vector<1x16x16xf32> to vector<1x16xf32>
    %239 = vector.shape_cast %238 : vector<1x16xf32> to vector<1x16x1xf32>
    %240 = tpu.reciprocal %239 {approx = true} : vector<1x16x1xf32> -> vector<1x16x1xf32>
    %241 = vector.broadcast %240 : vector<1x16x1xf32> to vector<1x16x16xf32>
    %242 = arith.mulf %237, %241 : vector<1x16x16xf32>
    "tpu.trace_start"() <{level = 10 : i32, message = "bqk,bkd->bqd"}> : () -> ()
    %cst_96 = arith.constant dense<0.000000e+00> : vector<1x16x8xf32>
    %243 = tpu.matmul %242, %227, %cst_96 {dimension_numbers = #tpu.dot_dimension_numbers<[2], [1], [1], [2], [0, 0, 0, 1, 1, 2], [0], [0]>} : vector<1x16x16xf32>, vector<1x16x8xf32>, vector<1x16x8xf32> -> vector<1x16x8xf32>
    "tpu.trace_stop"() : () -> ()
    %244 = vector.shape_cast %243 : vector<1x16x8xf32> to vector<16x8xf32>
    %c0_97 = arith.constant 0 : index
    %c8_98 = arith.constant 8 : index
    %245 = vector.load %arg31[%c0_97, %c8_98] : memref<16x32xf32, #tpu.memory_space<vmem>>, vector<16x8xf32>
    tpu.vector_store %arg31[%c0_97, %c8_98], %244 {strides = array<i32>} : memref<16x32xf32, #tpu.memory_space<vmem>>, vector<16x8xf32>,
    %246 = vector.extract_strided_slice %199 {offsets = [0, 0, 16], sizes = [1, 16, 8], strides = [1, 1, 1]} : vector<1x16x32xf32> to vector<1x16x8xf32>
    %247 = vector.extract_strided_slice %201 {offsets = [0, 0, 16], sizes = [1, 16, 8], strides = [1, 1, 1]} : vector<1x16x32xf32> to vector<1x16x8xf32>
    %248 = vector.extract_strided_slice %203 {offsets = [0, 0, 16], sizes = [1, 16, 8], strides = [1, 1, 1]} : vector<1x16x32xf32> to vector<1x16x8xf32>
    "tpu.trace_start"() <{level = 10 : i32, message = "bqd,bkd->bqk"}> : () -> ()
    %cst_99 = arith.constant dense<0.000000e+00> : vector<1x16x16xf32>
    %249 = tpu.matmul %246, %247, %cst_99 {dimension_numbers = #tpu.dot_dimension_numbers<[2], [2], [1], [1], [0, 0, 0, 1, 1, 1], [0], [0]>} : vector<1x16x8xf32>, vector<1x16x8xf32>, vector<1x16x16xf32> -> vector<1x16x16xf32>
    "tpu.trace_stop"() : () -> ()
    %cst_100 = arith.constant 0.353553385 : f32
    %250 = vector.broadcast %cst_100 : f32 to vector<1x16x16xf32>
    %251 = arith.mulf %249, %250 : vector<1x16x16xf32>
    %cst_101 = arith.constant -1.000000e+09 : f32
    %252 = vector.broadcast %cst_101 : f32 to vector<1x16x16xf32>
    %253 = arith.select %29, %251, %252 : vector<1x16x16xi1>, vector<1x16x16xf32>
    %cst_102 = arith.constant dense<0xFF800000> : vector<1x16xf32>
    %254 = vector.multi_reduction <maximumf>, %253, %cst_102 [2] : vector<1x16x16xf32> to vector<1x16xf32>
    %255 = vector.shape_cast %254 : vector<1x16xf32> to vector<1x16x1xf32>
    %256 = vector.broadcast %255 : vector<1x16x1xf32> to vector<1x16x16xf32>
    %257 = arith.subf %253, %256 : vector<1x16x16xf32>
    %258 = math.exp %257 : vector<1x16x16xf32>
    %cst_103 = arith.constant dense<0.000000e+00> : vector<1x16xf32>
    %259 = vector.multi_reduction <add>, %258, %cst_103 [2] : vector<1x16x16xf32> to vector<1x16xf32>
    %260 = vector.shape_cast %259 : vector<1x16xf32> to vector<1x16x1xf32>
    %261 = tpu.reciprocal %260 {approx = true} : vector<1x16x1xf32> -> vector<1x16x1xf32>
    %262 = vector.broadcast %261 : vector<1x16x1xf32> to vector<1x16x16xf32>
    %263 = arith.mulf %258, %262 : vector<1x16x16xf32>
    "tpu.trace_start"() <{level = 10 : i32, message = "bqk,bkd->bqd"}> : () -> ()
    %cst_104 = arith.constant dense<0.000000e+00> : vector<1x16x8xf32>
    %264 = tpu.matmul %263, %248, %cst_104 {dimension_numbers = #tpu.dot_dimension_numbers<[2], [1], [1], [2], [0, 0, 0, 1, 1, 2], [0], [0]>} : vector<1x16x16xf32>, vector<1x16x8xf32>, vector<1x16x8xf32> -> vector<1x16x8xf32>
    "tpu.trace_stop"() : () -> ()
    %265 = vector.shape_cast %264 : vector<1x16x8xf32> to vector<16x8xf32>
    %c0_105 = arith.constant 0 : index
    %c16_106 = arith.constant 16 : index
    %266 = vector.load %arg31[%c0_105, %c16_106] : memref<16x32xf32, #tpu.memory_space<vmem>>, vector<16x8xf32>
    tpu.vector_store %arg31[%c0_105, %c16_106], %265 {strides = array<i32>} : memref<16x32xf32, #tpu.memory_space<vmem>>, vector<16x8xf32>,
    %267 = vector.extract_strided_slice %199 {offsets = [0, 0, 24], sizes = [1, 16, 8], strides = [1, 1, 1]} : vector<1x16x32xf32> to vector<1x16x8xf32>
    %268 = vector.extract_strided_slice %201 {offsets = [0, 0, 24], sizes = [1, 16, 8], strides = [1, 1, 1]} : vector<1x16x32xf32> to vector<1x16x8xf32>
    %269 = vector.extract_strided_slice %203 {offsets = [0, 0, 24], sizes = [1, 16, 8], strides = [1, 1, 1]} : vector<1x16x32xf32> to vector<1x16x8xf32>
    "tpu.trace_start"() <{level = 10 : i32, message = "bqd,bkd->bqk"}> : () -> ()
    %cst_107 = arith.constant dense<0.000000e+00> : vector<1x16x16xf32>
    %270 = tpu.matmul %267, %268, %cst_107 {dimension_numbers = #tpu.dot_dimension_numbers<[2], [2], [1], [1], [0, 0, 0, 1, 1, 1], [0], [0]>} : vector<1x16x8xf32>, vector<1x16x8xf32>, vector<1x16x16xf32> -> vector<1x16x16xf32>
    "tpu.trace_stop"() : () -> ()
    %cst_108 = arith.constant 0.353553385 : f32
    %271 = vector.broadcast %cst_108 : f32 to vector<1x16x16xf32>
    %272 = arith.mulf %270, %271 : vector<1x16x16xf32>
    %cst_109 = arith.constant -1.000000e+09 : f32
    %273 = vector.broadcast %cst_109 : f32 to vector<1x16x16xf32>
    %274 = arith.select %29, %272, %273 : vector<1x16x16xi1>, vector<1x16x16xf32>
    %cst_110 = arith.constant dense<0xFF800000> : vector<1x16xf32>
    %275 = vector.multi_reduction <maximumf>, %274, %cst_110 [2] : vector<1x16x16xf32> to vector<1x16xf32>
    %276 = vector.shape_cast %275 : vector<1x16xf32> to vector<1x16x1xf32>
    %277 = vector.broadcast %276 : vector<1x16x1xf32> to vector<1x16x16xf32>
    %278 = arith.subf %274, %277 : vector<1x16x16xf32>
    %279 = math.exp %278 : vector<1x16x16xf32>
    %cst_111 = arith.constant dense<0.000000e+00> : vector<1x16xf32>
    %280 = vector.multi_reduction <add>, %279, %cst_111 [2] : vector<1x16x16xf32> to vector<1x16xf32>
    %281 = vector.shape_cast %280 : vector<1x16xf32> to vector<1x16x1xf32>
    %282 = tpu.reciprocal %281 {approx = true} : vector<1x16x1xf32> -> vector<1x16x1xf32>
    %283 = vector.broadcast %282 : vector<1x16x1xf32> to vector<1x16x16xf32>
    %284 = arith.mulf %279, %283 : vector<1x16x16xf32>
    "tpu.trace_start"() <{level = 10 : i32, message = "bqk,bkd->bqd"}> : () -> ()
    %cst_112 = arith.constant dense<0.000000e+00> : vector<1x16x8xf32>
    %285 = tpu.matmul %284, %269, %cst_112 {dimension_numbers = #tpu.dot_dimension_numbers<[2], [1], [1], [2], [0, 0, 0, 1, 1, 2], [0], [0]>} : vector<1x16x16xf32>, vector<1x16x8xf32>, vector<1x16x8xf32> -> vector<1x16x8xf32>
    "tpu.trace_stop"() : () -> ()
    %286 = vector.shape_cast %285 : vector<1x16x8xf32> to vector<16x8xf32>
    %c0_113 = arith.constant 0 : index
    %c24_114 = arith.constant 24 : index
    %287 = vector.load %arg31[%c0_113, %c24_114] : memref<16x32xf32, #tpu.memory_space<vmem>>, vector<16x8xf32>
    tpu.vector_store %arg31[%c0_113, %c24_114], %286 {strides = array<i32>} : memref<16x32xf32, #tpu.memory_space<vmem>>, vector<16x8xf32>,
    %c0_115 = arith.constant 0 : index
    %c0_116 = arith.constant 0 : index
    %288 = vector.load %arg31[%c0_115, %c0_116] : memref<16x32xf32, #tpu.memory_space<vmem>>, vector<16x32xf32>
    %c0_117 = arith.constant 0 : index
    %c0_118 = arith.constant 0 : index
    %289 = vector.load %arg18[%c0_117, %c0_118] : memref<32x32xf32, #tpu.memory_space<vmem>>, vector<32x32xf32>
    %cst_119 = arith.constant dense<0.000000e+00> : vector<16x32xf32>
    %290 = tpu.matmul %288, %289, %cst_119 {dimension_numbers = #tpu.dot_dimension_numbers<[1], [0], [0], [1], [0, 0, 1, 1], [], []>} : vector<16x32xf32>, vector<32x32xf32>, vector<16x32xf32> -> vector<16x32xf32>
    %c0_120 = arith.constant 0 : index
    %c0_121 = arith.constant 0 : index
    %291 = vector.load %arg19[%c0_120, %c0_121] : memref<1x32xf32, #tpu.memory_space<vmem>>, vector<1x32xf32>
    %292 = vector.broadcast %291 : vector<1x32xf32> to vector<16x32xf32>
    %293 = arith.addf %290, %292 : vector<16x32xf32>
    %294 = arith.addf %192, %293 : vector<16x32xf32>
    %c0_122 = arith.constant 0 : index
    %c0_123 = arith.constant 0 : index
    %295 = vector.load %arg20[%c0_122, %c0_123] : memref<1x32xf32, #tpu.memory_space<vmem>>, vector<1x32xf32>
    %c0_124 = arith.constant 0 : index
    %c0_125 = arith.constant 0 : index
    %296 = vector.load %arg21[%c0_124, %c0_125] : memref<1x32xf32, #tpu.memory_space<vmem>>, vector<1x32xf32>
    %cst_126 = arith.constant dense<0.000000e+00> : vector<16xf32>
    %297 = vector.multi_reduction <add>, %294, %cst_126 [1] : vector<16x32xf32> to vector<16xf32>
    %298 = vector.shape_cast %297 : vector<16xf32> to vector<16x1xf32>
    %cst_127 = arith.constant 3.200000e+01 : f32
    %299 = vector.broadcast %cst_127 : f32 to vector<16x1xf32>
    %300 = arith.divf %298, %299 : vector<16x1xf32>
    %301 = vector.broadcast %300 : vector<16x1xf32> to vector<16x32xf32>
    %302 = arith.subf %294, %301 : vector<16x32xf32>
    %303 = arith.mulf %302, %302 : vector<16x32xf32>
    %cst_128 = arith.constant dense<0.000000e+00> : vector<16xf32>
    %304 = vector.multi_reduction <add>, %303, %cst_128 [1] : vector<16x32xf32> to vector<16xf32>
    %305 = vector.shape_cast %304 : vector<16xf32> to vector<16x1xf32>
    %cst_129 = arith.constant 3.200000e+01 : f32
    %306 = vector.broadcast %cst_129 : f32 to vector<16x1xf32>
    %307 = arith.divf %305, %306 : vector<16x1xf32>
    %308 = vector.broadcast %300 : vector<16x1xf32> to vector<16x32xf32>
    %309 = arith.subf %294, %308 : vector<16x32xf32>
    %cst_130 = arith.constant 9.99999974E-6 : f32
    %310 = vector.broadcast %cst_130 : f32 to vector<16x1xf32>
    %311 = arith.addf %307, %310 : vector<16x1xf32>
    %312 = math.rsqrt %311 : vector<16x1xf32>
    %313 = vector.broadcast %312 : vector<16x1xf32> to vector<16x32xf32>
    %314 = arith.mulf %309, %313 : vector<16x32xf32>
    %315 = vector.broadcast %295 : vector<1x32xf32> to vector<16x32xf32>
    %316 = arith.mulf %314, %315 : vector<16x32xf32>
    %317 = vector.broadcast %296 : vector<1x32xf32> to vector<16x32xf32>
    %318 = arith.addf %316, %317 : vector<16x32xf32>
    %c0_131 = arith.constant 0 : index
    %c0_132 = arith.constant 0 : index
    %319 = vector.load %arg22[%c0_131, %c0_132] : memref<32x64xf32, #tpu.memory_space<vmem>>, vector<32x64xf32>
    %cst_133 = arith.constant dense<0.000000e+00> : vector<16x64xf32>
    %320 = tpu.matmul %318, %319, %cst_133 {dimension_numbers = #tpu.dot_dimension_numbers<[1], [0], [0], [1], [0, 0, 1, 1], [], []>} : vector<16x32xf32>, vector<32x64xf32>, vector<16x64xf32> -> vector<16x64xf32>
    %c0_134 = arith.constant 0 : index
    %c0_135 = arith.constant 0 : index
    %321 = vector.load %arg23[%c0_134, %c0_135] : memref<1x64xf32, #tpu.memory_space<vmem>>, vector<1x64xf32>
    %322 = vector.broadcast %321 : vector<1x64xf32> to vector<16x64xf32>
    %323 = arith.addf %320, %322 : vector<16x64xf32>
    %cst_136 = arith.constant 0.000000e+00 : f32
    %324 = vector.broadcast %cst_136 : f32 to vector<16x64xf32>
    %325 = arith.maximumf %323, %324 : vector<16x64xf32>
    %c0_137 = arith.constant 0 : index
    %c0_138 = arith.constant 0 : index
    %326 = vector.load %arg24[%c0_137, %c0_138] : memref<64x32xf32, #tpu.memory_space<vmem>>, vector<64x32xf32>
    %cst_139 = arith.constant dense<0.000000e+00> : vector<16x32xf32>
    %327 = tpu.matmul %325, %326, %cst_139 {dimension_numbers = #tpu.dot_dimension_numbers<[1], [0], [0], [1], [0, 0, 1, 1], [], []>} : vector<16x64xf32>, vector<64x32xf32>, vector<16x32xf32> -> vector<16x32xf32>
    %c0_140 = arith.constant 0 : index
    %c0_141 = arith.constant 0 : index
    %328 = vector.load %arg25[%c0_140, %c0_141] : memref<1x32xf32, #tpu.memory_space<vmem>>, vector<1x32xf32>
    %329 = vector.broadcast %328 : vector<1x32xf32> to vector<16x32xf32>
    %330 = arith.addf %327, %329 : vector<16x32xf32>
    %331 = arith.addf %318, %330 : vector<16x32xf32>
    %c0_142 = arith.constant 0 : index
    %c0_143 = arith.constant 0 : index
    %332 = vector.load %arg26[%c0_142, %c0_143] : memref<1x32xf32, #tpu.memory_space<vmem>>, vector<1x32xf32>
    %c0_144 = arith.constant 0 : index
    %c0_145 = arith.constant 0 : index
    %333 = vector.load %arg27[%c0_144, %c0_145] : memref<1x32xf32, #tpu.memory_space<vmem>>, vector<1x32xf32>
    %cst_146 = arith.constant dense<0.000000e+00> : vector<16xf32>
    %334 = vector.multi_reduction <add>, %331, %cst_146 [1] : vector<16x32xf32> to vector<16xf32>
    %335 = vector.shape_cast %334 : vector<16xf32> to vector<16x1xf32>
    %cst_147 = arith.constant 3.200000e+01 : f32
    %336 = vector.broadcast %cst_147 : f32 to vector<16x1xf32>
    %337 = arith.divf %335, %336 : vector<16x1xf32>
    %338 = vector.broadcast %337 : vector<16x1xf32> to vector<16x32xf32>
    %339 = arith.subf %331, %338 : vector<16x32xf32>
    %340 = arith.mulf %339, %339 : vector<16x32xf32>
    %cst_148 = arith.constant dense<0.000000e+00> : vector<16xf32>
    %341 = vector.multi_reduction <add>, %340, %cst_148 [1] : vector<16x32xf32> to vector<16xf32>
    %342 = vector.shape_cast %341 : vector<16xf32> to vector<16x1xf32>
    %cst_149 = arith.constant 3.200000e+01 : f32
    %343 = vector.broadcast %cst_149 : f32 to vector<16x1xf32>
    %344 = arith.divf %342, %343 : vector<16x1xf32>
    %345 = vector.broadcast %337 : vector<16x1xf32> to vector<16x32xf32>
    %346 = arith.subf %331, %345 : vector<16x32xf32>
    %cst_150 = arith.constant 9.99999974E-6 : f32
    %347 = vector.broadcast %cst_150 : f32 to vector<16x1xf32>
    %348 = arith.addf %344, %347 : vector<16x1xf32>
    %349 = math.rsqrt %348 : vector<16x1xf32>
    %350 = vector.broadcast %349 : vector<16x1xf32> to vector<16x32xf32>
    %351 = arith.mulf %346, %350 : vector<16x32xf32>
    %352 = vector.broadcast %332 : vector<1x32xf32> to vector<16x32xf32>
    %353 = arith.mulf %351, %352 : vector<16x32xf32>
    %354 = vector.broadcast %333 : vector<1x32xf32> to vector<16x32xf32>
    %355 = arith.addf %353, %354 : vector<16x32xf32>
    %c0_151 = arith.constant 0 : index
    %c0_152 = arith.constant 0 : index
    %356 = vector.load %arg28[%c0_151, %c0_152] : memref<32x128xf32, #tpu.memory_space<vmem>>, vector<32x128xf32>
    %cst_153 = arith.constant dense<0.000000e+00> : vector<16x128xf32>
    %357 = tpu.matmul %355, %356, %cst_153 {dimension_numbers = #tpu.dot_dimension_numbers<[1], [0], [0], [1], [0, 0, 1, 1], [], []>} : vector<16x32xf32>, vector<32x128xf32>, vector<16x128xf32> -> vector<16x128xf32>
    %c0_154 = arith.constant 0 : index
    %c0_155 = arith.constant 0 : index
    %358 = vector.load %arg29[%c0_154, %c0_155] : memref<1x128xf32, #tpu.memory_space<vmem>>, vector<1x128xf32>
    %359 = vector.broadcast %358 : vector<1x128xf32> to vector<16x128xf32>
    %360 = arith.addf %357, %359 : vector<16x128xf32>
    %c0_156 = arith.constant 0 : index
    %c0_157 = arith.constant 0 : index
    %c0_158 = arith.constant 0 : index
    %361 = vector.load %arg30[%c0_156, %c0_157, %c0_158] : memref<1x16x128xf32, #tpu.memory_space<vmem>>, vector<1x16x128xf32>
    %362 = vector.shape_cast %361 : vector<1x16x128xf32> to vector<16x128xf32>
    %363 = vector.shape_cast %360 : vector<16x128xf32> to vector<1x16x128xf32>
    tpu.vector_store %arg30[%c0_156, %c0_157, %c0_158], %363 {strides = array<i32>} : memref<1x16x128xf32, #tpu.memory_space<vmem>>, vector<1x16x128xf32>,
    return
  }
  func.func @transform_0(%arg0: i32) -> (i32, i32, i32) {
    %c0_i32 = arith.constant 0 : i32
    %c0_i32_0 = arith.constant 0 : i32
    %c0_i32_1 = arith.constant 0 : i32
    return %arg0, %c0_i32, %c0_i32_0 : i32, i32, i32
  }
  func.func @transform_1(%arg0: i32) -> (i32, i32) {
    %c0_i32 = arith.constant 0 : i32
    %c0_i32_0 = arith.constant 0 : i32
    %c0_i32_1 = arith.constant 0 : i32
    return %c0_i32, %c0_i32_0 : i32, i32
  }
  func.func @transform_2(%arg0: i32) -> (i32, i32) {
    %c0_i32 = arith.constant 0 : i32
    %c0_i32_0 = arith.constant 0 : i32
    %c0_i32_1 = arith.constant 0 : i32
    return %c0_i32, %c0_i32_0 : i32, i32
  }
  func.func @transform_3(%arg0: i32) -> (i32, i32) {
    %c0_i32 = arith.constant 0 : i32
    %c0_i32_0 = arith.constant 0 : i32
    %c0_i32_1 = arith.constant 0 : i32
    return %c0_i32, %c0_i32_0 : i32, i32
  }
  func.func @transform_4(%arg0: i32) -> (i32, i32) {
    %c0_i32 = arith.constant 0 : i32
    %c0_i32_0 = arith.constant 0 : i32
    %c0_i32_1 = arith.constant 0 : i32
    return %c0_i32, %c0_i32_0 : i32, i32
  }
  func.func @transform_5(%arg0: i32) -> (i32, i32) {
    %c0_i32 = arith.constant 0 : i32
    %c0_i32_0 = arith.constant 0 : i32
    %c0_i32_1 = arith.constant 0 : i32
    return %c0_i32, %c0_i32_0 : i32, i32
  }
  func.func @transform_6(%arg0: i32) -> (i32, i32) {
    %c0_i32 = arith.constant 0 : i32
    %c0_i32_0 = arith.constant 0 : i32
    %c0_i32_1 = arith.constant 0 : i32
    return %c0_i32, %c0_i32_0 : i32, i32
  }
  func.func @transform_7(%arg0: i32) -> (i32, i32) {
    %c0_i32 = arith.constant 0 : i32
    %c0_i32_0 = arith.constant 0 : i32
    %c0_i32_1 = arith.constant 0 : i32
    return %c0_i32, %c0_i32_0 : i32, i32
  }
  func.func @transform_8(%arg0: i32) -> (i32, i32) {
    %c0_i32 = arith.constant 0 : i32
    %c0_i32_0 = arith.constant 0 : i32
    %c0_i32_1 = arith.constant 0 : i32
    return %c0_i32, %c0_i32_0 : i32, i32
  }
  func.func @transform_9(%arg0: i32) -> (i32, i32) {
    %c0_i32 = arith.constant 0 : i32
    %c0_i32_0 = arith.constant 0 : i32
    %c0_i32_1 = arith.constant 0 : i32
    return %c0_i32, %c0_i32_0 : i32, i32
  }
  func.func @transform_10(%arg0: i32) -> (i32, i32) {
    %c0_i32 = arith.constant 0 : i32
    %c0_i32_0 = arith.constant 0 : i32
    %c0_i32_1 = arith.constant 0 : i32
    return %c0_i32, %c0_i32_0 : i32, i32
  }
  func.func @transform_11(%arg0: i32) -> (i32, i32) {
    %c0_i32 = arith.constant 0 : i32
    %c0_i32_0 = arith.constant 0 : i32
    %c0_i32_1 = arith.constant 0 : i32
    return %c0_i32, %c0_i32_0 : i32, i32
  }
  func.func @transform_12(%arg0: i32) -> (i32, i32) {
    %c0_i32 = arith.constant 0 : i32
    %c0_i32_0 = arith.constant 0 : i32
    %c0_i32_1 = arith.constant 0 : i32
    return %c0_i32, %c0_i32_0 : i32, i32
  }
  func.func @transform_13(%arg0: i32) -> (i32, i32) {
    %c0_i32 = arith.constant 0 : i32
    %c0_i32_0 = arith.constant 0 : i32
    %c0_i32_1 = arith.constant 0 : i32
    return %c0_i32, %c0_i32_0 : i32, i32
  }
  func.func @transform_14(%arg0: i32) -> (i32, i32) {
    %c0_i32 = arith.constant 0 : i32
    %c0_i32_0 = arith.constant 0 : i32
    %c0_i32_1 = arith.constant 0 : i32
    return %c0_i32, %c0_i32_0 : i32, i32
  }
  func.func @transform_15(%arg0: i32) -> (i32, i32) {
    %c0_i32 = arith.constant 0 : i32
    %c0_i32_0 = arith.constant 0 : i32
    %c0_i32_1 = arith.constant 0 : i32
    return %c0_i32, %c0_i32_0 : i32, i32
  }
  func.func @transform_16(%arg0: i32) -> (i32, i32) {
    %c0_i32 = arith.constant 0 : i32
    %c0_i32_0 = arith.constant 0 : i32
    %c0_i32_1 = arith.constant 0 : i32
    return %c0_i32, %c0_i32_0 : i32, i32
  }
  func.func @transform_17(%arg0: i32) -> (i32, i32) {
    %c0_i32 = arith.constant 0 : i32
    %c0_i32_0 = arith.constant 0 : i32
    %c0_i32_1 = arith.constant 0 : i32
    return %c0_i32, %c0_i32_0 : i32, i32
  }
  func.func @transform_18(%arg0: i32) -> (i32, i32) {
    %c0_i32 = arith.constant 0 : i32
    %c0_i32_0 = arith.constant 0 : i32
    %c0_i32_1 = arith.constant 0 : i32
    return %c0_i32, %c0_i32_0 : i32, i32
  }
  func.func @transform_19(%arg0: i32) -> (i32, i32) {
    %c0_i32 = arith.constant 0 : i32
    %c0_i32_0 = arith.constant 0 : i32
    %c0_i32_1 = arith.constant 0 : i32
    return %c0_i32, %c0_i32_0 : i32, i32
  }
  func.func @transform_20(%arg0: i32) -> (i32, i32) {
    %c0_i32 = arith.constant 0 : i32
    %c0_i32_0 = arith.constant 0 : i32
    %c0_i32_1 = arith.constant 0 : i32
    return %c0_i32, %c0_i32_0 : i32, i32
  }
  func.func @transform_21(%arg0: i32) -> (i32, i32) {
    %c0_i32 = arith.constant 0 : i32
    %c0_i32_0 = arith.constant 0 : i32
    %c0_i32_1 = arith.constant 0 : i32
    return %c0_i32, %c0_i32_0 : i32, i32
  }
  func.func @transform_22(%arg0: i32) -> (i32, i32) {
    %c0_i32 = arith.constant 0 : i32
    %c0_i32_0 = arith.constant 0 : i32
    %c0_i32_1 = arith.constant 0 : i32
    return %c0_i32, %c0_i32_0 : i32, i32
  }
  func.func @transform_23(%arg0: i32) -> (i32, i32) {
    %c0_i32 = arith.constant 0 : i32
    %c0_i32_0 = arith.constant 0 : i32
    %c0_i32_1 = arith.constant 0 : i32
    return %c0_i32, %c0_i32_0 : i32, i32
  }
  func.func @transform_24(%arg0: i32) -> (i32, i32) {
    %c0_i32 = arith.constant 0 : i32
    %c0_i32_0 = arith.constant 0 : i32
    %c0_i32_1 = arith.constant 0 : i32
    return %c0_i32, %c0_i32_0 : i32, i32
  }
  func.func @transform_25(%arg0: i32) -> (i32, i32) {
    %c0_i32 = arith.constant 0 : i32
    %c0_i32_0 = arith.constant 0 : i32
    %c0_i32_1 = arith.constant 0 : i32
    return %c0_i32, %c0_i32_0 : i32, i32
  }
  func.func @transform_26(%arg0: i32) -> (i32, i32) {
    %c0_i32 = arith.constant 0 : i32
    %c0_i32_0 = arith.constant 0 : i32
    %c0_i32_1 = arith.constant 0 : i32
    return %c0_i32, %c0_i32_0 : i32, i32
  }
  func.func @transform_27(%arg0: i32) -> (i32, i32) {
    %c0_i32 = arith.constant 0 : i32
    %c0_i32_0 = arith.constant 0 : i32
    %c0_i32_1 = arith.constant 0 : i32
    return %c0_i32, %c0_i32_0 : i32, i32
  }
  func.func @transform_28(%arg0: i32) -> (i32, i32) {
    %c0_i32 = arith.constant 0 : i32
    %c0_i32_0 = arith.constant 0 : i32
    %c0_i32_1 = arith.constant 0 : i32
    return %c0_i32, %c0_i32_0 : i32, i32
  }
  func.func @transform_29(%arg0: i32) -> (i32, i32, i32) {
    %c0_i32 = arith.constant 0 : i32
    %c0_i32_0 = arith.constant 0 : i32
    %c0_i32_1 = arith.constant 0 : i32
    return %arg0, %c0_i32, %c0_i32_0 : i32, i32, i32
  }
}

</mosaic_0001>

<llo_original>
// kernel: forward_minibatch.1
$region0: #{forward_minibatch.1}
  #allocation0 [shape = 'u32[]', space=smem, size = 0x4, offset = 0x4, fixed_abs, tag = 'smem constant byte address 0x4 - core index']
  #allocation1 [shape = 'u32[72,128]{1,0:T(1,128)}', space=vmem, size = 0x9000, scoped, tag = 'internal scratch']
  #allocation2 [shape = 'f32[16,32]{1,0:T(8,128)}', space=vmem, size = 0x2000, scoped, tag = 'scratch operand']
  %s0 = inlined_call_operand.smem [shape: u32[30], index: -1, kind: input, shape index: {}]
  %s1 = sld [smem:[%s0]]
  %s2 = scalar_lea.smem %s0, 1
  %s3 = sld [smem:[%s2]]
  %s4 = scalar_lea.smem %s0, 2
  %s5 = sld [smem:[%s4]]
  %s6 = scalar_lea.smem %s0, 3
  %s7 = sld [smem:[%s6]]
  %s8 = scalar_lea.smem %s0, 4
  %s9 = sld [smem:[%s8]]
  %s10 = scalar_lea.smem %s0, 5
  %s11 = sld [smem:[%s10]]
  %s12 = scalar_lea.smem %s0, 6
  %s13 = sld [smem:[%s12]]
  %s14 = scalar_lea.smem %s0, 7
  %s15 = sld [smem:[%s14]]
  %s16 = scalar_lea.smem %s0, 8
  %s17 = sld [smem:[%s16]]
  %s18 = scalar_lea.smem %s0, 9
  %s19 = sld [smem:[%s18]]
  %s20 = scalar_lea.smem %s0, 10
  %s21 = sld [smem:[%s20]]
  %s22 = scalar_lea.smem %s0, 11
  %s23 = sld [smem:[%s22]]
  %s24 = scalar_lea.smem %s0, 12
  %s25 = sld [smem:[%s24]]
  %s26 = scalar_lea.smem %s0, 13
  %s27 = sld [smem:[%s26]]
  %s28 = scalar_lea.smem %s0, 14
  %s29 = sld [smem:[%s28]]
  %s30 = scalar_lea.smem %s0, 15
  %s31 = sld [smem:[%s30]]
  %s32 = scalar_lea.smem %s0, 16
  %s33 = sld [smem:[%s32]]
  %s34 = scalar_lea.smem %s0, 17
  %s35 = sld [smem:[%s34]]
  %s36 = scalar_lea.smem %s0, 18
  %s37 = sld [smem:[%s36]]
  %s38 = scalar_lea.smem %s0, 19
  %s39 = sld [smem:[%s38]]
  %s40 = scalar_lea.smem %s0, 20
  %s41 = sld [smem:[%s40]]
  %s42 = scalar_lea.smem %s0, 21
  %s43 = sld [smem:[%s42]]
  %s44 = scalar_lea.smem %s0, 22
  %s45 = sld [smem:[%s44]]
  %s46 = scalar_lea.smem %s0, 23
  %s47 = sld [smem:[%s46]]
  %s48 = scalar_lea.smem %s0, 24
  %s49 = sld [smem:[%s48]]
  %s50 = scalar_lea.smem %s0, 25
  %s51 = sld [smem:[%s50]]
  %s52 = scalar_lea.smem %s0, 26
  %s53 = sld [smem:[%s52]]
  %s54 = scalar_lea.smem %s0, 27
  %s55 = sld [smem:[%s54]]
  %s56 = scalar_lea.smem %s0, 28
  %s57 = sld [smem:[%s56]]
  %s58 = scalar_lea.smem %s0, 29
  %s59 = sld [smem:[%s58]]
  %s60 = sld [smem:[#allocation0]]
  $region165: #{forward_minibatch.1} parent=0
    _
  %s62 = ssub.s32 1, %s60
  %s63 = scalar_select 0, %s62, %s60
  $region1: #{forward_minibatch.1} parent=0
    #allocation3 [shape = 'u8[512]{0}', space=vmem, size = 0x400, scoped, tag = 'input window, operand 19, single buffered']
    #allocation4 [shape = 's32[2]{0}', space=sflag, size = 0x8, scoped, tag = 'scoped memory for forward_minibatch.1']
    #allocation5 [shape = 'u8[16384]{0}', space=vmem, size = 0x4000, scoped, tag = 'input window, operand 21, single buffered']
    #allocation6 [shape = 's32[1]{0}', space=sflag, size = 0x4, scoped, tag = 'scoped memory for forward_minibatch.1']
    #allocation7 [shape = 'u8[512]{0}', space=vmem, size = 0x400, scoped, tag = 'input window, operand 25, single buffered']
    #allocation8 [shape = 'u8[16384]{0}', space=vmem, size = 0x4000, scoped, tag = 'input window, operand 27, single buffered']
    #allocation9 [shape = 's32[1]{0}', space=sflag, size = 0x4, scoped, tag = 'scoped memory for forward_minibatch.1']
    %64 = vsyncpa [#allocation4], 0
    %65 = vsyncpa [#allocation6], 0
    %66 = vsyncpa [#allocation9], 0
    loop: start=0, step=1, limit=4
    $region2: #{forward_minibatch.1} parent=1 // loop_pre_header
      _
    $region3: #{forward_minibatch.1} parent=1 // loop_header
      %s68 = sphi 0, %s72
      %p69 = scmp.ge.s32.totalorder %s68, 4
      %s78 = sphi 0, %s80
      %s81 = sphi 0, %s78
      %s82 = sphi 0, %s81
      %s98 = sphi 0, %s82
      %s102 = sphi 0, %s102
      %s104 = sphi 0, %s102
      %s105 = sphi 0, %s104
      %s119 = sphi 0, %s105
      %s123 = sphi 0, %s123
      %s125 = sphi 0, %s123
      %s126 = sphi 0, %s125
      %s140 = sphi 0, %s126
      %s144 = sphi 0, %s144
      %s146 = sphi 0, %s144
      %s147 = sphi 0, %s146
      %s161 = sphi 0, %s147
      %s165 = sphi 0, %s165
      %s167 = sphi 0, %s165
      %s168 = sphi 0, %s167
      %s182 = sphi 0, %s168
      %s186 = sphi 0, %s186
      %s188 = sphi 0, %s186
      %s189 = sphi 0, %s188
      %s203 = sphi 0, %s189
      %s207 = sphi 0, %s207
      %s209 = sphi 0, %s207
      %s210 = sphi 0, %s209
      %s224 = sphi 0, %s210
      %s228 = sphi 0, %s228
      %s230 = sphi 0, %s228
      %s231 = sphi 0, %s230
      %s245 = sphi 0, %s231
      %s249 = sphi 0, %s249
      %s251 = sphi 0, %s249
      %s252 = sphi 0, %s251
      %s266 = sphi 0, %s252
      %s270 = sphi 0, %s270
      %s272 = sphi 0, %s270
      %s273 = sphi 0, %s272
      %s287 = sphi 0, %s273
      %s291 = sphi 0, %s291
      %s293 = sphi 0, %s291
      %s294 = sphi 0, %s293
      %s308 = sphi 0, %s294
      %s312 = sphi 0, %s312
      %s314 = sphi 0, %s312
      %s315 = sphi 0, %s314
      %s329 = sphi 0, %s315
      %s333 = sphi 0, %s333
      %s335 = sphi 0, %s333
      %s336 = sphi 0, %s335
      %s350 = sphi 0, %s336
      %s354 = sphi 0, %s354
      %s356 = sphi 0, %s354
      %s357 = sphi 0, %s356
      %s371 = sphi 0, %s357
      %s375 = sphi 0, %s375
      %s377 = sphi 0, %s375
      %s378 = sphi 0, %s377
      %s392 = sphi 0, %s378
      %s396 = sphi 0, %s396
      %s398 = sphi 0, %s396
      %s399 = sphi 0, %s398
      %s413 = sphi 0, %s399
      %s417 = sphi 0, %s417
      %s419 = sphi 0, %s417
      %s420 = sphi 0, %s419
      %s434 = sphi 0, %s420
      %s438 = sphi 0, %s438
      %s440 = sphi 0, %s438
      %s441 = sphi 0, %s440
      %s455 = sphi 0, %s441
      %s459 = sphi 0, %s459
      %s461 = sphi 0, %s459
      %s462 = sphi 0, %s461
      %s476 = sphi 0, %s462
      %s480 = sphi 0, %s480
      %s482 = sphi 0, %s480
      %s483 = sphi 0, %s482
      %s497 = sphi 0, %s483
      %s501 = sphi 0, %s501
      %s503 = sphi 0, %s501
      %s504 = sphi 0, %s503
      %s518 = sphi 0, %s504
      %s522 = sphi 0, %s522
      %s524 = sphi 0, %s522
      %s525 = sphi 0, %s524
      %s539 = sphi 0, %s525
      %s543 = sphi 0, %s543
      %s545 = sphi 0, %s543
      %s546 = sphi 0, %s545
      %s560 = sphi 0, %s546
      %s564 = sphi 0, %s564
      %s566 = sphi 0, %s564
      %s567 = sphi 0, %s566
      %s581 = sphi 0, %s567
      %s585 = sphi 0, %s585
      %s587 = sphi 0, %s585
      %s588 = sphi 0, %s587
      %s602 = sphi 0, %s588
      %s606 = sphi 0, %s606
      %s608 = sphi 0, %s606
      %s609 = sphi 0, %s608
      %s623 = sphi 0, %s609
      %s627 = sphi 0, %s627
      %s629 = sphi 0, %s627
      %s630 = sphi 0, %s629
      %s644 = sphi 0, %s630
      %s648 = sphi 0, %s648
      %s650 = sphi 0, %s648
      %s651 = sphi 0, %s650
      %s665 = sphi 0, %s651
      %s669 = sphi 0, %s669
      %s671 = sphi 0, %s669
      %s672 = sphi 0, %s671
      %s686 = sphi 0, %s672
      %s692 = sphi 0, %s694
      %s695 = sphi 0, %s692
      %s696 = sphi 0, %s695
      %s712 = sphi 0, %s696
    $region4: #{forward_minibatch.1} parent=1 // loop_header_branch
      %71 = sbr.rel (%p69) target = $region8
    $region5: #{forward_minibatch.1} parent=1 // loop_body
      %s73 = ssub.s32 %s68, 1
      %s74 = ssub.s32 %s68, 2
      %s75 = sadd.s32 %s68, 1
      %s76 = ssub.s32 %s68, %s75
      %p77 = scmp.eq.s32.totalorder %s76, 0
      %s79 = sadd.s32 %s78, 1
      %s80 = scalar_select %p77, %s78, %s79
      %p83 = pneg %p77
      %p84 = scmp.eq.s32.totalorder %s68, 1
      %p85 = por %p83, %p84
      %p86 = scmp.ne.s32.totalorder %s78, %s81
      %p87 = scmp.eq.s32.totalorder %s68, 0
      %p88 = por %p86, %p87
      %p89 = scmp.ne.s32.totalorder %s78, %s81
      %p90 = scmp.eq.s32.totalorder %s73, 1
      %p91 = por %p89, %p90
      %p92 = scmp.ne.s32.totalorder %s81, %s82
      %p93 = scmp.eq.s32.totalorder %s73, 0
      %p94 = por %p92, %p93
      %p95 = scmp.ne.s32.totalorder %s81, %s82
      %p96 = scmp.eq.s32.totalorder %s74, 1
      %p97 = por %p95, %p96
      %p99 = scmp.ne.s32.totalorder %s82, %s98
      %p100 = scmp.eq.s32.totalorder %s74, 0
      %p101 = por %p99, %p100
      %s103 = sadd.s32 %s102, 1
      %p106 = scmp.eq.s32.totalorder %s68, 1
      %p107 = scmp.ne.s32.totalorder %s102, %s104
      %p108 = scmp.eq.s32.totalorder %s68, 0
      %p109 = por %p107, %p108
      %p110 = scmp.ne.s32.totalorder %s102, %s104
      %p111 = scmp.eq.s32.totalorder %s73, 1
      %p112 = por %p110, %p111
      %p113 = scmp.ne.s32.totalorder %s104, %s105
      %p114 = scmp.eq.s32.totalorder %s73, 0
      %p115 = por %p113, %p114
      %p116 = scmp.ne.s32.totalorder %s104, %s105
      %p117 = scmp.eq.s32.totalorder %s74, 1
      %p118 = por %p116, %p117
      %p120 = scmp.ne.s32.totalorder %s105, %s119
      %p121 = scmp.eq.s32.totalorder %s74, 0
      %p122 = por %p120, %p121
      %s124 = sadd.s32 %s123, 1
      %p127 = scmp.eq.s32.totalorder %s68, 1
      %p128 = scmp.ne.s32.totalorder %s123, %s125
      %p129 = scmp.eq.s32.totalorder %s68, 0
      %p130 = por %p128, %p129
      %p131 = scmp.ne.s32.totalorder %s123, %s125
      %p132 = scmp.eq.s32.totalorder %s73, 1
      %p133 = por %p131, %p132
      %p134 = scmp.ne.s32.totalorder %s125, %s126
      %p135 = scmp.eq.s32.totalorder %s73, 0
      %p136 = por %p134, %p135
      %p137 = scmp.ne.s32.totalorder %s125, %s126
      %p138 = scmp.eq.s32.totalorder %s74, 1
      %p139 = por %p137, %p138
      %p141 = scmp.ne.s32.totalorder %s126, %s140
      %p142 = scmp.eq.s32.totalorder %s74, 0
      %p143 = por %p141, %p142
      %s145 = sadd.s32 %s144, 1
      %p148 = scmp.eq.s32.totalorder %s68, 1
      %p149 = scmp.ne.s32.totalorder %s144, %s146
      %p150 = scmp.eq.s32.totalorder %s68, 0
      %p151 = por %p149, %p150
      %p152 = scmp.ne.s32.totalorder %s144, %s146
      %p153 = scmp.eq.s32.totalorder %s73, 1
      %p154 = por %p152, %p153
      %p155 = scmp.ne.s32.totalorder %s146, %s147
      %p156 = scmp.eq.s32.totalorder %s73, 0
      %p157 = por %p155, %p156
      %p158 = scmp.ne.s32.totalorder %s146, %s147
      %p159 = scmp.eq.s32.totalorder %s74, 1
      %p160 = por %p158, %p159
      %p162 = scmp.ne.s32.totalorder %s147, %s161
      %p163 = scmp.eq.s32.totalorder %s74, 0
      %p164 = por %p162, %p163
      %s166 = sadd.s32 %s165, 1
      %p169 = scmp.eq.s32.totalorder %s68, 1
      %p170 = scmp.ne.s32.totalorder %s165, %s167
      %p171 = scmp.eq.s32.totalorder %s68, 0
      %p172 = por %p170, %p171
      %p173 = scmp.ne.s32.totalorder %s165, %s167
      %p174 = scmp.eq.s32.totalorder %s73, 1
      %p175 = por %p173, %p174
      %p176 = scmp.ne.s32.totalorder %s167, %s168
      %p177 = scmp.eq.s32.totalorder %s73, 0
      %p178 = por %p176, %p177
      %p179 = scmp.ne.s32.totalorder %s167, %s168
      %p180 = scmp.eq.s32.totalorder %s74, 1
      %p181 = por %p179, %p180
      %p183 = scmp.ne.s32.totalorder %s168, %s182
      %p184 = scmp.eq.s32.totalorder %s74, 0
      %p185 = por %p183, %p184
      %s187 = sadd.s32 %s186, 1
      %p190 = scmp.eq.s32.totalorder %s68, 1
      %p191 = scmp.ne.s32.totalorder %s186, %s188
      %p192 = scmp.eq.s32.totalorder %s68, 0
      %p193 = por %p191, %p192
      %p194 = scmp.ne.s32.totalorder %s186, %s188
      %p195 = scmp.eq.s32.totalorder %s73, 1
      %p196 = por %p194, %p195
      %p197 = scmp.ne.s32.totalorder %s188, %s189
      %p198 = scmp.eq.s32.totalorder %s73, 0
      %p199 = por %p197, %p198
      %p200 = scmp.ne.s32.totalorder %s188, %s189
      %p201 = scmp.eq.s32.totalorder %s74, 1
      %p202 = por %p200, %p201
      %p204 = scmp.ne.s32.totalorder %s189, %s203
      %p205 = scmp.eq.s32.totalorder %s74, 0
      %p206 = por %p204, %p205
      %s208 = sadd.s32 %s207, 1
      %p211 = scmp.eq.s32.totalorder %s68, 1
      %p212 = scmp.ne.s32.totalorder %s207, %s209
      %p213 = scmp.eq.s32.totalorder %s68, 0
      %p214 = por %p212, %p213
      %p215 = scmp.ne.s32.totalorder %s207, %s209
      %p216 = scmp.eq.s32.totalorder %s73, 1
      %p217 = por %p215, %p216
      %p218 = scmp.ne.s32.totalorder %s209, %s210
      %p219 = scmp.eq.s32.totalorder %s73, 0
      %p220 = por %p218, %p219
      %p221 = scmp.ne.s32.totalorder %s209, %s210
      %p222 = scmp.eq.s32.totalorder %s74, 1
      %p223 = por %p221, %p222
      %p225 = scmp.ne.s32.totalorder %s210, %s224
      %p226 = scmp.eq.s32.totalorder %s74, 0
      %p227 = por %p225, %p226
      %s229 = sadd.s32 %s228, 1
      %p232 = scmp.eq.s32.totalorder %s68, 1
      %p233 = scmp.ne.s32.totalorder %s228, %s230
      %p234 = scmp.eq.s32.totalorder %s68, 0
      %p235 = por %p233, %p234
      %p236 = scmp.ne.s32.totalorder %s228, %s230
      %p237 = scmp.eq.s32.totalorder %s73, 1
      %p238 = por %p236, %p237
      %p239 = scmp.ne.s32.totalorder %s230, %s231
      %p240 = scmp.eq.s32.totalorder %s73, 0
      %p241 = por %p239, %p240
      %p242 = scmp.ne.s32.totalorder %s230, %s231
      %p243 = scmp.eq.s32.totalorder %s74, 1
      %p244 = por %p242, %p243
      %p246 = scmp.ne.s32.totalorder %s231, %s245
      %p247 = scmp.eq.s32.totalorder %s74, 0
      %p248 = por %p246, %p247
      %s250 = sadd.s32 %s249, 1
      %p253 = scmp.eq.s32.totalorder %s68, 1
      %p254 = scmp.ne.s32.totalorder %s249, %s251
      %p255 = scmp.eq.s32.totalorder %s68, 0
      %p256 = por %p254, %p255
      %p257 = scmp.ne.s32.totalorder %s249, %s251
      %p258 = scmp.eq.s32.totalorder %s73, 1
      %p259 = por %p257, %p258
      %p260 = scmp.ne.s32.totalorder %s251, %s252
      %p261 = scmp.eq.s32.totalorder %s73, 0
      %p262 = por %p260, %p261
      %p263 = scmp.ne.s32.totalorder %s251, %s252
      %p264 = scmp.eq.s32.totalorder %s74, 1
      %p265 = por %p263, %p264
      %p267 = scmp.ne.s32.totalorder %s252, %s266
      %p268 = scmp.eq.s32.totalorder %s74, 0
      %p269 = por %p267, %p268
      %s271 = sadd.s32 %s270, 1
      %p274 = scmp.eq.s32.totalorder %s68, 1
      %p275 = scmp.ne.s32.totalorder %s270, %s272
      %p276 = scmp.eq.s32.totalorder %s68, 0
      %p277 = por %p275, %p276
      %p278 = scmp.ne.s32.totalorder %s270, %s272
      %p279 = scmp.eq.s32.totalorder %s73, 1
      %p280 = por %p278, %p279
      %p281 = scmp.ne.s32.totalorder %s272, %s273
      %p282 = scmp.eq.s32.totalorder %s73, 0
      %p283 = por %p281, %p282
      %p284 = scmp.ne.s32.totalorder %s272, %s273
      %p285 = scmp.eq.s32.totalorder %s74, 1
      %p286 = por %p284, %p285
      %p288 = scmp.ne.s32.totalorder %s273, %s287
      %p289 = scmp.eq.s32.totalorder %s74, 0
      %p290 = por %p288, %p289
      %s292 = sadd.s32 %s291, 1
      %p295 = scmp.eq.s32.totalorder %s68, 1
      %p296 = scmp.ne.s32.totalorder %s291, %s293
      %p297 = scmp.eq.s32.totalorder %s68, 0
      %p298 = por %p296, %p297
      %p299 = scmp.ne.s32.totalorder %s291, %s293
      %p300 = scmp.eq.s32.totalorder %s73, 1
      %p301 = por %p299, %p300
      %p302 = scmp.ne.s32.totalorder %s293, %s294
      %p303 = scmp.eq.s32.totalorder %s73, 0
      %p304 = por %p302, %p303
      %p305 = scmp.ne.s32.totalorder %s293, %s294
      %p306 = scmp.eq.s32.totalorder %s74, 1
      %p307 = por %p305, %p306
      %p309 = scmp.ne.s32.totalorder %s294, %s308
      %p310 = scmp.eq.s32.totalorder %s74, 0
      %p311 = por %p309, %p310
      %s313 = sadd.s32 %s312, 1
      %p316 = scmp.eq.s32.totalorder %s68, 1
      %p317 = scmp.ne.s32.totalorder %s312, %s314
      %p318 = scmp.eq.s32.totalorder %s68, 0
      %p319 = por %p317, %p318
      %p320 = scmp.ne.s32.totalorder %s312, %s314
      %p321 = scmp.eq.s32.totalorder %s73, 1
      %p322 = por %p320, %p321
      %p323 = scmp.ne.s32.totalorder %s314, %s315
      %p324 = scmp.eq.s32.totalorder %s73, 0
      %p325 = por %p323, %p324
      %p326 = scmp.ne.s32.totalorder %s314, %s315
      %p327 = scmp.eq.s32.totalorder %s74, 1
      %p328 = por %p326, %p327
      %p330 = scmp.ne.s32.totalorder %s315, %s329
      %p331 = scmp.eq.s32.totalorder %s74, 0
      %p332 = por %p330, %p331
      %s334 = sadd.s32 %s333, 1
      %p337 = scmp.eq.s32.totalorder %s68, 1
      %p338 = scmp.ne.s32.totalorder %s333, %s335
      %p339 = scmp.eq.s32.totalorder %s68, 0
      %p340 = por %p338, %p339
      %p341 = scmp.ne.s32.totalorder %s333, %s335
      %p342 = scmp.eq.s32.totalorder %s73, 1
      %p343 = por %p341, %p342
      %p344 = scmp.ne.s32.totalorder %s335, %s336
      %p345 = scmp.eq.s32.totalorder %s73, 0
      %p346 = por %p344, %p345
      %p347 = scmp.ne.s32.totalorder %s335, %s336
      %p348 = scmp.eq.s32.totalorder %s74, 1
      %p349 = por %p347, %p348
      %p351 = scmp.ne.s32.totalorder %s336, %s350
      %p352 = scmp.eq.s32.totalorder %s74, 0
      %p353 = por %p351, %p352
      %s355 = sadd.s32 %s354, 1
      %p358 = scmp.eq.s32.totalorder %s68, 1
      %p359 = scmp.ne.s32.totalorder %s354, %s356
      %p360 = scmp.eq.s32.totalorder %s68, 0
      %p361 = por %p359, %p360
      %p362 = scmp.ne.s32.totalorder %s354, %s356
      %p363 = scmp.eq.s32.totalorder %s73, 1
      %p364 = por %p362, %p363
      %p365 = scmp.ne.s32.totalorder %s356, %s357
      %p366 = scmp.eq.s32.totalorder %s73, 0
      %p367 = por %p365, %p366
      %p368 = scmp.ne.s32.totalorder %s356, %s357
      %p369 = scmp.eq.s32.totalorder %s74, 1
      %p370 = por %p368, %p369
      %p372 = scmp.ne.s32.totalorder %s357, %s371
      %p373 = scmp.eq.s32.totalorder %s74, 0
      %p374 = por %p372, %p373
      %s376 = sadd.s32 %s375, 1
      %p379 = scmp.eq.s32.totalorder %s68, 1
      %p380 = scmp.ne.s32.totalorder %s375, %s377
      %p381 = scmp.eq.s32.totalorder %s68, 0
      %p382 = por %p380, %p381
      %p383 = scmp.ne.s32.totalorder %s375, %s377
      %p384 = scmp.eq.s32.totalorder %s73, 1
      %p385 = por %p383, %p384
      %p386 = scmp.ne.s32.totalorder %s377, %s378
      %p387 = scmp.eq.s32.totalorder %s73, 0
      %p388 = por %p386, %p387
      %p389 = scmp.ne.s32.totalorder %s377, %s378
      %p390 = scmp.eq.s32.totalorder %s74, 1
      %p391 = por %p389, %p390
      %p393 = scmp.ne.s32.totalorder %s378, %s392
      %p394 = scmp.eq.s32.totalorder %s74, 0
      %p395 = por %p393, %p394
      %s397 = sadd.s32 %s396, 1
      %p400 = scmp.eq.s32.totalorder %s68, 1
      %p401 = scmp.ne.s32.totalorder %s396, %s398
      %p402 = scmp.eq.s32.totalorder %s68, 0
      %p403 = por %p401, %p402
      %p404 = scmp.ne.s32.totalorder %s396, %s398
      %p405 = scmp.eq.s32.totalorder %s73, 1
      %p406 = por %p404, %p405
      %p407 = scmp.ne.s32.totalorder %s398, %s399
      %p408 = scmp.eq.s32.totalorder %s73, 0
      %p409 = por %p407, %p408
      %p410 = scmp.ne.s32.totalorder %s398, %s399
      %p411 = scmp.eq.s32.totalorder %s74, 1
      %p412 = por %p410, %p411
      %p414 = scmp.ne.s32.totalorder %s399, %s413
      %p415 = scmp.eq.s32.totalorder %s74, 0
      %p416 = por %p414, %p415
      %s418 = sadd.s32 %s417, 1
      %p421 = scmp.eq.s32.totalorder %s68, 1
      %p422 = scmp.ne.s32.totalorder %s417, %s419
      %p423 = scmp.eq.s32.totalorder %s68, 0
      %p424 = por %p422, %p423
      %p425 = scmp.ne.s32.totalorder %s417, %s419
      %p426 = scmp.eq.s32.totalorder %s73, 1
      %p427 = por %p425, %p426
      %p428 = scmp.ne.s32.totalorder %s419, %s420
      %p429 = scmp.eq.s32.totalorder %s73, 0
      %p430 = por %p428, %p429
      %p431 = scmp.ne.s32.totalorder %s419, %s420
      %p432 = scmp.eq.s32.totalorder %s74, 1
      %p433 = por %p431, %p432
      %p435 = scmp.ne.s32.totalorder %s420, %s434
      %p436 = scmp.eq.s32.totalorder %s74, 0
      %p437 = por %p435, %p436
      %s439 = sadd.s32 %s438, 1
      %p442 = scmp.eq.s32.totalorder %s68, 1
      %p443 = scmp.ne.s32.totalorder %s438, %s440
      %p444 = scmp.eq.s32.totalorder %s68, 0
      %p445 = por %p443, %p444
      %p446 = scmp.ne.s32.totalorder %s438, %s440
      %p447 = scmp.eq.s32.totalorder %s73, 1
      %p448 = por %p446, %p447
      %p449 = scmp.ne.s32.totalorder %s440, %s441
      %p450 = scmp.eq.s32.totalorder %s73, 0
      %p451 = por %p449, %p450
      %p452 = scmp.ne.s32.totalorder %s440, %s441
      %p453 = scmp.eq.s32.totalorder %s74, 1
      %p454 = por %p452, %p453
      %p456 = scmp.ne.s32.totalorder %s441, %s455
      %p457 = scmp.eq.s32.totalorder %s74, 0
      %p458 = por %p456, %p457
      %s460 = sadd.s32 %s459, 1
      %p463 = scmp.eq.s32.totalorder %s68, 1
      %p464 = scmp.ne.s32.totalorder %s459, %s461
      %p465 = scmp.eq.s32.totalorder %s68, 0
      %p466 = por %p464, %p465
      %p467 = scmp.ne.s32.totalorder %s459, %s461
      %p468 = scmp.eq.s32.totalorder %s73, 1
      %p469 = por %p467, %p468
      %p470 = scmp.ne.s32.totalorder %s461, %s462
      %p471 = scmp.eq.s32.totalorder %s73, 0
      %p472 = por %p470, %p471
      %p473 = scmp.ne.s32.totalorder %s461, %s462
      %p474 = scmp.eq.s32.totalorder %s74, 1
      %p475 = por %p473, %p474
      %p477 = scmp.ne.s32.totalorder %s462, %s476
      %p478 = scmp.eq.s32.totalorder %s74, 0
      %p479 = por %p477, %p478
      %s481 = sadd.s32 %s480, 1
      %p484 = scmp.eq.s32.totalorder %s68, 1
      %p485 = scmp.ne.s32.totalorder %s480, %s482
      %p486 = scmp.eq.s32.totalorder %s68, 0
      %p487 = por %p485, %p486
      %p488 = scmp.ne.s32.totalorder %s480, %s482
      %p489 = scmp.eq.s32.totalorder %s73, 1
      %p490 = por %p488, %p489
      %p491 = scmp.ne.s32.totalorder %s482, %s483
      %p492 = scmp.eq.s32.totalorder %s73, 0
      %p493 = por %p491, %p492
      %p494 = scmp.ne.s32.totalorder %s482, %s483
      %p495 = scmp.eq.s32.totalorder %s74, 1
      %p496 = por %p494, %p495
      %p498 = scmp.ne.s32.totalorder %s483, %s497
      %p499 = scmp.eq.s32.totalorder %s74, 0
      %p500 = por %p498, %p499
      %s502 = sadd.s32 %s501, 1
      %p505 = scmp.eq.s32.totalorder %s68, 1
      %p506 = scmp.ne.s32.totalorder %s501, %s503
      %p507 = scmp.eq.s32.totalorder %s68, 0
      %p508 = por %p506, %p507
      %p509 = scmp.ne.s32.totalorder %s501, %s503
      %p510 = scmp.eq.s32.totalorder %s73, 1
      %p511 = por %p509, %p510
      %p512 = scmp.ne.s32.totalorder %s503, %s504
      %p513 = scmp.eq.s32.totalorder %s73, 0
      %p514 = por %p512, %p513
      %p515 = scmp.ne.s32.totalorder %s503, %s504
      %p516 = scmp.eq.s32.totalorder %s74, 1
      %p517 = por %p515, %p516
      %p519 = scmp.ne.s32.totalorder %s504, %s518
      %p520 = scmp.eq.s32.totalorder %s74, 0
      %p521 = por %p519, %p520
      %s523 = sadd.s32 %s522, 1
      %p526 = scmp.eq.s32.totalorder %s68, 1
      %p527 = scmp.ne.s32.totalorder %s522, %s524
      %p528 = scmp.eq.s32.totalorder %s68, 0
      %p529 = por %p527, %p528
      %p530 = scmp.ne.s32.totalorder %s522, %s524
      %p531 = scmp.eq.s32.totalorder %s73, 1
      %p532 = por %p530, %p531
      %p533 = scmp.ne.s32.totalorder %s524, %s525
      %p534 = scmp.eq.s32.totalorder %s73, 0
      %p535 = por %p533, %p534
      %p536 = scmp.ne.s32.totalorder %s524, %s525
      %p537 = scmp.eq.s32.totalorder %s74, 1
      %p538 = por %p536, %p537
      %p540 = scmp.ne.s32.totalorder %s525, %s539
      %p541 = scmp.eq.s32.totalorder %s74, 0
      %p542 = por %p540, %p541
      %s544 = sadd.s32 %s543, 1
      %p547 = scmp.eq.s32.totalorder %s68, 1
      %p548 = scmp.ne.s32.totalorder %s543, %s545
      %p549 = scmp.eq.s32.totalorder %s68, 0
      %p550 = por %p548, %p549
      %p551 = scmp.ne.s32.totalorder %s543, %s545
      %p552 = scmp.eq.s32.totalorder %s73, 1
      %p553 = por %p551, %p552
      %p554 = scmp.ne.s32.totalorder %s545, %s546
      %p555 = scmp.eq.s32.totalorder %s73, 0
      %p556 = por %p554, %p555
      %p557 = scmp.ne.s32.totalorder %s545, %s546
      %p558 = scmp.eq.s32.totalorder %s74, 1
      %p559 = por %p557, %p558
      %p561 = scmp.ne.s32.totalorder %s546, %s560
      %p562 = scmp.eq.s32.totalorder %s74, 0
      %p563 = por %p561, %p562
      %s565 = sadd.s32 %s564, 1
      %p568 = scmp.eq.s32.totalorder %s68, 1
      %p569 = scmp.ne.s32.totalorder %s564, %s566
      %p570 = scmp.eq.s32.totalorder %s68, 0
      %p571 = por %p569, %p570
      %p572 = scmp.ne.s32.totalorder %s564, %s566
      %p573 = scmp.eq.s32.totalorder %s73, 1
      %p574 = por %p572, %p573
      %p575 = scmp.ne.s32.totalorder %s566, %s567
      %p576 = scmp.eq.s32.totalorder %s73, 0
      %p577 = por %p575, %p576
      %p578 = scmp.ne.s32.totalorder %s566, %s567
      %p579 = scmp.eq.s32.totalorder %s74, 1
      %p580 = por %p578, %p579
      %p582 = scmp.ne.s32.totalorder %s567, %s581
      %p583 = scmp.eq.s32.totalorder %s74, 0
      %p584 = por %p582, %p583
      %s586 = sadd.s32 %s585, 1
      %p589 = scmp.eq.s32.totalorder %s68, 1
      %p590 = scmp.ne.s32.totalorder %s585, %s587
      %p591 = scmp.eq.s32.totalorder %s68, 0
      %p592 = por %p590, %p591
      %p593 = scmp.ne.s32.totalorder %s585, %s587
      %p594 = scmp.eq.s32.totalorder %s73, 1
      %p595 = por %p593, %p594
      %p596 = scmp.ne.s32.totalorder %s587, %s588
      %p597 = scmp.eq.s32.totalorder %s73, 0
      %p598 = por %p596, %p597
      %p599 = scmp.ne.s32.totalorder %s587, %s588
      %p600 = scmp.eq.s32.totalorder %s74, 1
      %p601 = por %p599, %p600
      %p603 = scmp.ne.s32.totalorder %s588, %s602
      %p604 = scmp.eq.s32.totalorder %s74, 0
      %p605 = por %p603, %p604
      %s607 = sadd.s32 %s606, 1
      %p610 = scmp.eq.s32.totalorder %s68, 1
      %p611 = scmp.ne.s32.totalorder %s606, %s608
      %p612 = scmp.eq.s32.totalorder %s68, 0
      %p613 = por %p611, %p612
      %p614 = scmp.ne.s32.totalorder %s606, %s608
      %p615 = scmp.eq.s32.totalorder %s73, 1
      %p616 = por %p614, %p615
      %p617 = scmp.ne.s32.totalorder %s608, %s609
      %p618 = scmp.eq.s32.totalorder %s73, 0
      %p619 = por %p617, %p618
      %p620 = scmp.ne.s32.totalorder %s608, %s609
      %p621 = scmp.eq.s32.totalorder %s74, 1
      %p622 = por %p620, %p621
      %p624 = scmp.ne.s32.totalorder %s609, %s623
      %p625 = scmp.eq.s32.totalorder %s74, 0
      %p626 = por %p624, %p625
      %s628 = sadd.s32 %s627, 1
      %p631 = scmp.eq.s32.totalorder %s68, 1
      %p632 = scmp.ne.s32.totalorder %s627, %s629
      %p633 = scmp.eq.s32.totalorder %s68, 0
      %p634 = por %p632, %p633
      %p635 = scmp.ne.s32.totalorder %s627, %s629
      %p636 = scmp.eq.s32.totalorder %s73, 1
      %p637 = por %p635, %p636
      %p638 = scmp.ne.s32.totalorder %s629, %s630
      %p639 = scmp.eq.s32.totalorder %s73, 0
      %p640 = por %p638, %p639
      %p641 = scmp.ne.s32.totalorder %s629, %s630
      %p642 = scmp.eq.s32.totalorder %s74, 1
      %p643 = por %p641, %p642
      %p645 = scmp.ne.s32.totalorder %s630, %s644
      %p646 = scmp.eq.s32.totalorder %s74, 0
      %p647 = por %p645, %p646
      %s649 = sadd.s32 %s648, 1
      %p652 = scmp.eq.s32.totalorder %s68, 1
      %p653 = scmp.ne.s32.totalorder %s648, %s650
      %p654 = scmp.eq.s32.totalorder %s68, 0
      %p655 = por %p653, %p654
      %p656 = scmp.ne.s32.totalorder %s648, %s650
      %p657 = scmp.eq.s32.totalorder %s73, 1
      %p658 = por %p656, %p657
      %p659 = scmp.ne.s32.totalorder %s650, %s651
      %p660 = scmp.eq.s32.totalorder %s73, 0
      %p661 = por %p659, %p660
      %p662 = scmp.ne.s32.totalorder %s650, %s651
      %p663 = scmp.eq.s32.totalorder %s74, 1
      %p664 = por %p662, %p663
      %p666 = scmp.ne.s32.totalorder %s651, %s665
      %p667 = scmp.eq.s32.totalorder %s74, 0
      %p668 = por %p666, %p667
      %s670 = sadd.s32 %s669, 1
      %p673 = scmp.eq.s32.totalorder %s68, 1
      %p674 = scmp.ne.s32.totalorder %s669, %s671
      %p675 = scmp.eq.s32.totalorder %s68, 0
      %p676 = por %p674, %p675
      %p677 = scmp.ne.s32.totalorder %s669, %s671
      %p678 = scmp.eq.s32.totalorder %s73, 1
      %p679 = por %p677, %p678
      %p680 = scmp.ne.s32.totalorder %s671, %s672
      %p681 = scmp.eq.s32.totalorder %s73, 0
      %p682 = por %p680, %p681
      %p683 = scmp.ne.s32.totalorder %s671, %s672
      %p684 = scmp.eq.s32.totalorder %s74, 1
      %p685 = por %p683, %p684
      %p687 = scmp.ne.s32.totalorder %s672, %s686
      %p688 = scmp.eq.s32.totalorder %s74, 0
      %p689 = por %p687, %p688
      %s690 = ssub.s32 %s68, %s75
      %p691 = scmp.eq.s32.totalorder %s690, 0
      %s693 = sadd.s32 %s692, 1
      %s694 = scalar_select %p691, %s692, %s693
      %p697 = pneg %p691
      %p698 = scmp.eq.s32.totalorder %s68, 1
      %p699 = por %p697, %p698
      %p700 = scmp.ne.s32.totalorder %s692, %s695
      %p701 = scmp.eq.s32.totalorder %s68, 0
      %p702 = por %p700, %p701
      %p703 = scmp.ne.s32.totalorder %s692, %s695
      %p704 = scmp.eq.s32.totalorder %s73, 1
      %p705 = por %p703, %p704
      %p706 = scmp.ne.s32.totalorder %s695, %s696
      %p707 = scmp.eq.s32.totalorder %s73, 0
      %p708 = por %p706, %p707
      %p709 = scmp.ne.s32.totalorder %s695, %s696
      %p710 = scmp.eq.s32.totalorder %s74, 1
      %p711 = por %p709, %p710
      %p713 = scmp.ne.s32.totalorder %s696, %s712
      %p714 = scmp.eq.s32.totalorder %s74, 0
      %p715 = por %p713, %p714
      %p716 = scmp.le.s32.totalorder 1, %s68
      %p717 = scmp.lt.s32.totalorder %s68, 3
      %p718 = pnand %p716, %p717
      %p719 = pneg %p718
      // Predicated region
      $region9: #{forward_minibatch.1} parent=5 // pred_check
        _
      $region10: #{forward_minibatch.1} parent=5 // pred_check_branch
        %721 = sbr.rel (%p718) target = $region12
      $region11: #{forward_minibatch.1} parent=5 // pred_region
        %s722 = ssub.s32 %s68, 1
        // Predicated region
        $region13: #{forward_minibatch.1} parent=11 // pred_check
          %p723 = pneg %p115
        $region14: #{forward_minibatch.1} parent=11 // pred_check_branch
          %725 = sbr.rel (%p723) target = $region16
        $region15: #{forward_minibatch.1} parent=11 // pred_region
          _
        $region16: #{forward_minibatch.1} parent=11 // pred_fallthru
          _
        // Predicated region
        $region17: #{forward_minibatch.1} parent=11 // pred_check
          %p726 = pneg %p136
        $region18: #{forward_minibatch.1} parent=11 // pred_check_branch
          %728 = sbr.rel (%p726) target = $region20
        $region19: #{forward_minibatch.1} parent=11 // pred_region
          _
        $region20: #{forward_minibatch.1} parent=11 // pred_fallthru
          _
        // Predicated region
        $region21: #{forward_minibatch.1} parent=11 // pred_check
          %p729 = pneg %p157
        $region22: #{forward_minibatch.1} parent=11 // pred_check_branch
          %731 = sbr.rel (%p729) target = $region24
        $region23: #{forward_minibatch.1} parent=11 // pred_region
          _
        $region24: #{forward_minibatch.1} parent=11 // pred_fallthru
          _
        // Predicated region
        $region25: #{forward_minibatch.1} parent=11 // pred_check
          %p732 = pneg %p178
        $region26: #{forward_minibatch.1} parent=11 // pred_check_branch
          %734 = sbr.rel (%p732) target = $region28
        $region27: #{forward_minibatch.1} parent=11 // pred_region
          _
        $region28: #{forward_minibatch.1} parent=11 // pred_fallthru
          _
        // Predicated region
        $region29: #{forward_minibatch.1} parent=11 // pred_check
          %p735 = pneg %p199
        $region30: #{forward_minibatch.1} parent=11 // pred_check_branch
          %737 = sbr.rel (%p735) target = $region32
        $region31: #{forward_minibatch.1} parent=11 // pred_region
          _
        $region32: #{forward_minibatch.1} parent=11 // pred_fallthru
          _
        // Predicated region
        $region33: #{forward_minibatch.1} parent=11 // pred_check
          %p738 = pneg %p220
        $region34: #{forward_minibatch.1} parent=11 // pred_check_branch
          %740 = sbr.rel (%p738) target = $region36
        $region35: #{forward_minibatch.1} parent=11 // pred_region
          _
        $region36: #{forward_minibatch.1} parent=11 // pred_fallthru
          _
        // Predicated region
        $region37: #{forward_minibatch.1} parent=11 // pred_check
          %p741 = pneg %p241
        $region38: #{forward_minibatch.1} parent=11 // pred_check_branch
          %743 = sbr.rel (%p741) target = $region40
        $region39: #{forward_minibatch.1} parent=11 // pred_region
          _
        $region40: #{forward_minibatch.1} parent=11 // pred_fallthru
          _
        // Predicated region
        $region41: #{forward_minibatch.1} parent=11 // pred_check
          %p744 = pneg %p262
        $region42: #{forward_minibatch.1} parent=11 // pred_check_branch
          %746 = sbr.rel (%p744) target = $region44
        $region43: #{forward_minibatch.1} parent=11 // pred_region
          _
        $region44: #{forward_minibatch.1} parent=11 // pred_fallthru
          _
        // Predicated region
        $region45: #{forward_minibatch.1} parent=11 // pred_check
          %p747 = pneg %p283
        $region46: #{forward_minibatch.1} parent=11 // pred_check_branch
          %749 = sbr.rel (%p747) target = $region48
        $region47: #{forward_minibatch.1} parent=11 // pred_region
          _
        $region48: #{forward_minibatch.1} parent=11 // pred_fallthru
          _
        // Predicated region
        $region49: #{forward_minibatch.1} parent=11 // pred_check
          %p750 = pneg %p304
        $region50: #{forward_minibatch.1} parent=11 // pred_check_branch
          %752 = sbr.rel (%p750) target = $region52
        $region51: #{forward_minibatch.1} parent=11 // pred_region
          _
        $region52: #{forward_minibatch.1} parent=11 // pred_fallthru
          _
        // Predicated region
        $region53: #{forward_minibatch.1} parent=11 // pred_check
          %p753 = pneg %p325
        $region54: #{forward_minibatch.1} parent=11 // pred_check_branch
          %755 = sbr.rel (%p753) target = $region56
        $region55: #{forward_minibatch.1} parent=11 // pred_region
          _
        $region56: #{forward_minibatch.1} parent=11 // pred_fallthru
          _
        // Predicated region
        $region57: #{forward_minibatch.1} parent=11 // pred_check
          %p756 = pneg %p346
        $region58: #{forward_minibatch.1} parent=11 // pred_check_branch
          %758 = sbr.rel (%p756) target = $region60
        $region59: #{forward_minibatch.1} parent=11 // pred_region
          _
        $region60: #{forward_minibatch.1} parent=11 // pred_fallthru
          _
        // Predicated region
        $region61: #{forward_minibatch.1} parent=11 // pred_check
          %p759 = pneg %p367
        $region62: #{forward_minibatch.1} parent=11 // pred_check_branch
          %761 = sbr.rel (%p759) target = $region64
        $region63: #{forward_minibatch.1} parent=11 // pred_region
          _
        $region64: #{forward_minibatch.1} parent=11 // pred_fallthru
          _
        // Predicated region
        $region65: #{forward_minibatch.1} parent=11 // pred_check
          %p762 = pneg %p388
        $region66: #{forward_minibatch.1} parent=11 // pred_check_branch
          %764 = sbr.rel (%p762) target = $region68
        $region67: #{forward_minibatch.1} parent=11 // pred_region
          _
        $region68: #{forward_minibatch.1} parent=11 // pred_fallthru
          _
        // Predicated region
        $region69: #{forward_minibatch.1} parent=11 // pred_check
          %p765 = pneg %p409
        $region70: #{forward_minibatch.1} parent=11 // pred_check_branch
          %767 = sbr.rel (%p765) target = $region72
        $region71: #{forward_minibatch.1} parent=11 // pred_region
          _
        $region72: #{forward_minibatch.1} parent=11 // pred_fallthru
          _
        // Predicated region
        $region73: #{forward_minibatch.1} parent=11 // pred_check
          %p768 = pneg %p430
        $region74: #{forward_minibatch.1} parent=11 // pred_check_branch
          %770 = sbr.rel (%p768) target = $region76
        $region75: #{forward_minibatch.1} parent=11 // pred_region
          _
        $region76: #{forward_minibatch.1} parent=11 // pred_fallthru
          _
        // Predicated region
        $region77: #{forward_minibatch.1} parent=11 // pred_check
          %p771 = pneg %p451
        $region78: #{forward_minibatch.1} parent=11 // pred_check_branch
          %773 = sbr.rel (%p771) target = $region80
        $region79: #{forward_minibatch.1} parent=11 // pred_region
          _
        $region80: #{forward_minibatch.1} parent=11 // pred_fallthru
          _
        // Predicated region
        $region81: #{forward_minibatch.1} parent=11 // pred_check
          %p774 = pneg %p472
        $region82: #{forward_minibatch.1} parent=11 // pred_check_branch
          %776 = sbr.rel (%p774) target = $region84
        $region83: #{forward_minibatch.1} parent=11 // pred_region
          _
        $region84: #{forward_minibatch.1} parent=11 // pred_fallthru
          _
        // Predicated region
        $region85: #{forward_minibatch.1} parent=11 // pred_check
          %p777 = pneg %p493
        $region86: #{forward_minibatch.1} parent=11 // pred_check_branch
          %779 = sbr.rel (%p777) target = $region88
        $region87: #{forward_minibatch.1} parent=11 // pred_region
          %781 = vsyncadd [#allocation4], 0
          %s783 = sshll.u32 %s39, 4
          %s784 = int_to_ptr.hbm [resolvable:$true] %s783
          %s785 = sshll.u32 [#allocation3], 4
          %s786 = int_to_ptr.vmem [resolvable:$true] %s785
          %788 = dma.hbm_to_vmem [thread:$0]  %s784, 16, %s786, [#allocation4]
        $region88: #{forward_minibatch.1} parent=11 // pred_fallthru
          _
        // Predicated region
        $region89: #{forward_minibatch.1} parent=11 // pred_check
          %p789 = pneg %p514
        $region90: #{forward_minibatch.1} parent=11 // pred_check_branch
          %791 = sbr.rel (%p789) target = $region92
        $region91: #{forward_minibatch.1} parent=11 // pred_region
          _
        $region92: #{forward_minibatch.1} parent=11 // pred_fallthru
          _
        // Predicated region
        $region93: #{forward_minibatch.1} parent=11 // pred_check
          %p792 = pneg %p535
        $region94: #{forward_minibatch.1} parent=11 // pred_check_branch
          %794 = sbr.rel (%p792) target = $region96
        $region95: #{forward_minibatch.1} parent=11 // pred_region
          %796 = vsyncadd [#allocation6], 0
          %s797 = sshll.u32 %s43, 4
          %s798 = int_to_ptr.hbm [resolvable:$true] %s797
          %s799 = sshll.u32 [#allocation5], 4
          %s800 = int_to_ptr.vmem [resolvable:$true] %s799
          %805 = dma.hbm_to_vmem [thread:$0]  %s798, 512, %s800, [#allocation6], 128, 128, 8
        $region96: #{forward_minibatch.1} parent=11 // pred_fallthru
          _
        // Predicated region
        $region97: #{forward_minibatch.1} parent=11 // pred_check
          %p806 = pneg %p556
        $region98: #{forward_minibatch.1} parent=11 // pred_check_branch
          %808 = sbr.rel (%p806) target = $region100
        $region99: #{forward_minibatch.1} parent=11 // pred_region
          _
        $region100: #{forward_minibatch.1} parent=11 // pred_fallthru
          _
        // Predicated region
        $region101: #{forward_minibatch.1} parent=11 // pred_check
          %p809 = pneg %p577
        $region102: #{forward_minibatch.1} parent=11 // pred_check_branch
          %811 = sbr.rel (%p809) target = $region104
        $region103: #{forward_minibatch.1} parent=11 // pred_region
          _
        $region104: #{forward_minibatch.1} parent=11 // pred_fallthru
          _
        // Predicated region
        $region105: #{forward_minibatch.1} parent=11 // pred_check
          %p812 = pneg %p598
        $region106: #{forward_minibatch.1} parent=11 // pred_check_branch
          %814 = sbr.rel (%p812) target = $region108
        $region107: #{forward_minibatch.1} parent=11 // pred_region
          _
        $region108: #{forward_minibatch.1} parent=11 // pred_fallthru
          _
        // Predicated region
        $region109: #{forward_minibatch.1} parent=11 // pred_check
          %p815 = pneg %p619
        $region110: #{forward_minibatch.1} parent=11 // pred_check_branch
          %817 = sbr.rel (%p815) target = $region112
        $region111: #{forward_minibatch.1} parent=11 // pred_region
          %819 = vsyncadd [#allocation6], 0
          %s821 = sshll.u32 %s51, 4
          %s822 = int_to_ptr.hbm [resolvable:$true] %s821
          %s823 = sshll.u32 [#allocation7], 4
          %s824 = int_to_ptr.vmem [resolvable:$true] %s823
          %826 = dma.hbm_to_vmem [thread:$0]  %s822, 16, %s824, [#allocation6]
        $region112: #{forward_minibatch.1} parent=11 // pred_fallthru
          _
        // Predicated region
        $region113: #{forward_minibatch.1} parent=11 // pred_check
          %p827 = pneg %p640
        $region114: #{forward_minibatch.1} parent=11 // pred_check_branch
          %829 = sbr.rel (%p827) target = $region116
        $region115: #{forward_minibatch.1} parent=11 // pred_region
          _
        $region116: #{forward_minibatch.1} parent=11 // pred_fallthru
          _
        // Predicated region
        $region117: #{forward_minibatch.1} parent=11 // pred_check
          %p830 = pneg %p661
        $region118: #{forward_minibatch.1} parent=11 // pred_check_branch
          %832 = sbr.rel (%p830) target = $region120
        $region119: #{forward_minibatch.1} parent=11 // pred_region
          %834 = vsyncadd [#allocation9], 0
          %s835 = sshll.u32 %s55, 4
          %s836 = int_to_ptr.hbm [resolvable:$true] %s835
          %s837 = sshll.u32 [#allocation8], 4
          %s838 = int_to_ptr.vmem [resolvable:$true] %s837
          %843 = dma.hbm_to_vmem [thread:$0]  %s836, 512, %s838, [#allocation9], 128, 128, 8
        $region120: #{forward_minibatch.1} parent=11 // pred_fallthru
          _
        // Predicated region
        $region121: #{forward_minibatch.1} parent=11 // pred_check
          %p844 = pneg %p682
        $region122: #{forward_minibatch.1} parent=11 // pred_check_branch
          %846 = sbr.rel (%p844) target = $region124
        $region123: #{forward_minibatch.1} parent=11 // pred_region
          _
        $region124: #{forward_minibatch.1} parent=11 // pred_fallthru
          _
      $region12: #{forward_minibatch.1} parent=5 // pred_fallthru
        _
      %p847 = scmp.lt.s32.totalorder %s68, 2
      // Predicated region
      $region125: #{forward_minibatch.1} parent=5 // pred_check
        %p848 = pneg %p847
      $region126: #{forward_minibatch.1} parent=5 // pred_check_branch
        %850 = sbr.rel (%p848) target = $region128
      $region127: #{forward_minibatch.1} parent=5 // pred_region
        // Predicated region
        $region129: #{forward_minibatch.1} parent=127 // pred_check
          %p851 = pneg %p88
        $region130: #{forward_minibatch.1} parent=127 // pred_check_branch
          %853 = sbr.rel (%p851) target = $region132
        $region131: #{forward_minibatch.1} parent=127 // pred_region
          %p854 = scmp.lt.s32.totalorder %s68, 1
          %s855 = scalar_select %p854, %s68, 1
          %s856 = scalar_lea.vmem %s1, %s855
        $region132: #{forward_minibatch.1} parent=127 // pred_fallthru
          _
      $region128: #{forward_minibatch.1} parent=5 // pred_fallthru
        _
      %p857 = scmp.le.s32.totalorder 1, %s68
      %p858 = scmp.lt.s32.totalorder %s68, 3
      %p859 = pnand %p857, %p858
      %p860 = pneg %p859
      // Predicated region
      $region133: #{forward_minibatch.1} parent=5 // pred_check
        _
      $region134: #{forward_minibatch.1} parent=5 // pred_check_branch
        %862 = sbr.rel (%p859) target = $region136
      $region135: #{forward_minibatch.1} parent=5 // pred_region
        %s863 = ssub.s32 %s68, 1
        // Predicated region
        $region137: #{forward_minibatch.1} parent=135 // pred_check
          %p864 = pneg %p493
        $region138: #{forward_minibatch.1} parent=135 // pred_check_branch
          %866 = sbr.rel (%p864) target = $region140
        $region139: #{forward_minibatch.1} parent=135 // pred_region
          %868 = dma.done [#allocation4], 16
        $region140: #{forward_minibatch.1} parent=135 // pred_fallthru
          _
        // Predicated region
        $region141: #{forward_minibatch.1} parent=135 // pred_check
          %p869 = pneg %p535
        $region142: #{forward_minibatch.1} parent=135 // pred_check_branch
          %871 = sbr.rel (%p869) target = $region144
        $region143: #{forward_minibatch.1} parent=135 // pred_region
          %873 = dma.done [#allocation6], 512
        $region144: #{forward_minibatch.1} parent=135 // pred_fallthru
          _
        // Predicated region
        $region145: #{forward_minibatch.1} parent=135 // pred_check
          %p874 = pneg %p619
        $region146: #{forward_minibatch.1} parent=135 // pred_check_branch
          %876 = sbr.rel (%p874) target = $region148
        $region147: #{forward_minibatch.1} parent=135 // pred_region
          %878 = dma.done [#allocation6], 16
        $region148: #{forward_minibatch.1} parent=135 // pred_fallthru
          _
        // Predicated region
        $region149: #{forward_minibatch.1} parent=135 // pred_check
          %p879 = pneg %p661
        $region150: #{forward_minibatch.1} parent=135 // pred_check_branch
          %881 = sbr.rel (%p879) target = $region152
        $region151: #{forward_minibatch.1} parent=135 // pred_region
          %883 = dma.done [#allocation9], 512
        $region152: #{forward_minibatch.1} parent=135 // pred_fallthru
          _
        %p884 = scmp.lt.s32.totalorder %s73, 1
        %s885 = scalar_select %p884, %s73, 1
        %s886 = scalar_lea.vmem %s1, %s885
        %p887 = pneg %p94
        %p888 = pneg %p91
        %p889 = pneg %p115
        %p890 = pneg %p112
        %p891 = pneg %p136
        %p892 = pneg %p133
        %p893 = pneg %p157
        %p894 = pneg %p154
        %p895 = pneg %p178
        %p896 = pneg %p175
        %p897 = pneg %p199
        %p898 = pneg %p196
        %p899 = pneg %p220
        %p900 = pneg %p217
        %p901 = pneg %p241
        %p902 = pneg %p238
        %p903 = pneg %p262
        %p904 = pneg %p259
        %p905 = pneg %p283
        %p906 = pneg %p280
        %p907 = pneg %p304
        %p908 = pneg %p301
        %p909 = pneg %p325
        %p910 = pneg %p322
        %p911 = pneg %p346
        %p912 = pneg %p343
        %p913 = pneg %p367
        %p914 = pneg %p364
        %p915 = pneg %p388
        %p916 = pneg %p385
        %p917 = pneg %p409
        %p918 = pneg %p406
        %p919 = pneg %p430
        %p920 = pneg %p427
        %p921 = pneg %p451
        %p922 = pneg %p448
        %p923 = pneg %p472
        %p924 = pneg %p469
        %p925 = pneg %p493
        %p926 = pneg %p490
        %p927 = pneg %p514
        %p928 = pneg %p511
        %p929 = pneg %p535
        %p930 = pneg %p532
        %p931 = pneg %p556
        %p932 = pneg %p553
        %p933 = pneg %p577
        %p934 = pneg %p574
        %p935 = pneg %p598
        %p936 = pneg %p595
        %p937 = pneg %p619
        %p938 = pneg %p616
        %p939 = pneg %p640
        %p940 = pneg %p637
        %p941 = pneg %p661
        %p942 = pneg %p658
        %p943 = pneg %p682
        %p944 = pneg %p679
        %p945 = pneg %p708
        %p946 = pneg %p705
        %p947 = scmp.lt.s32.totalorder %s73, 1
        %s948 = scalar_select %p947, %s73, 1
        %s949 = smul.addr %s948, 2
        %s950 = smul.addr %s949, 8
        %s951 = scalar_lea.vmem %s59, %s950
        %p952 = scmp.lt.s32.totalorder %s73, 1
        %s953 = scalar_select %p952, %s73, 1
        %s954 = scalar_lea.vmem %s1, %s953
        %p955 = scmp.lt.s32.totalorder %s73, 1
        %s956 = scalar_select %p955, %s73, 1
        %s957 = smul.addr %s956, 2
        %s958 = smul.addr %s957, 8
        %s959 = scalar_lea.vmem %s59, %s958
        %v960 = vld [vmem:[%s954] sm:$0x1]
        %v961 = vlaneseq
        %v962 = vand.u32 %v961, 127
        %v963 = vperm.slane %v960, 0
        %v964 = vlaneseq
        %v965 = vshrl.u32 %v964, 7
        %967 = vset.pattern.permute.xlu0 %v965
        %968 = vperm.xlu0 %967, %v963
        %v969 = vpop.permute.xlu0 %968
        %v970 = vlaneseq
        %v971 = vshrl.u32 %v970, 7
        %v972 = vadd.s32 %v971, 8
        %973 = vset.pattern.permute.xlu0 %v972
        %974 = vperm.xlu0 %973, %v963
        %v975 = vpop.permute.xlu0 %974
        %vm976 = vcmp.eq.s32.totalorder %v969, %v962
        %vm977 = vcmp.eq.s32.totalorder %v975, %v962
        %v978 = vsel %vm976, 1, 0
        %v979 = vsel %vm977, 1, 0
        %v980 = vcvt.s32.f32 %v978
        %v981 = vcvt.s32.f32 %v979
        %v982 = vld [vmem:[%s3] sm:$0xff]
        %v983 = vld [vmem:[%s3 + $0x8] sm:$0xff]
        %vm984 = vcmask 130048
        %v986 = vsel %vm984, %v980, 0
        %v989 = vsel %vm984, %v981, 0
        %991 = vmatpush.msra.mxu0 0.0
        %992 = vmatpush.msra.mxu0 0.0
        %993 = vmatpush.msra.mxu0 0.0
        %994 = vmatpush.msra.mxu0 0.0
        %995 = vmatpush.msra.mxu0 0.0
        %996 = vmatpush.msra.mxu0 0.0
        %997 = vmatpush.msra.mxu0 0.0
        %998 = vmatpush.msra.mxu0 0.0
        %999 = vmatpush.msra.mxu0 0.0
        %1000 = vmatpush.msra.mxu0 0.0
        %1001 = vmatpush.msra.mxu0 0.0
        %1002 = vmatpush.msra.mxu0 0.0
        %1003 = vmatpush.msra.mxu0 0.0
        %1004 = vmatpush.msra.mxu0 0.0
        %1005 = vmatpush.msra.mxu0 %v983
        %1006 = vmatpush.msra.mxu0 %v982
        %1007 = vmatmul.f32.gmra.mxu0 %v986
        %v1008 = vpop.f32.mrf.mxu0
        %v1009 = vadd.f32 0.0, %v1008
        %1010 = vmatmul.f32.gmra.mxu0 %v989
        %v1011 = vpop.f32.mrf.mxu0
        %v1012 = vadd.f32 0.0, %v1011
        %1013 = vdwg.mxu0
        %v1014 = vmul.f32 %v1009, 5.656854
        %v1015 = vmul.f32 %v1012, 5.656854
        %v1016 = vld [vmem:[%s5] sm:$0xff]
        %v1017 = vld [vmem:[%s5 + $0x8] sm:$0xff]
        %v1018 = vadd.f32 %v1014, %v1016
        %v1019 = vadd.f32 %v1015, %v1017
        %vm1020 = vcmp.eq.s32.totalorder %v960, 10
        %vm1021 = vmxor %vm1020, 1
        %v1022 = vlaneseq
        %v1023 = vshrl.u32 %v1022, 7
        %v1024 = vadd.s32 %v1023, 8
        %vm1025 = vcmp.le.s32.totalorder %v962, %v1023
        %vm1026 = vcmp.le.s32.totalorder %v962, %v1024
        %v1027 = vsel %vm1021, 1, 0
        %v1028 = vperm.slane %v1027, 0
        %vm1029 = vcmp.eq.s32.totalorder %v1028, 1
        %vm1030 = vmand %vm1025, %vm1029
        %vm1031 = vmand %vm1026, %vm1029
        %v1032 = vld [vmem:[%s7] sm:$0xff]
        %v1033 = vld [vmem:[%s7 + $0x8] sm:$0xff]
        %v1034 = vld [vmem:[%s7 + $0x10] sm:$0xff]
        %v1035 = vld [vmem:[%s7 + $0x18] sm:$0xff]
        %v1036 = vld [vmem:[%s9] sm:$0x1]
        %v1038 = vperm.slane %v1036, 0
        %vm1040 = vcmask 261120
        %v1042 = vsel %vm1040, %v1018, 0
        %v1045 = vsel %vm1040, %v1019, 0
        %1047 = vmatpush.msra.mxu0 0.0
        %1048 = vmatpush.msra.mxu0 0.0
        %1049 = vmatpush.msra.mxu0 0.0
        %1050 = vmatpush.msra.mxu0 0.0
        %1051 = vmatpush.msra.mxu0 0.0
        %1052 = vmatpush.msra.mxu0 0.0
        %1053 = vmatpush.msra.mxu0 0.0
        %1054 = vmatpush.msra.mxu0 0.0
        %1055 = vmatpush.msra.mxu0 0.0
        %1056 = vmatpush.msra.mxu0 0.0
        %1057 = vmatpush.msra.mxu0 0.0
        %1058 = vmatpush.msra.mxu0 0.0
        %1059 = vmatpush.msra.mxu0 %v1035
        %1060 = vmatpush.msra.mxu0 %v1034
        %1061 = vmatpush.msra.mxu0 %v1033
        %1062 = vmatpush.msra.mxu0 %v1032
        %1063 = vmatmul.f32.gmra.mxu0 %v1042
        %v1064 = vpop.f32.mrf.mxu0
        %v1065 = vadd.f32 %v1038, %v1064
        %1066 = vmatmul.f32.gmra.mxu0 %v1045
        %v1067 = vpop.f32.mrf.mxu0
        %v1068 = vadd.f32 %v1038, %v1067
        %1069 = vdwg.mxu0
        %1072 = vrot.lane.b32.xlu0 %v1065, 96
        %v1073 = vpop.permute.xlu0 %1072
        %1074 = vrot.lane.b32.xlu0 %v1068, 96
        %v1075 = vpop.permute.xlu0 %1074
        %vm1076 = vcmask 64512
        %v1077 = vsel %vm1076, %v1065, 0
        %v1079 = vsel %vm1076, %v1068, 0
        %v1081 = vsel %vm1076, %v1073, 0
        %v1083 = vsel %vm1076, %v1075, 0
        %1085 = vmatpush.xpose.msra.mxu0 0.0
        %1086 = vmatpush.xpose.msra.mxu0 0.0
        %1087 = vmatpush.xpose.msra.mxu0 0.0
        %1088 = vmatpush.xpose.msra.mxu0 0.0
        %1089 = vmatpush.xpose.msra.mxu0 0.0
        %1090 = vmatpush.xpose.msra.mxu0 0.0
        %1091 = vmatpush.xpose.msra.mxu0 0.0
        %1092 = vmatpush.xpose.msra.mxu0 0.0
        %1093 = vmatpush.xpose.msra.mxu0 0.0
        %1094 = vmatpush.xpose.msra.mxu0 0.0
        %1095 = vmatpush.xpose.msra.mxu0 0.0
        %1096 = vmatpush.xpose.msra.mxu0 0.0
        %1097 = vmatpush.xpose.msra.mxu0 0.0
        %1098 = vmatpush.xpose.msra.mxu0 0.0
        %1099 = vmatpush.xpose.msra.mxu0 %v1083
        %1100 = vmatpush.xpose.msra.mxu0 %v1081
        %1101 = vmatmul.f32.gmra.mxu0 %v1077
        %v1102 = vpop.f32.mrf.mxu0
        %v1103 = vadd.f32 0.0, %v1102
        %1104 = vmatmul.f32.gmra.mxu0 %v1079
        %v1105 = vpop.f32.mrf.mxu0
        %v1106 = vadd.f32 0.0, %v1105
        %1107 = vdwg.mxu0
        %v1108 = vmul.f32 %v1103, 0.35355338
        %v1109 = vmul.f32 %v1106, 0.35355338
        %v1110 = vsel %vm1030, %v1108, -1e+09
        %v1111 = vsel %vm1031, %v1109, -1e+09
        %v1112 = vsel %vm984, %v1110, -inf
        %1113 = vmax.xlane.f32.xlu0 %v1112
        %v1114 = vpop.xlane.xlu0 %1113
        %v1115 = vsel %vm984, %v1111, -inf
        %1116 = vmax.xlane.f32.xlu0 %v1115
        %v1117 = vpop.xlane.xlu0 %1116
        %v1118 = vsub.f32 %v1110, %v1114
        %v1119 = vsub.f32 %v1111, %v1117
        %v1120 = vmul.f32 %v1118, 1.442695
        %v1121 = vpow.pop %v1120
        %v1122 = vmul.f32 %v1119, 1.442695
        %v1123 = vpow.pop %v1122
        %v1124 = vsel %vm984, %v1121, 0.0
        %1125 = vadd.xlane.f32.xlu0 %v1124
        %v1126 = vpop.xlane.xlu0 %1125
        %v1127 = vsel %vm984, %v1123, 0.0
        %1128 = vadd.xlane.f32.xlu0 %v1127
        %v1129 = vpop.xlane.xlu0 %1128
        %v1130 = vrcp.pop %v1126
        %v1131 = vrcp.pop %v1129
        %v1132 = vmul.f32 %v1121, %v1130
        %v1133 = vmul.f32 %v1123, %v1131
        %1134 = vrot.lane.b32.xlu0 %v1065, 64
        %v1135 = vpop.permute.xlu0 %1134
        %1136 = vrot.lane.b32.xlu0 %v1068, 64
        %v1137 = vpop.permute.xlu0 %1136
        %v1141 = vsel %vm984, %v1132, 0
        %v1144 = vsel %vm984, %v1133, 0
        %1146 = vmatpush.msra.mxu0 0.0
        %1147 = vmatpush.msra.mxu0 0.0
        %1148 = vmatpush.msra.mxu0 0.0
        %1149 = vmatpush.msra.mxu0 0.0
        %1150 = vmatpush.msra.mxu0 0.0
        %1151 = vmatpush.msra.mxu0 0.0
        %1152 = vmatpush.msra.mxu0 0.0
        %1153 = vmatpush.msra.mxu0 0.0
        %1154 = vmatpush.msra.mxu0 0.0
        %1155 = vmatpush.msra.mxu0 0.0
        %1156 = vmatpush.msra.mxu0 0.0
        %1157 = vmatpush.msra.mxu0 0.0
        %1158 = vmatpush.msra.mxu0 0.0
        %1159 = vmatpush.msra.mxu0 0.0
        %1160 = vmatpush.msra.mxu0 %v1137
        %1161 = vmatpush.msra.mxu0 %v1135
        %1162 = vmatmul.f32.gmra.mxu0 %v1141
        %v1163 = vpop.f32.mrf.mxu0
        %v1164 = vadd.f32 0.0, %v1163
        %1165 = vmatmul.f32.gmra.mxu0 %v1144
        %v1166 = vpop.f32.mrf.mxu0
        %v1167 = vadd.f32 0.0, %v1166
        %1168 = vdwg.mxu0
        %1169 = vst.msk [vmem:[#allocation2] sm:$0xff] %vm1076, %v1164
        %1170 = vst.msk [vmem:[#allocation2 + $0x8] sm:$0xff] %vm1076, %v1167
        %1171 = vrot.lane.b32.xlu0 %v1065, 120
        %v1172 = vpop.permute.xlu0 %1171
        %1173 = vrot.lane.b32.xlu0 %v1068, 120
        %v1174 = vpop.permute.xlu0 %1173
        %1175 = vrot.lane.b32.xlu0 %v1065, 88
        %v1176 = vpop.permute.xlu0 %1175
        %1177 = vrot.lane.b32.xlu0 %v1068, 88
        %v1178 = vpop.permute.xlu0 %1177
        %v1179 = vsel %vm1076, %v1172, 0
        %v1181 = vsel %vm1076, %v1174, 0
        %v1183 = vsel %vm1076, %v1176, 0
        %v1185 = vsel %vm1076, %v1178, 0
        %1187 = vmatpush.xpose.msra.mxu0 0.0
        %1188 = vmatpush.xpose.msra.mxu0 0.0
        %1189 = vmatpush.xpose.msra.mxu0 0.0
        %1190 = vmatpush.xpose.msra.mxu0 0.0
        %1191 = vmatpush.xpose.msra.mxu0 0.0
        %1192 = vmatpush.xpose.msra.mxu0 0.0
        %1193 = vmatpush.xpose.msra.mxu0 0.0
        %1194 = vmatpush.xpose.msra.mxu0 0.0
        %1195 = vmatpush.xpose.msra.mxu0 0.0
        %1196 = vmatpush.xpose.msra.mxu0 0.0
        %1197 = vmatpush.xpose.msra.mxu0 0.0
        %1198 = vmatpush.xpose.msra.mxu0 0.0
        %1199 = vmatpush.xpose.msra.mxu0 0.0
        %1200 = vmatpush.xpose.msra.mxu0 0.0
        %1201 = vmatpush.xpose.msra.mxu0 %v1185
        %1202 = vmatpush.xpose.msra.mxu0 %v1183
        %1203 = vmatmul.f32.gmra.mxu0 %v1179
        %v1204 = vpop.f32.mrf.mxu0
        %v1205 = vadd.f32 0.0, %v1204
        %1206 = vmatmul.f32.gmra.mxu0 %v1181
        %v1207 = vpop.f32.mrf.mxu0
        %v1208 = vadd.f32 0.0, %v1207
        %1209 = vdwg.mxu0
        %v1210 = vmul.f32 %v1205, 0.35355338
        %v1211 = vmul.f32 %v1208, 0.35355338
        %v1212 = vsel %vm1030, %v1210, -1e+09
        %v1213 = vsel %vm1031, %v1211, -1e+09
        %v1214 = vsel %vm984, %v1212, -inf
        %1215 = vmax.xlane.f32.xlu0 %v1214
        %v1216 = vpop.xlane.xlu0 %1215
        %v1217 = vsel %vm984, %v1213, -inf
        %1218 = vmax.xlane.f32.xlu0 %v1217
        %v1219 = vpop.xlane.xlu0 %1218
        %v1220 = vsub.f32 %v1212, %v1216
        %v1221 = vsub.f32 %v1213, %v1219
        %v1222 = vmul.f32 %v1220, 1.442695
        %v1223 = vpow.pop %v1222
        %v1224 = vmul.f32 %v1221, 1.442695
        %v1225 = vpow.pop %v1224
        %v1226 = vsel %vm984, %v1223, 0.0
        %1227 = vadd.xlane.f32.xlu0 %v1226
        %v1228 = vpop.xlane.xlu0 %1227
        %v1229 = vsel %vm984, %v1225, 0.0
        %1230 = vadd.xlane.f32.xlu0 %v1229
        %v1231 = vpop.xlane.xlu0 %1230
        %v1232 = vrcp.pop %v1228
        %v1233 = vrcp.pop %v1231
        %v1234 = vmul.f32 %v1223, %v1232
        %v1235 = vmul.f32 %v1225, %v1233
        %1236 = vrot.lane.b32.xlu0 %v1065, 56
        %v1237 = vpop.permute.xlu0 %1236
        %1238 = vrot.lane.b32.xlu0 %v1068, 56
        %v1239 = vpop.permute.xlu0 %1238
        %v1243 = vsel %vm984, %v1234, 0
        %v1246 = vsel %vm984, %v1235, 0
        %1248 = vmatpush.msra.mxu0 0.0
        %1249 = vmatpush.msra.mxu0 0.0
        %1250 = vmatpush.msra.mxu0 0.0
        %1251 = vmatpush.msra.mxu0 0.0
        %1252 = vmatpush.msra.mxu0 0.0
        %1253 = vmatpush.msra.mxu0 0.0
        %1254 = vmatpush.msra.mxu0 0.0
        %1255 = vmatpush.msra.mxu0 0.0
        %1256 = vmatpush.msra.mxu0 0.0
        %1257 = vmatpush.msra.mxu0 0.0
        %1258 = vmatpush.msra.mxu0 0.0
        %1259 = vmatpush.msra.mxu0 0.0
        %1260 = vmatpush.msra.mxu0 0.0
        %1261 = vmatpush.msra.mxu0 0.0
        %1262 = vmatpush.msra.mxu0 %v1239
        %1263 = vmatpush.msra.mxu0 %v1237
        %1264 = vmatmul.f32.gmra.mxu0 %v1243
        %v1265 = vpop.f32.mrf.mxu0
        %v1266 = vadd.f32 0.0, %v1265
        %1267 = vmatmul.f32.gmra.mxu0 %v1246
        %v1268 = vpop.f32.mrf.mxu0
        %v1269 = vadd.f32 0.0, %v1268
        %1270 = vdwg.mxu0
        %1273 = vrot.lane.b32.xlu0 %v1266, 8
        %v1274 = vpop.permute.xlu0 %1273
        %1275 = vrot.lane.b32.xlu0 %v1269, 8
        %v1276 = vpop.permute.xlu0 %1275
        %vm1279 = vcmask 130112
        %1280 = vst.msk [vmem:[#allocation2] sm:$0xff] %vm1279, %v1274
        %1281 = vst.msk [vmem:[#allocation2 + $0x8] sm:$0xff] %vm1279, %v1276
        %1282 = vrot.lane.b32.xlu0 %v1065, 112
        %v1283 = vpop.permute.xlu0 %1282
        %1284 = vrot.lane.b32.xlu0 %v1068, 112
        %v1285 = vpop.permute.xlu0 %1284
        %1286 = vrot.lane.b32.xlu0 %v1065, 80
        %v1287 = vpop.permute.xlu0 %1286
        %1288 = vrot.lane.b32.xlu0 %v1068, 80
        %v1289 = vpop.permute.xlu0 %1288
        %v1290 = vsel %vm1076, %v1283, 0
        %v1292 = vsel %vm1076, %v1285, 0
        %v1294 = vsel %vm1076, %v1287, 0
        %v1296 = vsel %vm1076, %v1289, 0
        %1298 = vmatpush.xpose.msra.mxu0 0.0
        %1299 = vmatpush.xpose.msra.mxu0 0.0
        %1300 = vmatpush.xpose.msra.mxu0 0.0
        %1301 = vmatpush.xpose.msra.mxu0 0.0
        %1302 = vmatpush.xpose.msra.mxu0 0.0
        %1303 = vmatpush.xpose.msra.mxu0 0.0
        %1304 = vmatpush.xpose.msra.mxu0 0.0
        %1305 = vmatpush.xpose.msra.mxu0 0.0
        %1306 = vmatpush.xpose.msra.mxu0 0.0
        %1307 = vmatpush.xpose.msra.mxu0 0.0
        %1308 = vmatpush.xpose.msra.mxu0 0.0
        %1309 = vmatpush.xpose.msra.mxu0 0.0
        %1310 = vmatpush.xpose.msra.mxu0 0.0
        %1311 = vmatpush.xpose.msra.mxu0 0.0
        %1312 = vmatpush.xpose.msra.mxu0 %v1296
        %1313 = vmatpush.xpose.msra.mxu0 %v1294
        %1314 = vmatmul.f32.gmra.mxu0 %v1290
        %v1315 = vpop.f32.mrf.mxu0
        %v1316 = vadd.f32 0.0, %v1315
        %1317 = vmatmul.f32.gmra.mxu0 %v1292
        %v1318 = vpop.f32.mrf.mxu0
        %v1319 = vadd.f32 0.0, %v1318
        %1320 = vdwg.mxu0
        %v1321 = vmul.f32 %v1316, 0.35355338
        %v1322 = vmul.f32 %v1319, 0.35355338
        %v1323 = vsel %vm1030, %v1321, -1e+09
        %v1324 = vsel %vm1031, %v1322, -1e+09
        %v1325 = vsel %vm984, %v1323, -inf
        %1326 = vmax.xlane.f32.xlu0 %v1325
        %v1327 = vpop.xlane.xlu0 %1326
        %v1328 = vsel %vm984, %v1324, -inf
        %1329 = vmax.xlane.f32.xlu0 %v1328
        %v1330 = vpop.xlane.xlu0 %1329
        %v1331 = vsub.f32 %v1323, %v1327
        %v1332 = vsub.f32 %v1324, %v1330
        %v1333 = vmul.f32 %v1331, 1.442695
        %v1334 = vpow.pop %v1333
        %v1335 = vmul.f32 %v1332, 1.442695
        %v1336 = vpow.pop %v1335
        %v1337 = vsel %vm984, %v1334, 0.0
        %1338 = vadd.xlane.f32.xlu0 %v1337
        %v1339 = vpop.xlane.xlu0 %1338
        %v1340 = vsel %vm984, %v1336, 0.0
        %1341 = vadd.xlane.f32.xlu0 %v1340
        %v1342 = vpop.xlane.xlu0 %1341
        %v1343 = vrcp.pop %v1339
        %v1344 = vrcp.pop %v1342
        %v1345 = vmul.f32 %v1334, %v1343
        %v1346 = vmul.f32 %v1336, %v1344
        %1347 = vrot.lane.b32.xlu0 %v1065, 48
        %v1348 = vpop.permute.xlu0 %1347
        %1349 = vrot.lane.b32.xlu0 %v1068, 48
        %v1350 = vpop.permute.xlu0 %1349
        %v1354 = vsel %vm984, %v1345, 0
        %v1357 = vsel %vm984, %v1346, 0
        %1359 = vmatpush.msra.mxu0 0.0
        %1360 = vmatpush.msra.mxu0 0.0
        %1361 = vmatpush.msra.mxu0 0.0
        %1362 = vmatpush.msra.mxu0 0.0
        %1363 = vmatpush.msra.mxu0 0.0
        %1364 = vmatpush.msra.mxu0 0.0
        %1365 = vmatpush.msra.mxu0 0.0
        %1366 = vmatpush.msra.mxu0 0.0
        %1367 = vmatpush.msra.mxu0 0.0
        %1368 = vmatpush.msra.mxu0 0.0
        %1369 = vmatpush.msra.mxu0 0.0
        %1370 = vmatpush.msra.mxu0 0.0
        %1371 = vmatpush.msra.mxu0 0.0
        %1372 = vmatpush.msra.mxu0 0.0
        %1373 = vmatpush.msra.mxu0 %v1350
        %1374 = vmatpush.msra.mxu0 %v1348
        %1375 = vmatmul.f32.gmra.mxu0 %v1354
        %v1376 = vpop.f32.mrf.mxu0
        %v1377 = vadd.f32 0.0, %v1376
        %1378 = vmatmul.f32.gmra.mxu0 %v1357
        %v1379 = vpop.f32.mrf.mxu0
        %v1380 = vadd.f32 0.0, %v1379
        %1381 = vdwg.mxu0
        %1384 = vrot.lane.b32.xlu0 %v1377, 16
        %v1385 = vpop.permute.xlu0 %1384
        %1386 = vrot.lane.b32.xlu0 %v1380, 16
        %v1387 = vpop.permute.xlu0 %1386
        %vm1390 = vcmask 195712
        %1391 = vst.msk [vmem:[#allocation2] sm:$0xff] %vm1390, %v1385
        %1392 = vst.msk [vmem:[#allocation2 + $0x8] sm:$0xff] %vm1390, %v1387
        %1393 = vrot.lane.b32.xlu0 %v1065, 104
        %v1394 = vpop.permute.xlu0 %1393
        %1395 = vrot.lane.b32.xlu0 %v1068, 104
        %v1396 = vpop.permute.xlu0 %1395
        %1397 = vrot.lane.b32.xlu0 %v1065, 72
        %v1398 = vpop.permute.xlu0 %1397
        %1399 = vrot.lane.b32.xlu0 %v1068, 72
        %v1400 = vpop.permute.xlu0 %1399
        %v1401 = vsel %vm1076, %v1394, 0
        %v1403 = vsel %vm1076, %v1396, 0
        %v1405 = vsel %vm1076, %v1398, 0
        %v1407 = vsel %vm1076, %v1400, 0
        %1409 = vmatpush.xpose.msra.mxu0 0.0
        %1410 = vmatpush.xpose.msra.mxu0 0.0
        %1411 = vmatpush.xpose.msra.mxu0 0.0
        %1412 = vmatpush.xpose.msra.mxu0 0.0
        %1413 = vmatpush.xpose.msra.mxu0 0.0
        %1414 = vmatpush.xpose.msra.mxu0 0.0
        %1415 = vmatpush.xpose.msra.mxu0 0.0
        %1416 = vmatpush.xpose.msra.mxu0 0.0
        %1417 = vmatpush.xpose.msra.mxu0 0.0
        %1418 = vmatpush.xpose.msra.mxu0 0.0
        %1419 = vmatpush.xpose.msra.mxu0 0.0
        %1420 = vmatpush.xpose.msra.mxu0 0.0
        %1421 = vmatpush.xpose.msra.mxu0 0.0
        %1422 = vmatpush.xpose.msra.mxu0 0.0
        %1423 = vmatpush.xpose.msra.mxu0 %v1407
        %1424 = vmatpush.xpose.msra.mxu0 %v1405
        %1425 = vmatmul.f32.gmra.mxu0 %v1401
        %v1426 = vpop.f32.mrf.mxu0
        %v1427 = vadd.f32 0.0, %v1426
        %1428 = vmatmul.f32.gmra.mxu0 %v1403
        %v1429 = vpop.f32.mrf.mxu0
        %v1430 = vadd.f32 0.0, %v1429
        %1431 = vdwg.mxu0
        %v1432 = vmul.f32 %v1427, 0.35355338
        %v1433 = vmul.f32 %v1430, 0.35355338
        %v1434 = vsel %vm1030, %v1432, -1e+09
        %v1435 = vsel %vm1031, %v1433, -1e+09
        %v1436 = vsel %vm984, %v1434, -inf
        %1437 = vmax.xlane.f32.xlu0 %v1436
        %v1438 = vpop.xlane.xlu0 %1437
        %v1439 = vsel %vm984, %v1435, -inf
        %1440 = vmax.xlane.f32.xlu0 %v1439
        %v1441 = vpop.xlane.xlu0 %1440
        %v1442 = vsub.f32 %v1434, %v1438
        %v1443 = vsub.f32 %v1435, %v1441
        %v1444 = vmul.f32 %v1442, 1.442695
        %v1445 = vpow.pop %v1444
        %v1446 = vmul.f32 %v1443, 1.442695
        %v1447 = vpow.pop %v1446
        %v1448 = vsel %vm984, %v1445, 0.0
        %1449 = vadd.xlane.f32.xlu0 %v1448
        %v1450 = vpop.xlane.xlu0 %1449
        %v1451 = vsel %vm984, %v1447, 0.0
        %1452 = vadd.xlane.f32.xlu0 %v1451
        %v1453 = vpop.xlane.xlu0 %1452
        %v1454 = vrcp.pop %v1450
        %v1455 = vrcp.pop %v1453
        %v1456 = vmul.f32 %v1445, %v1454
        %v1457 = vmul.f32 %v1447, %v1455
        %1458 = vrot.lane.b32.xlu0 %v1065, 40
        %v1459 = vpop.permute.xlu0 %1458
        %1460 = vrot.lane.b32.xlu0 %v1068, 40
        %v1461 = vpop.permute.xlu0 %1460
        %v1465 = vsel %vm984, %v1456, 0
        %v1468 = vsel %vm984, %v1457, 0
        %1470 = vmatpush.msra.mxu0 0.0
        %1471 = vmatpush.msra.mxu0 0.0
        %1472 = vmatpush.msra.mxu0 0.0
        %1473 = vmatpush.msra.mxu0 0.0
        %1474 = vmatpush.msra.mxu0 0.0
        %1475 = vmatpush.msra.mxu0 0.0
        %1476 = vmatpush.msra.mxu0 0.0
        %1477 = vmatpush.msra.mxu0 0.0
        %1478 = vmatpush.msra.mxu0 0.0
        %1479 = vmatpush.msra.mxu0 0.0
        %1480 = vmatpush.msra.mxu0 0.0
        %1481 = vmatpush.msra.mxu0 0.0
        %1482 = vmatpush.msra.mxu0 0.0
        %1483 = vmatpush.msra.mxu0 0.0
        %1484 = vmatpush.msra.mxu0 %v1461
        %1485 = vmatpush.msra.mxu0 %v1459
        %1486 = vmatmul.f32.gmra.mxu0 %v1465
        %v1487 = vpop.f32.mrf.mxu0
        %v1488 = vadd.f32 0.0, %v1487
        %1489 = vmatmul.f32.gmra.mxu0 %v1468
        %v1490 = vpop.f32.mrf.mxu0
        %v1491 = vadd.f32 0.0, %v1490
        %1492 = vdwg.mxu0
        %1495 = vrot.lane.b32.xlu0 %v1488, 24
        %v1496 = vpop.permute.xlu0 %1495
        %1497 = vrot.lane.b32.xlu0 %v1491, 24
        %v1498 = vpop.permute.xlu0 %1497
        %vm1501 = vcmask 261312
        %1502 = vst.msk [vmem:[#allocation2] sm:$0xff] %vm1501, %v1496
        %1503 = vst.msk [vmem:[#allocation2 + $0x8] sm:$0xff] %vm1501, %v1498
        %v1504 = vld [vmem:[#allocation2] sm:$0xff]
        %v1505 = vld [vmem:[#allocation2 + $0x8] sm:$0xff]
        %v1506 = vld [vmem:[%s11] sm:$0xff]
        %v1507 = vld [vmem:[%s11 + $0x8] sm:$0xff]
        %v1508 = vld [vmem:[%s11 + $0x10] sm:$0xff]
        %v1509 = vld [vmem:[%s11 + $0x18] sm:$0xff]
        %v1510 = vld [vmem:[%s13] sm:$0x1]
        %v1512 = vperm.slane %v1510, 0
        %v1515 = vsel %vm1040, %v1504, 0
        %v1518 = vsel %vm1040, %v1505, 0
        %1520 = vmatpush.msra.mxu0 0.0
        %1521 = vmatpush.msra.mxu0 0.0
        %1522 = vmatpush.msra.mxu0 0.0
        %1523 = vmatpush.msra.mxu0 0.0
        %1524 = vmatpush.msra.mxu0 0.0
        %1525 = vmatpush.msra.mxu0 0.0
        %1526 = vmatpush.msra.mxu0 0.0
        %1527 = vmatpush.msra.mxu0 0.0
        %1528 = vmatpush.msra.mxu0 0.0
        %1529 = vmatpush.msra.mxu0 0.0
        %1530 = vmatpush.msra.mxu0 0.0
        %1531 = vmatpush.msra.mxu0 0.0
        %1532 = vmatpush.msra.mxu0 %v1509
        %1533 = vmatpush.msra.mxu0 %v1508
        %1534 = vmatpush.msra.mxu0 %v1507
        %1535 = vmatpush.msra.mxu0 %v1506
        %1536 = vmatmul.f32.gmra.mxu0 %v1515
        %v1537 = vpop.f32.mrf.mxu0
        %v1538 = vadd.f32 %v1512, %v1537
        %1539 = vmatmul.f32.gmra.mxu0 %v1518
        %v1540 = vpop.f32.mrf.mxu0
        %v1541 = vadd.f32 %v1512, %v1540
        %1542 = vdwg.mxu0
        %v1543 = vadd.f32 %v1018, %v1538
        %v1544 = vadd.f32 %v1019, %v1541
        %v1545 = vld [vmem:[%s15] sm:$0x1]
        %v1546 = vld [vmem:[%s17] sm:$0x1]
        %v1547 = vsel %vm1040, %v1543, 0.0
        %1548 = vadd.xlane.f32.xlu0 %v1547
        %v1549 = vpop.xlane.xlu0 %1548
        %v1550 = vsel %vm1040, %v1544, 0.0
        %1551 = vadd.xlane.f32.xlu0 %v1550
        %v1552 = vpop.xlane.xlu0 %1551
        %v1553 = vrcp.pop 32.0
        %v1554 = vmul.f32 32.0, %v1553
        %v1555 = vsub.f32 1.0, %v1554
        %v1556 = vmul.f32 %v1553, %v1555
        %v1557 = vadd.f32 %v1553, %v1556
        %vm1558 = vweird.f32 %v1553
        %v1559 = vsel %vm1558, %v1553, %v1557
        %v1560 = vmul.f32 %v1549, %v1559
        %v1561 = vmul.f32 %v1552, %v1559
        %v1562 = vsub.f32 %v1543, %v1560
        %v1563 = vsub.f32 %v1544, %v1561
        %v1564 = vmul.f32 %v1562, %v1562
        %v1565 = vmul.f32 %v1563, %v1563
        %v1566 = vsel %vm1040, %v1564, 0.0
        %1567 = vadd.xlane.f32.xlu0 %v1566
        %v1568 = vpop.xlane.xlu0 %1567
        %v1569 = vsel %vm1040, %v1565, 0.0
        %1570 = vadd.xlane.f32.xlu0 %v1569
        %v1571 = vpop.xlane.xlu0 %1570
        %v1572 = vmul.f32 %v1568, %v1559
        %v1573 = vmul.f32 %v1571, %v1559
        %v1574 = vadd.f32 %v1572, 1e-05
        %v1575 = vadd.f32 %v1573, 1e-05
        %v1576 = vrsqrt.pop %v1574
        %v1577 = vmul.f32 %v1576, %v1574
        %v1578 = vmul.f32 %v1577, %v1576
        %v1579 = vmul.f32 0.5, %v1578
        %v1580 = vsub.f32 1.5, %v1579
        %v1581 = vmul.f32 %v1576, %v1580
        %vm1582 = vweird.f32 %v1574
        %vm1583 = vweird.f32 %v1576
        %vm1584 = vmor %vm1582, %vm1583
        %v1585 = vsel %vm1584, %v1576, %v1581
        %v1586 = vrsqrt.pop %v1575
        %v1587 = vmul.f32 %v1586, %v1575
        %v1588 = vmul.f32 %v1587, %v1586
        %v1589 = vmul.f32 0.5, %v1588
        %v1590 = vsub.f32 1.5, %v1589
        %v1591 = vmul.f32 %v1586, %v1590
        %vm1592 = vweird.f32 %v1575
        %vm1593 = vweird.f32 %v1586
        %vm1594 = vmor %vm1592, %vm1593
        %v1595 = vsel %vm1594, %v1586, %v1591
        %v1596 = vmul.f32 %v1562, %v1585
        %v1597 = vmul.f32 %v1563, %v1595
        %v1599 = vperm.slane %v1545, 0
        %v1601 = vmul.f32 %v1596, %v1599
        %v1602 = vmul.f32 %v1597, %v1599
        %v1604 = vperm.slane %v1546, 0
        %v1606 = vadd.f32 %v1601, %v1604
        %v1607 = vadd.f32 %v1602, %v1604
        %v1608 = vld [vmem:[%s19] sm:$0xff]
        %v1609 = vld [vmem:[%s19 + $0x8] sm:$0xff]
        %v1610 = vld [vmem:[%s19 + $0x10] sm:$0xff]
        %v1611 = vld [vmem:[%s19 + $0x18] sm:$0xff]
        %v1612 = vld [vmem:[%s21] sm:$0x1]
        %v1614 = vperm.slane %v1612, 0
        %v1617 = vsel %vm1040, %v1606, 0
        %v1620 = vsel %vm1040, %v1607, 0
        %1622 = vmatpush.msra.mxu0 0.0
        %1623 = vmatpush.msra.mxu0 0.0
        %1624 = vmatpush.msra.mxu0 0.0
        %1625 = vmatpush.msra.mxu0 0.0
        %1626 = vmatpush.msra.mxu0 0.0
        %1627 = vmatpush.msra.mxu0 0.0
        %1628 = vmatpush.msra.mxu0 0.0
        %1629 = vmatpush.msra.mxu0 0.0
        %1630 = vmatpush.msra.mxu0 0.0
        %1631 = vmatpush.msra.mxu0 0.0
        %1632 = vmatpush.msra.mxu0 0.0
        %1633 = vmatpush.msra.mxu0 0.0
        %1634 = vmatpush.msra.mxu0 %v1611
        %1635 = vmatpush.msra.mxu0 %v1610
        %1636 = vmatpush.msra.mxu0 %v1609
        %1637 = vmatpush.msra.mxu0 %v1608
        %1638 = vmatmul.f32.gmra.mxu0 %v1617
        %v1639 = vpop.f32.mrf.mxu0
        %v1640 = vadd.f32 %v1614, %v1639
        %1641 = vmatmul.f32.gmra.mxu0 %v1620
        %v1642 = vpop.f32.mrf.mxu0
        %v1643 = vadd.f32 %v1614, %v1642
        %1644 = vdwg.mxu0
        %v1645 = vmax.f32 %v1640, 0.0
        %v1646 = vmax.f32 %v1643, 0.0
        %v1647 = vld [vmem:[%s23] sm:$0xff]
        %v1648 = vld [vmem:[%s23 + $0x8] sm:$0xff]
        %v1649 = vld [vmem:[%s23 + $0x10] sm:$0xff]
        %v1650 = vld [vmem:[%s23 + $0x18] sm:$0xff]
        %v1651 = vld [vmem:[%s23 + $0x20] sm:$0xff]
        %v1652 = vld [vmem:[%s23 + $0x28] sm:$0xff]
        %v1653 = vld [vmem:[%s23 + $0x30] sm:$0xff]
        %v1654 = vld [vmem:[%s23 + $0x38] sm:$0xff]
        %v1655 = vld [vmem:[%s25] sm:$0x1]
        %v1657 = vperm.slane %v1655, 0
        %vm1659 = vcmask 523264
        %v1661 = vsel %vm1659, %v1645, 0
        %v1664 = vsel %vm1659, %v1646, 0
        %1666 = vmatpush.msra.mxu0 0.0
        %1667 = vmatpush.msra.mxu0 0.0
        %1668 = vmatpush.msra.mxu0 0.0
        %1669 = vmatpush.msra.mxu0 0.0
        %1670 = vmatpush.msra.mxu0 0.0
        %1671 = vmatpush.msra.mxu0 0.0
        %1672 = vmatpush.msra.mxu0 0.0
        %1673 = vmatpush.msra.mxu0 0.0
        %1674 = vmatpush.msra.mxu0 %v1654
        %1675 = vmatpush.msra.mxu0 %v1653
        %1676 = vmatpush.msra.mxu0 %v1652
        %1677 = vmatpush.msra.mxu0 %v1651
        %1678 = vmatpush.msra.mxu0 %v1650
        %1679 = vmatpush.msra.mxu0 %v1649
        %1680 = vmatpush.msra.mxu0 %v1648
        %1681 = vmatpush.msra.mxu0 %v1647
        %1682 = vmatmul.f32.gmra.mxu0 %v1661
        %v1683 = vpop.f32.mrf.mxu0
        %v1684 = vadd.f32 %v1657, %v1683
        %1685 = vmatmul.f32.gmra.mxu0 %v1664
        %v1686 = vpop.f32.mrf.mxu0
        %v1687 = vadd.f32 %v1657, %v1686
        %1688 = vdwg.mxu0
        %v1689 = vadd.f32 %v1606, %v1684
        %v1690 = vadd.f32 %v1607, %v1687
        %v1691 = vld [vmem:[%s27] sm:$0x1]
        %v1692 = vld [vmem:[%s29] sm:$0x1]
        %v1693 = vsel %vm1040, %v1689, 0.0
        %1694 = vadd.xlane.f32.xlu0 %v1693
        %v1695 = vpop.xlane.xlu0 %1694
        %v1696 = vsel %vm1040, %v1690, 0.0
        %1697 = vadd.xlane.f32.xlu0 %v1696
        %v1698 = vpop.xlane.xlu0 %1697
        %v1699 = vmul.f32 %v1695, %v1559
        %v1700 = vmul.f32 %v1698, %v1559
        %v1701 = vsub.f32 %v1689, %v1699
        %v1702 = vsub.f32 %v1690, %v1700
        %v1703 = vmul.f32 %v1701, %v1701
        %v1704 = vmul.f32 %v1702, %v1702
        %v1705 = vsel %vm1040, %v1703, 0.0
        %1706 = vadd.xlane.f32.xlu0 %v1705
        %v1707 = vpop.xlane.xlu0 %1706
        %v1708 = vsel %vm1040, %v1704, 0.0
        %1709 = vadd.xlane.f32.xlu0 %v1708
        %v1710 = vpop.xlane.xlu0 %1709
        %v1711 = vmul.f32 %v1707, %v1559
        %v1712 = vmul.f32 %v1710, %v1559
        %v1713 = vadd.f32 %v1711, 1e-05
        %v1714 = vadd.f32 %v1712, 1e-05
        %v1715 = vrsqrt.pop %v1713
        %v1716 = vmul.f32 %v1715, %v1713
        %v1717 = vmul.f32 %v1716, %v1715
        %v1718 = vmul.f32 0.5, %v1717
        %v1719 = vsub.f32 1.5, %v1718
        %v1720 = vmul.f32 %v1715, %v1719
        %vm1721 = vweird.f32 %v1713
        %vm1722 = vweird.f32 %v1715
        %vm1723 = vmor %vm1721, %vm1722
        %v1724 = vsel %vm1723, %v1715, %v1720
        %v1725 = vrsqrt.pop %v1714
        %v1726 = vmul.f32 %v1725, %v1714
        %v1727 = vmul.f32 %v1726, %v1725
        %v1728 = vmul.f32 0.5, %v1727
        %v1729 = vsub.f32 1.5, %v1728
        %v1730 = vmul.f32 %v1725, %v1729
        %vm1731 = vweird.f32 %v1714
        %vm1732 = vweird.f32 %v1725
        %vm1733 = vmor %vm1731, %vm1732
        %v1734 = vsel %vm1733, %v1725, %v1730
        %v1735 = vmul.f32 %v1701, %v1724
        %v1736 = vmul.f32 %v1702, %v1734
        %v1738 = vperm.slane %v1691, 0
        %v1740 = vmul.f32 %v1735, %v1738
        %v1741 = vmul.f32 %v1736, %v1738
        %v1743 = vperm.slane %v1692, 0
        %v1745 = vadd.f32 %v1740, %v1743
        %v1746 = vadd.f32 %v1741, %v1743
        %v1747 = vld [vmem:[%s31] sm:$0xff]
        %v1748 = vld [vmem:[%s31 + $0x8] sm:$0xff]
        %v1749 = vld [vmem:[%s31 + $0x10] sm:$0xff]
        %v1750 = vld [vmem:[%s31 + $0x18] sm:$0xff]
        %v1751 = vld [vmem:[%s33] sm:$0x1]
        %v1753 = vperm.slane %v1751, 0
        %v1756 = vsel %vm1040, %v1745, 0
        %v1759 = vsel %vm1040, %v1746, 0
        %1761 = vmatpush.msra.mxu0 0.0
        %1762 = vmatpush.msra.mxu0 0.0
        %1763 = vmatpush.msra.mxu0 0.0
        %1764 = vmatpush.msra.mxu0 0.0
        %1765 = vmatpush.msra.mxu0 0.0
        %1766 = vmatpush.msra.mxu0 0.0
        %1767 = vmatpush.msra.mxu0 0.0
        %1768 = vmatpush.msra.mxu0 0.0
        %1769 = vmatpush.msra.mxu0 0.0
        %1770 = vmatpush.msra.mxu0 0.0
        %1771 = vmatpush.msra.mxu0 0.0
        %1772 = vmatpush.msra.mxu0 0.0
        %1773 = vmatpush.msra.mxu0 %v1750
        %1774 = vmatpush.msra.mxu0 %v1749
        %1775 = vmatpush.msra.mxu0 %v1748
        %1776 = vmatpush.msra.mxu0 %v1747
        %1777 = vmatmul.f32.gmra.mxu0 %v1756
        %v1778 = vpop.f32.mrf.mxu0
        %v1779 = vadd.f32 %v1753, %v1778
        %1780 = vmatmul.f32.gmra.mxu0 %v1759
        %v1781 = vpop.f32.mrf.mxu0
        %v1782 = vadd.f32 %v1753, %v1781
        %1783 = vdwg.mxu0
        %1786 = vrot.lane.b32.xlu0 %v1779, 96
        %v1787 = vpop.permute.xlu0 %1786
        %1788 = vrot.lane.b32.xlu0 %v1782, 96
        %v1789 = vpop.permute.xlu0 %1788
        %v1790 = vsel %vm1076, %v1779, 0
        %v1792 = vsel %vm1076, %v1782, 0
        %v1794 = vsel %vm1076, %v1787, 0
        %v1796 = vsel %vm1076, %v1789, 0
        %1798 = vmatpush.xpose.msra.mxu0 0.0
        %1799 = vmatpush.xpose.msra.mxu0 0.0
        %1800 = vmatpush.xpose.msra.mxu0 0.0
        %1801 = vmatpush.xpose.msra.mxu0 0.0
        %1802 = vmatpush.xpose.msra.mxu0 0.0
        %1803 = vmatpush.xpose.msra.mxu0 0.0
        %1804 = vmatpush.xpose.msra.mxu0 0.0
        %1805 = vmatpush.xpose.msra.mxu0 0.0
        %1806 = vmatpush.xpose.msra.mxu0 0.0
        %1807 = vmatpush.xpose.msra.mxu0 0.0
        %1808 = vmatpush.xpose.msra.mxu0 0.0
        %1809 = vmatpush.xpose.msra.mxu0 0.0
        %1810 = vmatpush.xpose.msra.mxu0 0.0
        %1811 = vmatpush.xpose.msra.mxu0 0.0
        %1812 = vmatpush.xpose.msra.mxu0 %v1796
        %1813 = vmatpush.xpose.msra.mxu0 %v1794
        %1814 = vmatmul.f32.gmra.mxu0 %v1790
        %v1815 = vpop.f32.mrf.mxu0
        %v1816 = vadd.f32 0.0, %v1815
        %1817 = vmatmul.f32.gmra.mxu0 %v1792
        %v1818 = vpop.f32.mrf.mxu0
        %v1819 = vadd.f32 0.0, %v1818
        %1820 = vdwg.mxu0
        %v1821 = vmul.f32 %v1816, 0.35355338
        %v1822 = vmul.f32 %v1819, 0.35355338
        %v1823 = vsel %vm1030, %v1821, -1e+09
        %v1824 = vsel %vm1031, %v1822, -1e+09
        %v1825 = vsel %vm984, %v1823, -inf
        %1826 = vmax.xlane.f32.xlu0 %v1825
        %v1827 = vpop.xlane.xlu0 %1826
        %v1828 = vsel %vm984, %v1824, -inf
        %1829 = vmax.xlane.f32.xlu0 %v1828
        %v1830 = vpop.xlane.xlu0 %1829
        %v1831 = vsub.f32 %v1823, %v1827
        %v1832 = vsub.f32 %v1824, %v1830
        %v1833 = vmul.f32 %v1831, 1.442695
        %v1834 = vpow.pop %v1833
        %v1835 = vmul.f32 %v1832, 1.442695
        %v1836 = vpow.pop %v1835
        %v1837 = vsel %vm984, %v1834, 0.0
        %1838 = vadd.xlane.f32.xlu0 %v1837
        %v1839 = vpop.xlane.xlu0 %1838
        %v1840 = vsel %vm984, %v1836, 0.0
        %1841 = vadd.xlane.f32.xlu0 %v1840
        %v1842 = vpop.xlane.xlu0 %1841
        %v1843 = vrcp.pop %v1839
        %v1844 = vrcp.pop %v1842
        %v1845 = vmul.f32 %v1834, %v1843
        %v1846 = vmul.f32 %v1836, %v1844
        %1847 = vrot.lane.b32.xlu0 %v1779, 64
        %v1848 = vpop.permute.xlu0 %1847
        %1849 = vrot.lane.b32.xlu0 %v1782, 64
        %v1850 = vpop.permute.xlu0 %1849
        %v1854 = vsel %vm984, %v1845, 0
        %v1857 = vsel %vm984, %v1846, 0
        %1859 = vmatpush.msra.mxu0 0.0
        %1860 = vmatpush.msra.mxu0 0.0
        %1861 = vmatpush.msra.mxu0 0.0
        %1862 = vmatpush.msra.mxu0 0.0
        %1863 = vmatpush.msra.mxu0 0.0
        %1864 = vmatpush.msra.mxu0 0.0
        %1865 = vmatpush.msra.mxu0 0.0
        %1866 = vmatpush.msra.mxu0 0.0
        %1867 = vmatpush.msra.mxu0 0.0
        %1868 = vmatpush.msra.mxu0 0.0
        %1869 = vmatpush.msra.mxu0 0.0
        %1870 = vmatpush.msra.mxu0 0.0
        %1871 = vmatpush.msra.mxu0 0.0
        %1872 = vmatpush.msra.mxu0 0.0
        %1873 = vmatpush.msra.mxu0 %v1850
        %1874 = vmatpush.msra.mxu0 %v1848
        %1875 = vmatmul.f32.gmra.mxu0 %v1854
        %v1876 = vpop.f32.mrf.mxu0
        %v1877 = vadd.f32 0.0, %v1876
        %1878 = vmatmul.f32.gmra.mxu0 %v1857
        %v1879 = vpop.f32.mrf.mxu0
        %v1880 = vadd.f32 0.0, %v1879
        %1881 = vdwg.mxu0
        %1882 = vst.msk [vmem:[#allocation2] sm:$0xff] %vm1076, %v1877
        %1883 = vst.msk [vmem:[#allocation2 + $0x8] sm:$0xff] %vm1076, %v1880
        %1884 = vrot.lane.b32.xlu0 %v1779, 120
        %v1885 = vpop.permute.xlu0 %1884
        %1886 = vrot.lane.b32.xlu0 %v1782, 120
        %v1887 = vpop.permute.xlu0 %1886
        %1888 = vrot.lane.b32.xlu0 %v1779, 88
        %v1889 = vpop.permute.xlu0 %1888
        %1890 = vrot.lane.b32.xlu0 %v1782, 88
        %v1891 = vpop.permute.xlu0 %1890
        %v1892 = vsel %vm1076, %v1885, 0
        %v1894 = vsel %vm1076, %v1887, 0
        %v1896 = vsel %vm1076, %v1889, 0
        %v1898 = vsel %vm1076, %v1891, 0
        %1900 = vmatpush.xpose.msra.mxu0 0.0
        %1901 = vmatpush.xpose.msra.mxu0 0.0
        %1902 = vmatpush.xpose.msra.mxu0 0.0
        %1903 = vmatpush.xpose.msra.mxu0 0.0
        %1904 = vmatpush.xpose.msra.mxu0 0.0
        %1905 = vmatpush.xpose.msra.mxu0 0.0
        %1906 = vmatpush.xpose.msra.mxu0 0.0
        %1907 = vmatpush.xpose.msra.mxu0 0.0
        %1908 = vmatpush.xpose.msra.mxu0 0.0
        %1909 = vmatpush.xpose.msra.mxu0 0.0
        %1910 = vmatpush.xpose.msra.mxu0 0.0
        %1911 = vmatpush.xpose.msra.mxu0 0.0
        %1912 = vmatpush.xpose.msra.mxu0 0.0
        %1913 = vmatpush.xpose.msra.mxu0 0.0
        %1914 = vmatpush.xpose.msra.mxu0 %v1898
        %1915 = vmatpush.xpose.msra.mxu0 %v1896
        %1916 = vmatmul.f32.gmra.mxu0 %v1892
        %v1917 = vpop.f32.mrf.mxu0
        %v1918 = vadd.f32 0.0, %v1917
        %1919 = vmatmul.f32.gmra.mxu0 %v1894
        %v1920 = vpop.f32.mrf.mxu0
        %v1921 = vadd.f32 0.0, %v1920
        %1922 = vdwg.mxu0
        %v1923 = vmul.f32 %v1918, 0.35355338
        %v1924 = vmul.f32 %v1921, 0.35355338
        %v1925 = vsel %vm1030, %v1923, -1e+09
        %v1926 = vsel %vm1031, %v1924, -1e+09
        %v1927 = vsel %vm984, %v1925, -inf
        %1928 = vmax.xlane.f32.xlu0 %v1927
        %v1929 = vpop.xlane.xlu0 %1928
        %v1930 = vsel %vm984, %v1926, -inf
        %1931 = vmax.xlane.f32.xlu0 %v1930
        %v1932 = vpop.xlane.xlu0 %1931
        %v1933 = vsub.f32 %v1925, %v1929
        %v1934 = vsub.f32 %v1926, %v1932
        %v1935 = vmul.f32 %v1933, 1.442695
        %v1936 = vpow.pop %v1935
        %v1937 = vmul.f32 %v1934, 1.442695
        %v1938 = vpow.pop %v1937
        %v1939 = vsel %vm984, %v1936, 0.0
        %1940 = vadd.xlane.f32.xlu0 %v1939
        %v1941 = vpop.xlane.xlu0 %1940
        %v1942 = vsel %vm984, %v1938, 0.0
        %1943 = vadd.xlane.f32.xlu0 %v1942
        %v1944 = vpop.xlane.xlu0 %1943
        %v1945 = vrcp.pop %v1941
        %v1946 = vrcp.pop %v1944
        %v1947 = vmul.f32 %v1936, %v1945
        %v1948 = vmul.f32 %v1938, %v1946
        %1949 = vrot.lane.b32.xlu0 %v1779, 56
        %v1950 = vpop.permute.xlu0 %1949
        %1951 = vrot.lane.b32.xlu0 %v1782, 56
        %v1952 = vpop.permute.xlu0 %1951
        %v1956 = vsel %vm984, %v1947, 0
        %v1959 = vsel %vm984, %v1948, 0
        %1961 = vmatpush.msra.mxu0 0.0
        %1962 = vmatpush.msra.mxu0 0.0
        %1963 = vmatpush.msra.mxu0 0.0
        %1964 = vmatpush.msra.mxu0 0.0
        %1965 = vmatpush.msra.mxu0 0.0
        %1966 = vmatpush.msra.mxu0 0.0
        %1967 = vmatpush.msra.mxu0 0.0
        %1968 = vmatpush.msra.mxu0 0.0
        %1969 = vmatpush.msra.mxu0 0.0
        %1970 = vmatpush.msra.mxu0 0.0
        %1971 = vmatpush.msra.mxu0 0.0
        %1972 = vmatpush.msra.mxu0 0.0
        %1973 = vmatpush.msra.mxu0 0.0
        %1974 = vmatpush.msra.mxu0 0.0
        %1975 = vmatpush.msra.mxu0 %v1952
        %1976 = vmatpush.msra.mxu0 %v1950
        %1977 = vmatmul.f32.gmra.mxu0 %v1956
        %v1978 = vpop.f32.mrf.mxu0
        %v1979 = vadd.f32 0.0, %v1978
        %1980 = vmatmul.f32.gmra.mxu0 %v1959
        %v1981 = vpop.f32.mrf.mxu0
        %v1982 = vadd.f32 0.0, %v1981
        %1983 = vdwg.mxu0
        %1986 = vrot.lane.b32.xlu0 %v1979, 8
        %v1987 = vpop.permute.xlu0 %1986
        %1988 = vrot.lane.b32.xlu0 %v1982, 8
        %v1989 = vpop.permute.xlu0 %1988
        %1992 = vst.msk [vmem:[#allocation2] sm:$0xff] %vm1279, %v1987
        %1993 = vst.msk [vmem:[#allocation2 + $0x8] sm:$0xff] %vm1279, %v1989
        %1994 = vrot.lane.b32.xlu0 %v1779, 112
        %v1995 = vpop.permute.xlu0 %1994
        %1996 = vrot.lane.b32.xlu0 %v1782, 112
        %v1997 = vpop.permute.xlu0 %1996
        %1998 = vrot.lane.b32.xlu0 %v1779, 80
        %v1999 = vpop.permute.xlu0 %1998
        %2000 = vrot.lane.b32.xlu0 %v1782, 80
        %v2001 = vpop.permute.xlu0 %2000
        %v2002 = vsel %vm1076, %v1995, 0
        %v2004 = vsel %vm1076, %v1997, 0
        %v2006 = vsel %vm1076, %v1999, 0
        %v2008 = vsel %vm1076, %v2001, 0
        %2010 = vmatpush.xpose.msra.mxu0 0.0
        %2011 = vmatpush.xpose.msra.mxu0 0.0
        %2012 = vmatpush.xpose.msra.mxu0 0.0
        %2013 = vmatpush.xpose.msra.mxu0 0.0
        %2014 = vmatpush.xpose.msra.mxu0 0.0
        %2015 = vmatpush.xpose.msra.mxu0 0.0
        %2016 = vmatpush.xpose.msra.mxu0 0.0
        %2017 = vmatpush.xpose.msra.mxu0 0.0
        %2018 = vmatpush.xpose.msra.mxu0 0.0
        %2019 = vmatpush.xpose.msra.mxu0 0.0
        %2020 = vmatpush.xpose.msra.mxu0 0.0
        %2021 = vmatpush.xpose.msra.mxu0 0.0
        %2022 = vmatpush.xpose.msra.mxu0 0.0
        %2023 = vmatpush.xpose.msra.mxu0 0.0
        %2024 = vmatpush.xpose.msra.mxu0 %v2008
        %2025 = vmatpush.xpose.msra.mxu0 %v2006
        %2026 = vmatmul.f32.gmra.mxu0 %v2002
        %v2027 = vpop.f32.mrf.mxu0
        %v2028 = vadd.f32 0.0, %v2027
        %2029 = vmatmul.f32.gmra.mxu0 %v2004
        %v2030 = vpop.f32.mrf.mxu0
        %v2031 = vadd.f32 0.0, %v2030
        %2032 = vdwg.mxu0
        %v2033 = vmul.f32 %v2028, 0.35355338
        %v2034 = vmul.f32 %v2031, 0.35355338
        %v2035 = vsel %vm1030, %v2033, -1e+09
        %v2036 = vsel %vm1031, %v2034, -1e+09
        %v2037 = vsel %vm984, %v2035, -inf
        %2038 = vmax.xlane.f32.xlu0 %v2037
        %v2039 = vpop.xlane.xlu0 %2038
        %v2040 = vsel %vm984, %v2036, -inf
        %2041 = vmax.xlane.f32.xlu0 %v2040
        %v2042 = vpop.xlane.xlu0 %2041
        %v2043 = vsub.f32 %v2035, %v2039
        %v2044 = vsub.f32 %v2036, %v2042
        %v2045 = vmul.f32 %v2043, 1.442695
        %v2046 = vpow.pop %v2045
        %v2047 = vmul.f32 %v2044, 1.442695
        %v2048 = vpow.pop %v2047
        %v2049 = vsel %vm984, %v2046, 0.0
        %2050 = vadd.xlane.f32.xlu0 %v2049
        %v2051 = vpop.xlane.xlu0 %2050
        %v2052 = vsel %vm984, %v2048, 0.0
        %2053 = vadd.xlane.f32.xlu0 %v2052
        %v2054 = vpop.xlane.xlu0 %2053
        %v2055 = vrcp.pop %v2051
        %v2056 = vrcp.pop %v2054
        %v2057 = vmul.f32 %v2046, %v2055
        %v2058 = vmul.f32 %v2048, %v2056
        %2059 = vrot.lane.b32.xlu0 %v1779, 48
        %v2060 = vpop.permute.xlu0 %2059
        %2061 = vrot.lane.b32.xlu0 %v1782, 48
        %v2062 = vpop.permute.xlu0 %2061
        %v2066 = vsel %vm984, %v2057, 0
        %v2069 = vsel %vm984, %v2058, 0
        %2071 = vmatpush.msra.mxu0 0.0
        %2072 = vmatpush.msra.mxu0 0.0
        %2073 = vmatpush.msra.mxu0 0.0
        %2074 = vmatpush.msra.mxu0 0.0
        %2075 = vmatpush.msra.mxu0 0.0
        %2076 = vmatpush.msra.mxu0 0.0
        %2077 = vmatpush.msra.mxu0 0.0
        %2078 = vmatpush.msra.mxu0 0.0
        %2079 = vmatpush.msra.mxu0 0.0
        %2080 = vmatpush.msra.mxu0 0.0
        %2081 = vmatpush.msra.mxu0 0.0
        %2082 = vmatpush.msra.mxu0 0.0
        %2083 = vmatpush.msra.mxu0 0.0
        %2084 = vmatpush.msra.mxu0 0.0
        %2085 = vmatpush.msra.mxu0 %v2062
        %2086 = vmatpush.msra.mxu0 %v2060
        %2087 = vmatmul.f32.gmra.mxu0 %v2066
        %v2088 = vpop.f32.mrf.mxu0
        %v2089 = vadd.f32 0.0, %v2088
        %2090 = vmatmul.f32.gmra.mxu0 %v2069
        %v2091 = vpop.f32.mrf.mxu0
        %v2092 = vadd.f32 0.0, %v2091
        %2093 = vdwg.mxu0
        %2096 = vrot.lane.b32.xlu0 %v2089, 16
        %v2097 = vpop.permute.xlu0 %2096
        %2098 = vrot.lane.b32.xlu0 %v2092, 16
        %v2099 = vpop.permute.xlu0 %2098
        %2102 = vst.msk [vmem:[#allocation2] sm:$0xff] %vm1390, %v2097
        %2103 = vst.msk [vmem:[#allocation2 + $0x8] sm:$0xff] %vm1390, %v2099
        %2104 = vrot.lane.b32.xlu0 %v1779, 104
        %v2105 = vpop.permute.xlu0 %2104
        %2106 = vrot.lane.b32.xlu0 %v1782, 104
        %v2107 = vpop.permute.xlu0 %2106
        %2108 = vrot.lane.b32.xlu0 %v1779, 72
        %v2109 = vpop.permute.xlu0 %2108
        %2110 = vrot.lane.b32.xlu0 %v1782, 72
        %v2111 = vpop.permute.xlu0 %2110
        %v2112 = vsel %vm1076, %v2105, 0
        %v2114 = vsel %vm1076, %v2107, 0
        %v2116 = vsel %vm1076, %v2109, 0
        %v2118 = vsel %vm1076, %v2111, 0
        %2120 = vmatpush.xpose.msra.mxu0 0.0
        %2121 = vmatpush.xpose.msra.mxu0 0.0
        %2122 = vmatpush.xpose.msra.mxu0 0.0
        %2123 = vmatpush.xpose.msra.mxu0 0.0
        %2124 = vmatpush.xpose.msra.mxu0 0.0
        %2125 = vmatpush.xpose.msra.mxu0 0.0
        %2126 = vmatpush.xpose.msra.mxu0 0.0
        %2127 = vmatpush.xpose.msra.mxu0 0.0
        %2128 = vmatpush.xpose.msra.mxu0 0.0
        %2129 = vmatpush.xpose.msra.mxu0 0.0
        %2130 = vmatpush.xpose.msra.mxu0 0.0
        %2131 = vmatpush.xpose.msra.mxu0 0.0
        %2132 = vmatpush.xpose.msra.mxu0 0.0
        %2133 = vmatpush.xpose.msra.mxu0 0.0
        %2134 = vmatpush.xpose.msra.mxu0 %v2118
        %2135 = vmatpush.xpose.msra.mxu0 %v2116
        %2136 = vmatmul.f32.gmra.mxu0 %v2112
        %v2137 = vpop.f32.mrf.mxu0
        %v2138 = vadd.f32 0.0, %v2137
        %2139 = vmatmul.f32.gmra.mxu0 %v2114
        %v2140 = vpop.f32.mrf.mxu0
        %v2141 = vadd.f32 0.0, %v2140
        %2142 = vdwg.mxu0
        %v2143 = vmul.f32 %v2138, 0.35355338
        %v2144 = vmul.f32 %v2141, 0.35355338
        %v2145 = vsel %vm1030, %v2143, -1e+09
        %v2146 = vsel %vm1031, %v2144, -1e+09
        %v2147 = vsel %vm984, %v2145, -inf
        %2148 = vmax.xlane.f32.xlu0 %v2147
        %v2149 = vpop.xlane.xlu0 %2148
        %v2150 = vsel %vm984, %v2146, -inf
        %2151 = vmax.xlane.f32.xlu0 %v2150
        %v2152 = vpop.xlane.xlu0 %2151
        %v2153 = vsub.f32 %v2145, %v2149
        %v2154 = vsub.f32 %v2146, %v2152
        %v2155 = vmul.f32 %v2153, 1.442695
        %v2156 = vpow.pop %v2155
        %v2157 = vmul.f32 %v2154, 1.442695
        %v2158 = vpow.pop %v2157
        %v2159 = vsel %vm984, %v2156, 0.0
        %2160 = vadd.xlane.f32.xlu0 %v2159
        %v2161 = vpop.xlane.xlu0 %2160
        %v2162 = vsel %vm984, %v2158, 0.0
        %2163 = vadd.xlane.f32.xlu0 %v2162
        %v2164 = vpop.xlane.xlu0 %2163
        %v2165 = vrcp.pop %v2161
        %v2166 = vrcp.pop %v2164
        %v2167 = vmul.f32 %v2156, %v2165
        %v2168 = vmul.f32 %v2158, %v2166
        %2169 = vrot.lane.b32.xlu0 %v1779, 40
        %v2170 = vpop.permute.xlu0 %2169
        %2171 = vrot.lane.b32.xlu0 %v1782, 40
        %v2172 = vpop.permute.xlu0 %2171
        %v2176 = vsel %vm984, %v2167, 0
        %v2179 = vsel %vm984, %v2168, 0
        %2181 = vmatpush.msra.mxu0 0.0
        %2182 = vmatpush.msra.mxu0 0.0
        %2183 = vmatpush.msra.mxu0 0.0
        %2184 = vmatpush.msra.mxu0 0.0
        %2185 = vmatpush.msra.mxu0 0.0
        %2186 = vmatpush.msra.mxu0 0.0
        %2187 = vmatpush.msra.mxu0 0.0
        %2188 = vmatpush.msra.mxu0 0.0
        %2189 = vmatpush.msra.mxu0 0.0
        %2190 = vmatpush.msra.mxu0 0.0
        %2191 = vmatpush.msra.mxu0 0.0
        %2192 = vmatpush.msra.mxu0 0.0
        %2193 = vmatpush.msra.mxu0 0.0
        %2194 = vmatpush.msra.mxu0 0.0
        %2195 = vmatpush.msra.mxu0 %v2172
        %2196 = vmatpush.msra.mxu0 %v2170
        %2197 = vmatmul.f32.gmra.mxu0 %v2176
        %v2198 = vpop.f32.mrf.mxu0
        %v2199 = vadd.f32 0.0, %v2198
        %2200 = vmatmul.f32.gmra.mxu0 %v2179
        %v2201 = vpop.f32.mrf.mxu0
        %v2202 = vadd.f32 0.0, %v2201
        %2203 = vdwg.mxu0
        %2206 = vrot.lane.b32.xlu0 %v2199, 24
        %v2207 = vpop.permute.xlu0 %2206
        %2208 = vrot.lane.b32.xlu0 %v2202, 24
        %v2209 = vpop.permute.xlu0 %2208
        %2212 = vst.msk [vmem:[#allocation2] sm:$0xff] %vm1501, %v2207
        %2213 = vst.msk [vmem:[#allocation2 + $0x8] sm:$0xff] %vm1501, %v2209
        %v2214 = vld [vmem:[#allocation2] sm:$0xff]
        %v2215 = vld [vmem:[#allocation2 + $0x8] sm:$0xff]
        %v2216 = vld [vmem:[%s35] sm:$0xff]
        %v2217 = vld [vmem:[%s35 + $0x8] sm:$0xff]
        %v2218 = vld [vmem:[%s35 + $0x10] sm:$0xff]
        %v2219 = vld [vmem:[%s35 + $0x18] sm:$0xff]
        %v2220 = vld [vmem:[%s37] sm:$0x1]
        %v2222 = vperm.slane %v2220, 0
        %v2225 = vsel %vm1040, %v2214, 0
        %v2228 = vsel %vm1040, %v2215, 0
        %2230 = vmatpush.msra.mxu0 0.0
        %2231 = vmatpush.msra.mxu0 0.0
        %2232 = vmatpush.msra.mxu0 0.0
        %2233 = vmatpush.msra.mxu0 0.0
        %2234 = vmatpush.msra.mxu0 0.0
        %2235 = vmatpush.msra.mxu0 0.0
        %2236 = vmatpush.msra.mxu0 0.0
        %2237 = vmatpush.msra.mxu0 0.0
        %2238 = vmatpush.msra.mxu0 0.0
        %2239 = vmatpush.msra.mxu0 0.0
        %2240 = vmatpush.msra.mxu0 0.0
        %2241 = vmatpush.msra.mxu0 0.0
        %2242 = vmatpush.msra.mxu0 %v2219
        %2243 = vmatpush.msra.mxu0 %v2218
        %2244 = vmatpush.msra.mxu0 %v2217
        %2245 = vmatpush.msra.mxu0 %v2216
        %2246 = vmatmul.f32.gmra.mxu0 %v2225
        %v2247 = vpop.f32.mrf.mxu0
        %v2248 = vadd.f32 %v2222, %v2247
        %2249 = vmatmul.f32.gmra.mxu0 %v2228
        %v2250 = vpop.f32.mrf.mxu0
        %v2251 = vadd.f32 %v2222, %v2250
        %2252 = vdwg.mxu0
        %v2253 = vadd.f32 %v1745, %v2248
        %v2254 = vadd.f32 %v1746, %v2251
        %v2255 = vld [vmem:[#allocation3] sm:$0x1]
        %v2256 = vld [vmem:[%s41] sm:$0x1]
        %v2257 = vsel %vm1040, %v2253, 0.0
        %2258 = vadd.xlane.f32.xlu0 %v2257
        %v2259 = vpop.xlane.xlu0 %2258
        %v2260 = vsel %vm1040, %v2254, 0.0
        %2261 = vadd.xlane.f32.xlu0 %v2260
        %v2262 = vpop.xlane.xlu0 %2261
        %v2263 = vmul.f32 %v2259, %v1559
        %v2264 = vmul.f32 %v2262, %v1559
        %v2265 = vsub.f32 %v2253, %v2263
        %v2266 = vsub.f32 %v2254, %v2264
        %v2267 = vmul.f32 %v2265, %v2265
        %v2268 = vmul.f32 %v2266, %v2266
        %v2269 = vsel %vm1040, %v2267, 0.0
        %2270 = vadd.xlane.f32.xlu0 %v2269
        %v2271 = vpop.xlane.xlu0 %2270
        %v2272 = vsel %vm1040, %v2268, 0.0
        %2273 = vadd.xlane.f32.xlu0 %v2272
        %v2274 = vpop.xlane.xlu0 %2273
        %v2275 = vmul.f32 %v2271, %v1559
        %v2276 = vmul.f32 %v2274, %v1559
        %v2277 = vadd.f32 %v2275, 1e-05
        %v2278 = vadd.f32 %v2276, 1e-05
        %v2279 = vrsqrt.pop %v2277
        %v2280 = vmul.f32 %v2279, %v2277
        %v2281 = vmul.f32 %v2280, %v2279
        %v2282 = vmul.f32 0.5, %v2281
        %v2283 = vsub.f32 1.5, %v2282
        %v2284 = vmul.f32 %v2279, %v2283
        %vm2285 = vweird.f32 %v2277
        %vm2286 = vweird.f32 %v2279
        %vm2287 = vmor %vm2285, %vm2286
        %v2288 = vsel %vm2287, %v2279, %v2284
        %v2289 = vrsqrt.pop %v2278
        %v2290 = vmul.f32 %v2289, %v2278
        %v2291 = vmul.f32 %v2290, %v2289
        %v2292 = vmul.f32 0.5, %v2291
        %v2293 = vsub.f32 1.5, %v2292
        %v2294 = vmul.f32 %v2289, %v2293
        %vm2295 = vweird.f32 %v2278
        %vm2296 = vweird.f32 %v2289
        %vm2297 = vmor %vm2295, %vm2296
        %v2298 = vsel %vm2297, %v2289, %v2294
        %v2299 = vmul.f32 %v2265, %v2288
        %v2300 = vmul.f32 %v2266, %v2298
        %v2302 = vperm.slane %v2255, 0
        %v2304 = vmul.f32 %v2299, %v2302
        %v2305 = vmul.f32 %v2300, %v2302
        %v2307 = vperm.slane %v2256, 0
        %v2309 = vadd.f32 %v2304, %v2307
        %v2310 = vadd.f32 %v2305, %v2307
        %v2311 = vld [vmem:[#allocation5] sm:$0xff]
        %v2312 = vld [vmem:[#allocation5 + $0x8] sm:$0xff]
        %v2313 = vld [vmem:[#allocation5 + $0x10] sm:$0xff]
        %v2314 = vld [vmem:[#allocation5 + $0x18] sm:$0xff]
        %v2315 = vld [vmem:[%s45] sm:$0x1]
        %v2317 = vperm.slane %v2315, 0
        %v2320 = vsel %vm1040, %v2309, 0
        %v2323 = vsel %vm1040, %v2310, 0
        %2325 = vmatpush.msra.mxu0 0.0
        %2326 = vmatpush.msra.mxu0 0.0
        %2327 = vmatpush.msra.mxu0 0.0
        %2328 = vmatpush.msra.mxu0 0.0
        %2329 = vmatpush.msra.mxu0 0.0
        %2330 = vmatpush.msra.mxu0 0.0
        %2331 = vmatpush.msra.mxu0 0.0
        %2332 = vmatpush.msra.mxu0 0.0
        %2333 = vmatpush.msra.mxu0 0.0
        %2334 = vmatpush.msra.mxu0 0.0
        %2335 = vmatpush.msra.mxu0 0.0
        %2336 = vmatpush.msra.mxu0 0.0
        %2337 = vmatpush.msra.mxu0 %v2314
        %2338 = vmatpush.msra.mxu0 %v2313
        %2339 = vmatpush.msra.mxu0 %v2312
        %2340 = vmatpush.msra.mxu0 %v2311
        %2341 = vmatmul.f32.gmra.mxu0 %v2320
        %v2342 = vpop.f32.mrf.mxu0
        %v2343 = vadd.f32 %v2317, %v2342
        %2344 = vmatmul.f32.gmra.mxu0 %v2323
        %v2345 = vpop.f32.mrf.mxu0
        %v2346 = vadd.f32 %v2317, %v2345
        %2347 = vdwg.mxu0
        %v2348 = vmax.f32 %v2343, 0.0
        %v2349 = vmax.f32 %v2346, 0.0
        %v2350 = vld [vmem:[%s47] sm:$0xff]
        %v2351 = vld [vmem:[%s47 + $0x8] sm:$0xff]
        %v2352 = vld [vmem:[%s47 + $0x10] sm:$0xff]
        %v2353 = vld [vmem:[%s47 + $0x18] sm:$0xff]
        %v2354 = vld [vmem:[%s47 + $0x20] sm:$0xff]
        %v2355 = vld [vmem:[%s47 + $0x28] sm:$0xff]
        %v2356 = vld [vmem:[%s47 + $0x30] sm:$0xff]
        %v2357 = vld [vmem:[%s47 + $0x38] sm:$0xff]
        %v2358 = vld [vmem:[%s49] sm:$0x1]
        %v2360 = vperm.slane %v2358, 0
        %v2363 = vsel %vm1659, %v2348, 0
        %v2366 = vsel %vm1659, %v2349, 0
        %2368 = vmatpush.msra.mxu0 0.0
        %2369 = vmatpush.msra.mxu0 0.0
        %2370 = vmatpush.msra.mxu0 0.0
        %2371 = vmatpush.msra.mxu0 0.0
        %2372 = vmatpush.msra.mxu0 0.0
        %2373 = vmatpush.msra.mxu0 0.0
        %2374 = vmatpush.msra.mxu0 0.0
        %2375 = vmatpush.msra.mxu0 0.0
        %2376 = vmatpush.msra.mxu0 %v2357
        %2377 = vmatpush.msra.mxu0 %v2356
        %2378 = vmatpush.msra.mxu0 %v2355
        %2379 = vmatpush.msra.mxu0 %v2354
        %2380 = vmatpush.msra.mxu0 %v2353
        %2381 = vmatpush.msra.mxu0 %v2352
        %2382 = vmatpush.msra.mxu0 %v2351
        %2383 = vmatpush.msra.mxu0 %v2350
        %2384 = vmatmul.f32.gmra.mxu0 %v2363
        %v2385 = vpop.f32.mrf.mxu0
        %v2386 = vadd.f32 %v2360, %v2385
        %2387 = vmatmul.f32.gmra.mxu0 %v2366
        %v2388 = vpop.f32.mrf.mxu0
        %v2389 = vadd.f32 %v2360, %v2388
        %2390 = vdwg.mxu0
        %v2391 = vadd.f32 %v2309, %v2386
        %v2392 = vadd.f32 %v2310, %v2389
        %v2393 = vld [vmem:[#allocation7] sm:$0x1]
        %v2394 = vld [vmem:[%s53] sm:$0x1]
        %v2395 = vsel %vm1040, %v2391, 0.0
        %2396 = vadd.xlane.f32.xlu0 %v2395
        %v2397 = vpop.xlane.xlu0 %2396
        %v2398 = vsel %vm1040, %v2392, 0.0
        %2399 = vadd.xlane.f32.xlu0 %v2398
        %v2400 = vpop.xlane.xlu0 %2399
        %v2401 = vmul.f32 %v2397, %v1559
        %v2402 = vmul.f32 %v2400, %v1559
        %v2403 = vsub.f32 %v2391, %v2401
        %v2404 = vsub.f32 %v2392, %v2402
        %v2405 = vmul.f32 %v2403, %v2403
        %v2406 = vmul.f32 %v2404, %v2404
        %v2407 = vsel %vm1040, %v2405, 0.0
        %2408 = vadd.xlane.f32.xlu0 %v2407
        %v2409 = vpop.xlane.xlu0 %2408
        %v2410 = vsel %vm1040, %v2406, 0.0
        %2411 = vadd.xlane.f32.xlu0 %v2410
        %v2412 = vpop.xlane.xlu0 %2411
        %v2413 = vmul.f32 %v2409, %v1559
        %v2414 = vmul.f32 %v2412, %v1559
        %v2415 = vadd.f32 %v2413, 1e-05
        %v2416 = vadd.f32 %v2414, 1e-05
        %v2417 = vrsqrt.pop %v2415
        %v2418 = vmul.f32 %v2417, %v2415
        %v2419 = vmul.f32 %v2418, %v2417
        %v2420 = vmul.f32 0.5, %v2419
        %v2421 = vsub.f32 1.5, %v2420
        %v2422 = vmul.f32 %v2417, %v2421
        %vm2423 = vweird.f32 %v2415
        %vm2424 = vweird.f32 %v2417
        %vm2425 = vmor %vm2423, %vm2424
        %v2426 = vsel %vm2425, %v2417, %v2422
        %v2427 = vrsqrt.pop %v2416
        %v2428 = vmul.f32 %v2427, %v2416
        %v2429 = vmul.f32 %v2428, %v2427
        %v2430 = vmul.f32 0.5, %v2429
        %v2431 = vsub.f32 1.5, %v2430
        %v2432 = vmul.f32 %v2427, %v2431
        %vm2433 = vweird.f32 %v2416
        %vm2434 = vweird.f32 %v2427
        %vm2435 = vmor %vm2433, %vm2434
        %v2436 = vsel %vm2435, %v2427, %v2432
        %v2437 = vmul.f32 %v2403, %v2426
        %v2438 = vmul.f32 %v2404, %v2436
        %v2440 = vperm.slane %v2393, 0
        %v2442 = vmul.f32 %v2437, %v2440
        %v2443 = vmul.f32 %v2438, %v2440
        %v2445 = vperm.slane %v2394, 0
        %v2447 = vadd.f32 %v2442, %v2445
        %v2448 = vadd.f32 %v2443, %v2445
        %v2449 = vld [vmem:[#allocation8] sm:$0xff]
        %v2450 = vld [vmem:[#allocation8 + $0x8] sm:$0xff]
        %v2451 = vld [vmem:[#allocation8 + $0x10] sm:$0xff]
        %v2452 = vld [vmem:[#allocation8 + $0x18] sm:$0xff]
        %v2453 = vld [vmem:[%s57] sm:$0x1]
        %v2455 = vperm.slane %v2453, 0
        %v2458 = vsel %vm1040, %v2447, 0
        %v2461 = vsel %vm1040, %v2448, 0
        %2463 = vmatpush.msra.mxu0 0.0
        %2464 = vmatpush.msra.mxu0 0.0
        %2465 = vmatpush.msra.mxu0 0.0
        %2466 = vmatpush.msra.mxu0 0.0
        %2467 = vmatpush.msra.mxu0 0.0
        %2468 = vmatpush.msra.mxu0 0.0
        %2469 = vmatpush.msra.mxu0 0.0
        %2470 = vmatpush.msra.mxu0 0.0
        %2471 = vmatpush.msra.mxu0 0.0
        %2472 = vmatpush.msra.mxu0 0.0
        %2473 = vmatpush.msra.mxu0 0.0
        %2474 = vmatpush.msra.mxu0 0.0
        %2475 = vmatpush.msra.mxu0 %v2452
        %2476 = vmatpush.msra.mxu0 %v2451
        %2477 = vmatpush.msra.mxu0 %v2450
        %2478 = vmatpush.msra.mxu0 %v2449
        %2479 = vmatmul.f32.gmra.mxu0 %v2458
        %v2480 = vpop.f32.mrf.mxu0
        %v2481 = vadd.f32 %v2455, %v2480
        %2482 = vmatmul.f32.gmra.mxu0 %v2461
        %v2483 = vpop.f32.mrf.mxu0
        %v2484 = vadd.f32 %v2455, %v2483
        %2485 = vdwg.mxu0
        %2486 = vst [vmem:[%s959] sm:$0xff] %v2481
        %2487 = vst [vmem:[%s959 + $0x8] sm:$0xff] %v2484
        %p2488 = scmp.lt.s32.totalorder %s73, 1
        %s2489 = scalar_select %p2488, %s73, 1
        %s2490 = smul.addr %s2489, 2
        %s2491 = smul.addr %s2490, 8
        %s2492 = scalar_lea.vmem %s59, %s2491
        // Predicated region
        $region153: #{forward_minibatch.1} parent=135 // pred_check
          %p2493 = pneg %p705
        $region154: #{forward_minibatch.1} parent=135 // pred_check_branch
          %2495 = sbr.rel (%p2493) target = $region156
        $region155: #{forward_minibatch.1} parent=135 // pred_region
          _
        $region156: #{forward_minibatch.1} parent=135 // pred_fallthru
          _
      $region136: #{forward_minibatch.1} parent=5 // pred_fallthru
        _
      %p2496 = scmp.le.s32.totalorder 2, %s68
      // Predicated region
      $region157: #{forward_minibatch.1} parent=5 // pred_check
        %p2497 = pneg %p2496
      $region158: #{forward_minibatch.1} parent=5 // pred_check_branch
        %2499 = sbr.rel (%p2497) target = $region160
      $region159: #{forward_minibatch.1} parent=5 // pred_region
        %s2500 = ssub.s32 %s68, 2
        // Predicated region
        $region161: #{forward_minibatch.1} parent=159 // pred_check
          %p2501 = pneg %p711
        $region162: #{forward_minibatch.1} parent=159 // pred_check_branch
          %2503 = sbr.rel (%p2501) target = $region164
        $region163: #{forward_minibatch.1} parent=159 // pred_region
          %p2504 = scmp.lt.s32.totalorder %s74, 1
          %s2505 = scalar_select %p2504, %s74, 1
          %s2506 = smul.addr %s2505, 2
          %s2507 = smul.addr %s2506, 8
          %s2508 = scalar_lea.vmem %s59, %s2507
        $region164: #{forward_minibatch.1} parent=159 // pred_fallthru
          _
      $region160: #{forward_minibatch.1} parent=5 // pred_fallthru
        _
    $region6: #{forward_minibatch.1} parent=1 // loop_footer
      %s72 = sadd.s32 1, %s68
    $region7: #{forward_minibatch.1} parent=1 // loop_footer_branch
      %67 = sbr.rel target = $region3
    $region8: #{forward_minibatch.1} parent=1 // loop_exit
      _
    %2509 = vsyncpa [#allocation4], 1
    %s2510 = scalar_lea.sflag [#allocation4], 1
    %2511 = vsyncpa %s2510, 1
    %2512 = vsyncpa [#allocation6], 1
    %2513 = vsyncpa [#allocation9], 1

</llo_original>
